<compile_context>
chip_gen: v5e
topology: v5e:2x2
jax: 0.10.0
libtpu: 0.0.40
codegen_flags: <defaults>
</compile_context>

<pallas_src>
import functools

import jax
import jax.numpy as jnp
from jax import lax
from jax.experimental import pallas as pl
from jax.experimental.pallas import tpu as pltpu


# ------------------------------ fused Pallas kernel -------------------------

def _fused_rct_kernel(raw_ref, wenc_ref, benc_ref,
                      wih0_ref, whh0_ref, b0_ref,
                      wih1_ref, whh1_ref, b1_ref,
                      wout_ref, bout_ref,
                      out_ref, gen_ref,
                      *, N, W, F, HC):
    """Fused bottleneck_in + 2-layer LSTM (encode W, generate W) + bottleneck_out.

    raw_ref : (W*N, HC)    channels-last input columns, row = w*N + n
    wenc_ref: (HC, 4F)     blockdiag(w_in) @ wih0         (g-gate cols x2)
    benc_ref: (1, 4F)      tile(b_in,H) @ wih0 + b0       (g-gate cols x2)
    wih0/whh0/b0, wih1/whh1/b1 : LSTM weights (F,4F)/(1,4F), g-gate cols x2
    wout_ref: (F, HC)      blockdiag(w_out)
    bout_ref: (1, HC)      tile(b_out, H)
    out_ref : (W*N, 2*HC)  lanes [0,HC) = input columns (pass-through),
                           lanes [HC,2HC) = generated columns
    gen_ref : (W*N, F)     VMEM scratch for generated hidden states
    """
    F4 = 4 * F

    raw = raw_ref[...]                                    # (W*N, HC)

    # Pass-through half of the output: store early, off the critical path.
    out_ref[:, 0:HC] = raw.astype(out_ref.dtype)

    # Hoisted encoder layer-0 input projection: ONE batched matmul for all W
    # encoder steps (bottleneck_in already folded into the weights).
    genc = (jnp.dot(raw, wenc_ref[...], preferred_element_type=jnp.float32)
            + benc_ref[...])                              # (W*N, 4F)

    wih0 = wih0_ref[...]
    whh0 = whh0_ref[...]
    b0 = b0_ref[...]
    wih1 = wih1_ref[...]
    whh1 = whh1_ref[...]
    b1 = b1_ref[...]

    # g-gate lanes were pre-scaled by 2 wrapper-side, so one sigmoid suffices:
    #   tanh(x) = 2*sigmoid(2x) - 1.  gmul/gadd hoisted out of the loops.
    lane = lax.broadcasted_iota(jnp.int32, (N, F4), 1)
    is_g = (lane >= 2 * F) & (lane < 3 * F)
    gmul = jnp.where(is_g, 2.0, 1.0).astype(jnp.float32)
    gadd = jnp.where(is_g, -1.0, 0.0).astype(jnp.float32)

    def cell_update(gates, c):
        s = jax.nn.sigmoid(gates)                         # one EUP pass
        act = s * gmul + gadd                             # VPU fixup
        i = act[:, 0 * F:1 * F]
        f = act[:, 1 * F:2 * F]
        g = act[:, 2 * F:3 * F]
        o = act[:, 3 * F:4 * F]
        c_new = f * c + i * g
        h_new = o * jnp.tanh(c_new)
        return h_new, c_new

    h0 = c0 = h1 = c1 = jnp.zeros((N, F), jnp.float32)

    # ---- phase 1: encode the W input columns (fully unrolled) --------------
    for t in range(W):
        # layer 0: input projection precomputed; only h0 @ whh0 is serial.
        g0 = genc[t * N:(t + 1) * N, :] + jnp.dot(
            h0, whh0, preferred_element_type=jnp.float32)
        h0, c0 = cell_update(g0, c0)
        # layer 1: split dots — h1 @ whh1 only depends on the previous cell's
        # h1 and can issue before the fresh h0 is ready.
        g1 = (b1
              + jnp.dot(h1, whh1, preferred_element_type=jnp.float32)
              + jnp.dot(h0, wih1, preferred_element_type=jnp.float32))
        h1, c1 = cell_update(g1, c1)

    gen_ref[0:N, :] = h1                                  # sequenced_out[0]

    # ---- phase 2: autoregressively generate W-1 more columns ---------------
    for t in range(1, W):
        # layer 0: h0 @ whh0 depends only on the previous step's layer-0 state
        # (available earlier than h1), so it can issue early.
        g0 = (b0
              + jnp.dot(h0, whh0, preferred_element_type=jnp.float32)
              + jnp.dot(h1, wih0, preferred_element_type=jnp.float32))
        h0, c0 = cell_update(g0, c0)
        g1 = (b1
              + jnp.dot(h1, whh1, preferred_element_type=jnp.float32)
              + jnp.dot(h0, wih1, preferred_element_type=jnp.float32))
        h1, c1 = cell_update(g1, c1)
        gen_ref[t * N:(t + 1) * N, :] = h1                # off critical path

    # ---- bottleneck_out on the whole generated slab (one batched matmul) ---
    gen = gen_ref[...]                                    # (W*N, F)
    gen_px = (jnp.dot(gen, wout_ref[...], preferred_element_type=jnp.float32)
              + bout_ref[...])                            # (W*N, HC)

    out_ref[:, HC:2 * HC] = gen_px.astype(out_ref.dtype)


# ------------------------------ module forward ------------------------------

def recurrent_content_transfer(latent, params):
    """latent: (N, C, W, H) NCHW float32. Returns (N, C, 2W, H)."""
    (w_in, b_in, wih0, whh0, b0, wih1, whh1, b1, w_out, b_out) = params
    N, C, W, H = latent.shape
    Cb = w_in.shape[1]
    assert W == H, "module assumes square latent with W == H == input_width"
    F = Cb * H
    F4 = 4 * F
    HC = H * C
    hp = jax.lax.Precision.HIGHEST

    # ---- one-time algebraic folding (weight-sized, done wrapper-side) ------
    eyeH = jnp.eye(H, dtype=jnp.float32)
    blk_in = jnp.kron(eyeH, w_in)                         # (H*C, H*Cb)
    wenc = jnp.dot(blk_in, wih0, precision=hp)            # (H*C, 4F)
    benc = jnp.dot(jnp.tile(b_in, H)[None, :], wih0, precision=hp) + b0
    wout = jnp.kron(eyeH, w_out)                          # (F, H*C)
    bout = jnp.tile(b_out, H)[None, :]                    # (1, H*C)

    # Pre-scale the g-gate columns (lanes [2F,3F)) by 2 so the kernel needs a
    # single sigmoid per gate vector (tanh(x) = 2*sigmoid(2x) - 1).
    lane = jnp.arange(F4)
    gscale = jnp.where((lane >= 2 * F) & (lane < 3 * F), 2.0, 1.0
                       ).astype(jnp.float32)
    wenc_s = wenc * gscale
    benc_s = benc * gscale
    wih0_s = wih0 * gscale
    whh0_s = whh0 * gscale
    b0_s = b0 * gscale
    wih1_s = wih1 * gscale
    whh1_s = whh1 * gscale
    b1_s = b1 * gscale

    # NCHW -> seq-major channels-last slab: raw[w*N+n, h*C+c] = latent[n,c,w,h]
    raw = jnp.transpose(latent, (2, 0, 3, 1)).reshape(W * N, HC)

    kernel = functools.partial(_fused_rct_kernel, N=N, W=W, F=F, HC=HC)
    out2 = pl.pallas_call(
        kernel,
        out_shape=jax.ShapeDtypeStruct((W * N, 2 * HC), jnp.float32),
        grid=(1,),
        in_specs=[pl.BlockSpec((W * N, HC), lambda i: (0, 0)),
                  pl.BlockSpec((HC, F4), lambda i: (0, 0)),
                  pl.BlockSpec((1, F4), lambda i: (0, 0)),
                  pl.BlockSpec((F, F4), lambda i: (0, 0)),
                  pl.BlockSpec((F, F4), lambda i: (0, 0)),
                  pl.BlockSpec((1, F4), lambda i: (0, 0)),
                  pl.BlockSpec((F, F4), lambda i: (0, 0)),
                  pl.BlockSpec((F, F4), lambda i: (0, 0)),
                  pl.BlockSpec((1, F4), lambda i: (0, 0)),
                  pl.BlockSpec((F, HC), lambda i: (0, 0)),
                  pl.BlockSpec((1, HC), lambda i: (0, 0))],
        out_specs=pl.BlockSpec((W * N, 2 * HC), lambda i: (0, 0)),
        scratch_shapes=[pltpu.VMEM((W * N, F), jnp.float32)],
        compiler_params=pltpu.CompilerParams(
            dimension_semantics=("arbitrary",)),
    )(raw, wenc_s, benc_s, wih0_s, whh0_s, b0_s,
      wih1_s, whh1_s, b1_s, wout, bout)

    # (W*N, 2*HC) lane-dense slab -> (N, C, 2W, H); layout plumbing only.
    slab = out2.reshape(W, N, 2, H, C)
    stitched = jnp.transpose(slab, (1, 4, 2, 0, 3)).reshape(N, C, 2 * W, H)
    return stitched


# ------------------------------ pure-JAX reference ---------------------------

def _ref_cell(x, h, c, wih, whh, b):
    F = h.shape[-1]
    hp = jax.lax.Precision.HIGHEST
    gates = (jnp.dot(x, wih, precision=hp) + jnp.dot(h, whh, precision=hp) + b)
    i = jax.nn.sigmoid(gates[:, :F])
    f = jax.nn.sigmoid(gates[:, F:2 * F])
    g = jnp.tanh(gates[:, 2 * F:3 * F])
    o = jax.nn.sigmoid(gates[:, 3 * F:])
    c = f * c + i * g
    h = o * jnp.tanh(c)
    return h, c


def ref_forward(latent, params):
    (w_in, b_in, wih0, whh0, b0, wih1, whh1, b1, w_out, b_out) = params
    N, C, Wd, H = latent.shape
    Cb = w_in.shape[1]
    F = Cb * Wd
    hp = jax.lax.Precision.HIGHEST
    x = jnp.transpose(latent, (0, 2, 3, 1))
    bott = jnp.einsum('nwhc,cb->nwhb', x, w_in, precision=hp) + b_in
    seq = jnp.transpose(bott.reshape(N, Wd, F), (1, 0, 2))
    h0 = c0 = h1 = c1 = jnp.zeros((N, F), jnp.float32)
    for t in range(Wd):
        h0, c0 = _ref_cell(seq[t], h0, c0, wih0, whh0, b0)
        h1, c1 = _ref_cell(h0, h1, c1, wih1, whh1, b1)
    outs = [h1]
    for _ in range(1, Wd):
        h0, c0 = _ref_cell(h1, h0, c0, wih0, whh0, b0)
        h1, c1 = _ref_cell(h0, h1, c1, wih1, whh1, b1)
        outs.append(h1)
    seq_out = jnp.stack(outs, axis=0)  # (W, N, F)
    gen = jnp.transpose(seq_out, (1, 0, 2)).reshape(N, Wd, H, Cb)
    out = jnp.einsum('nwhb,bc->nwhc', gen, w_out, precision=hp) + b_out
    generated = jnp.transpose(out, (0, 3, 1, 2))
    return jnp.concatenate([latent, generated], axis=2)


# ----------------------------------- main ------------------------------------

if __name__ == "__main__":
    # Shapes consistent with the module:
    #   channels=8, bottleneck_channels=4, input_width=8  ->  F = 4*8 = 32
    N, C, Cb, Wd = 2, 8, 4, 8
    H = Wd
    F = Cb * Wd

    key = jax.random.PRNGKey(0)
    keys = jax.random.split(key, 13)

    def u(k, shape, scale):
        return jax.random.uniform(k, shape, jnp.float32, -scale, scale)

    kc = 1.0 / (C ** 0.5)    # conv_in fan-in
    kb = 1.0 / (Cb ** 0.5)   # conv_out fan-in
    kf = 1.0 / (F ** 0.5)    # LSTM init scale

    # 1x1 conv weights stored channels-last: (in, out)
    w_in = u(keys[0], (C, Cb), kc)
    b_in = u(keys[1], (Cb,), kc)
    # LSTM weights stored pre-transposed: (F, 4F); gate order i, f, g, o.
    wih0 = u(keys[2], (F, 4 * F), kf)
    whh0 = u(keys[3], (F, 4 * F), kf)
    b0 = u(keys[4], (1, 4 * F), kf) + u(keys[5], (1, 4 * F), kf)   # b_ih + b_hh
    wih1 = u(keys[6], (F, 4 * F), kf)
    whh1 = u(keys[7], (F, 4 * F), kf)
    b1 = u(keys[8], (1, 4 * F), kf) + u(keys[9], (1, 4 * F), kf)
    w_out = u(keys[10], (Cb, C), kb)
    b_out = u(keys[11], (C,), kb)

    latent = jax.random.normal(keys[12], (N, C, Wd, H), jnp.float32)

    params = (w_in, b_in, wih0, whh0, b0, wih1, whh1, b1, w_out, b_out)

    fwd = jax.jit(recurrent_content_transfer)
    out = jax.block_until_ready(fwd(latent, params))
    assert out.shape == (N, C, 2 * Wd, H), out.shape

    ref = jax.block_until_ready(ref_forward(latent, params))
    max_err = float(jnp.max(jnp.abs(out - ref)))
    assert jnp.allclose(out, ref, atol=5e-3, rtol=5e-3), max_err

    print("KERNEL_OK")
</pallas_src>

<mosaic_0001>
module attributes {stable_mosaic.version = 11 : i64} {
  func.func @_fused_rct_kernel(%arg0: i32, %arg1: memref<16x64xf32, #tpu.memory_space<vmem>>, %arg2: memref<64x128xf32, #tpu.memory_space<vmem>>, %arg3: memref<1x128xf32, #tpu.memory_space<vmem>>, %arg4: memref<32x128xf32, #tpu.memory_space<vmem>>, %arg5: memref<32x128xf32, #tpu.memory_space<vmem>>, %arg6: memref<1x128xf32, #tpu.memory_space<vmem>>, %arg7: memref<32x128xf32, #tpu.memory_space<vmem>>, %arg8: memref<32x128xf32, #tpu.memory_space<vmem>>, %arg9: memref<1x128xf32, #tpu.memory_space<vmem>>, %arg10: memref<32x64xf32, #tpu.memory_space<vmem>>, %arg11: memref<1x64xf32, #tpu.memory_space<vmem>>, %arg12: memref<16x128xf32, #tpu.memory_space<vmem>>, %arg13: memref<16x32xf32, #tpu.memory_space<vmem>>) attributes {dimension_semantics = [#tpu.dimension_semantics<arbitrary>], iteration_bounds = array<i64: 1>, scalar_prefetch = 0 : i64, scratch_operands = 1 : i64, tpu.core_type = #tpu.core_type<tc>, window_params = [{pipeline_mode = #tpu.pipeline_mode<synchronous>, transform_indices = @transform_0, window_bounds = array<i64: 16, 64>}, {pipeline_mode = #tpu.pipeline_mode<synchronous>, transform_indices = @transform_1, window_bounds = array<i64: 64, 128>}, {pipeline_mode = #tpu.pipeline_mode<synchronous>, transform_indices = @transform_2, window_bounds = array<i64: 1, 128>}, {pipeline_mode = #tpu.pipeline_mode<synchronous>, transform_indices = @transform_3, window_bounds = array<i64: 32, 128>}, {pipeline_mode = #tpu.pipeline_mode<synchronous>, transform_indices = @transform_4, window_bounds = array<i64: 32, 128>}, {pipeline_mode = #tpu.pipeline_mode<synchronous>, transform_indices = @transform_5, window_bounds = array<i64: 1, 128>}, {pipeline_mode = #tpu.pipeline_mode<synchronous>, transform_indices = @transform_6, window_bounds = array<i64: 32, 128>}, {pipeline_mode = #tpu.pipeline_mode<synchronous>, transform_indices = @transform_7, window_bounds = array<i64: 32, 128>}, {pipeline_mode = #tpu.pipeline_mode<synchronous>, transform_indices = @transform_8, window_bounds = array<i64: 1, 128>}, {pipeline_mode = #tpu.pipeline_mode<synchronous>, transform_indices = @transform_9, window_bounds = array<i64: 32, 64>}, {pipeline_mode = #tpu.pipeline_mode<synchronous>, transform_indices = @transform_10, window_bounds = array<i64: 1, 64>}, {pipeline_mode = #tpu.pipeline_mode<synchronous>, transform_indices = @transform_11, window_bounds = array<i64: 16, 128>}]} {
    %c0 = arith.constant 0 : index
    %c0_0 = arith.constant 0 : index
    %0 = vector.load %arg1[%c0, %c0_0] : memref<16x64xf32, #tpu.memory_space<vmem>>, vector<16x64xf32>
    %c0_1 = arith.constant 0 : index
    %c0_2 = arith.constant 0 : index
    %1 = vector.load %arg12[%c0_1, %c0_2] : memref<16x128xf32, #tpu.memory_space<vmem>>, vector<16x64xf32>
    tpu.vector_store %arg12[%c0_1, %c0_2], %0 {strides = array<i32>} : memref<16x128xf32, #tpu.memory_space<vmem>>, vector<16x64xf32>,
    %c0_3 = arith.constant 0 : index
    %c0_4 = arith.constant 0 : index
    %2 = vector.load %arg2[%c0_3, %c0_4] : memref<64x128xf32, #tpu.memory_space<vmem>>, vector<64x128xf32>
    %cst = arith.constant dense<0.000000e+00> : vector<16x128xf32>
    %3 = tpu.matmul %0, %2, %cst {dimension_numbers = #tpu.dot_dimension_numbers<[1], [0], [0], [1], [0, 0, 1, 1], [], []>} : vector<16x64xf32>, vector<64x128xf32>, vector<16x128xf32> -> vector<16x128xf32>
    %c0_5 = arith.constant 0 : index
    %c0_6 = arith.constant 0 : index
    %4 = vector.load %arg3[%c0_5, %c0_6] : memref<1x128xf32, #tpu.memory_space<vmem>>, vector<1x128xf32>
    %5 = vector.broadcast %4 : vector<1x128xf32> to vector<16x128xf32>
    %6 = arith.addf %3, %5 : vector<16x128xf32>
    %c0_7 = arith.constant 0 : index
    %c0_8 = arith.constant 0 : index
    %7 = vector.load %arg4[%c0_7, %c0_8] : memref<32x128xf32, #tpu.memory_space<vmem>>, vector<32x128xf32>
    %c0_9 = arith.constant 0 : index
    %c0_10 = arith.constant 0 : index
    %8 = vector.load %arg5[%c0_9, %c0_10] : memref<32x128xf32, #tpu.memory_space<vmem>>, vector<32x128xf32>
    %c0_11 = arith.constant 0 : index
    %c0_12 = arith.constant 0 : index
    %9 = vector.load %arg6[%c0_11, %c0_12] : memref<1x128xf32, #tpu.memory_space<vmem>>, vector<1x128xf32>
    %c0_13 = arith.constant 0 : index
    %c0_14 = arith.constant 0 : index
    %10 = vector.load %arg7[%c0_13, %c0_14] : memref<32x128xf32, #tpu.memory_space<vmem>>, vector<32x128xf32>
    %c0_15 = arith.constant 0 : index
    %c0_16 = arith.constant 0 : index
    %11 = vector.load %arg8[%c0_15, %c0_16] : memref<32x128xf32, #tpu.memory_space<vmem>>, vector<32x128xf32>
    %c0_17 = arith.constant 0 : index
    %c0_18 = arith.constant 0 : index
    %12 = vector.load %arg9[%c0_17, %c0_18] : memref<1x128xf32, #tpu.memory_space<vmem>>, vector<1x128xf32>
    %13 = tpu.iota {dimensions = array<i32: 1>} : vector<2x128xi32>
    %c64_i32 = arith.constant 64 : i32
    %14 = vector.broadcast %c64_i32 : i32 to vector<2x128xi32>
    %15 = arith.cmpi sge, %13, %14 : vector<2x128xi32>
    %c96_i32 = arith.constant 96 : i32
    %16 = vector.broadcast %c96_i32 : i32 to vector<2x128xi32>
    %17 = arith.cmpi slt, %13, %16 : vector<2x128xi32>
    %18 = arith.andi %15, %17 : vector<2x128xi1>
    %cst_19 = arith.constant 2.000000e+00 : f32
    %cst_20 = arith.constant 1.000000e+00 : f32
    %19 = vector.broadcast %cst_19 : f32 to vector<2x128xf32>
    %20 = vector.broadcast %cst_20 : f32 to vector<2x128xf32>
    %21 = arith.select %18, %19, %20 : vector<2x128xi1>, vector<2x128xf32>
    %cst_21 = arith.constant -1.000000e+00 : f32
    %cst_22 = arith.constant 0.000000e+00 : f32
    %22 = vector.broadcast %cst_21 : f32 to vector<2x128xf32>
    %23 = vector.broadcast %cst_22 : f32 to vector<2x128xf32>
    %24 = arith.select %18, %22, %23 : vector<2x128xi1>, vector<2x128xf32>
    %cst_23 = arith.constant 0.000000e+00 : f32
    %25 = vector.broadcast %cst_23 : f32 to vector<2x32xf32>
    %26 = vector.extract_strided_slice %6 {offsets = [0, 0], sizes = [2, 128], strides = [1, 1]} : vector<16x128xf32> to vector<2x128xf32>
    %cst_24 = arith.constant dense<0.000000e+00> : vector<2x128xf32>
    %27 = tpu.matmul %25, %8, %cst_24 {dimension_numbers = #tpu.dot_dimension_numbers<[1], [0], [0], [1], [0, 0, 1, 1], [], []>} : vector<2x32xf32>, vector<32x128xf32>, vector<2x128xf32> -> vector<2x128xf32>
    %28 = arith.addf %26, %27 : vector<2x128xf32>
    %29 = arith.negf %28 : vector<2x128xf32>
    %30 = math.exp %29 : vector<2x128xf32>
    %cst_25 = arith.constant 1.000000e+00 : f32
    %31 = vector.broadcast %cst_25 : f32 to vector<2x128xf32>
    %32 = arith.addf %31, %30 : vector<2x128xf32>
    %33 = arith.divf %31, %32 : vector<2x128xf32>
    %34 = arith.mulf %33, %21 : vector<2x128xf32>
    %35 = arith.addf %34, %24 : vector<2x128xf32>
    %36 = vector.extract_strided_slice %35 {offsets = [0, 0], sizes = [2, 32], strides = [1, 1]} : vector<2x128xf32> to vector<2x32xf32>
    %37 = vector.extract_strided_slice %35 {offsets = [0, 32], sizes = [2, 32], strides = [1, 1]} : vector<2x128xf32> to vector<2x32xf32>
    %38 = vector.extract_strided_slice %35 {offsets = [0, 64], sizes = [2, 32], strides = [1, 1]} : vector<2x128xf32> to vector<2x32xf32>
    %39 = vector.extract_strided_slice %35 {offsets = [0, 96], sizes = [2, 32], strides = [1, 1]} : vector<2x128xf32> to vector<2x32xf32>
    %40 = arith.mulf %37, %25 : vector<2x32xf32>
    %41 = arith.mulf %36, %38 : vector<2x32xf32>
    %42 = arith.addf %40, %41 : vector<2x32xf32>
    %43 = math.tanh %42 : vector<2x32xf32>
    %44 = arith.mulf %39, %43 : vector<2x32xf32>
    %cst_26 = arith.constant dense<0.000000e+00> : vector<2x128xf32>
    %45 = tpu.matmul %25, %11, %cst_26 {dimension_numbers = #tpu.dot_dimension_numbers<[1], [0], [0], [1], [0, 0, 1, 1], [], []>} : vector<2x32xf32>, vector<32x128xf32>, vector<2x128xf32> -> vector<2x128xf32>
    %46 = vector.broadcast %12 : vector<1x128xf32> to vector<2x128xf32>
    %47 = arith.addf %46, %45 : vector<2x128xf32>
    %cst_27 = arith.constant dense<0.000000e+00> : vector<2x128xf32>
    %48 = tpu.matmul %44, %10, %cst_27 {dimension_numbers = #tpu.dot_dimension_numbers<[1], [0], [0], [1], [0, 0, 1, 1], [], []>} : vector<2x32xf32>, vector<32x128xf32>, vector<2x128xf32> -> vector<2x128xf32>
    %49 = arith.addf %47, %48 : vector<2x128xf32>
    %50 = arith.negf %49 : vector<2x128xf32>
    %51 = math.exp %50 : vector<2x128xf32>
    %cst_28 = arith.constant 1.000000e+00 : f32
    %52 = vector.broadcast %cst_28 : f32 to vector<2x128xf32>
    %53 = arith.addf %52, %51 : vector<2x128xf32>
    %54 = arith.divf %52, %53 : vector<2x128xf32>
    %55 = arith.mulf %54, %21 : vector<2x128xf32>
    %56 = arith.addf %55, %24 : vector<2x128xf32>
    %57 = vector.extract_strided_slice %56 {offsets = [0, 0], sizes = [2, 32], strides = [1, 1]} : vector<2x128xf32> to vector<2x32xf32>
    %58 = vector.extract_strided_slice %56 {offsets = [0, 32], sizes = [2, 32], strides = [1, 1]} : vector<2x128xf32> to vector<2x32xf32>
    %59 = vector.extract_strided_slice %56 {offsets = [0, 64], sizes = [2, 32], strides = [1, 1]} : vector<2x128xf32> to vector<2x32xf32>
    %60 = vector.extract_strided_slice %56 {offsets = [0, 96], sizes = [2, 32], strides = [1, 1]} : vector<2x128xf32> to vector<2x32xf32>
    %61 = arith.mulf %58, %25 : vector<2x32xf32>
    %62 = arith.mulf %57, %59 : vector<2x32xf32>
    %63 = arith.addf %61, %62 : vector<2x32xf32>
    %64 = math.tanh %63 : vector<2x32xf32>
    %65 = arith.mulf %60, %64 : vector<2x32xf32>
    %66 = vector.extract_strided_slice %6 {offsets = [2, 0], sizes = [2, 128], strides = [1, 1]} : vector<16x128xf32> to vector<2x128xf32>
    %cst_29 = arith.constant dense<0.000000e+00> : vector<2x128xf32>
    %67 = tpu.matmul %44, %8, %cst_29 {dimension_numbers = #tpu.dot_dimension_numbers<[1], [0], [0], [1], [0, 0, 1, 1], [], []>} : vector<2x32xf32>, vector<32x128xf32>, vector<2x128xf32> -> vector<2x128xf32>
    %68 = arith.addf %66, %67 : vector<2x128xf32>
    %69 = arith.negf %68 : vector<2x128xf32>
    %70 = math.exp %69 : vector<2x128xf32>
    %cst_30 = arith.constant 1.000000e+00 : f32
    %71 = vector.broadcast %cst_30 : f32 to vector<2x128xf32>
    %72 = arith.addf %71, %70 : vector<2x128xf32>
    %73 = arith.divf %71, %72 : vector<2x128xf32>
    %74 = arith.mulf %73, %21 : vector<2x128xf32>
    %75 = arith.addf %74, %24 : vector<2x128xf32>
    %76 = vector.extract_strided_slice %75 {offsets = [0, 0], sizes = [2, 32], strides = [1, 1]} : vector<2x128xf32> to vector<2x32xf32>
    %77 = vector.extract_strided_slice %75 {offsets = [0, 32], sizes = [2, 32], strides = [1, 1]} : vector<2x128xf32> to vector<2x32xf32>
    %78 = vector.extract_strided_slice %75 {offsets = [0, 64], sizes = [2, 32], strides = [1, 1]} : vector<2x128xf32> to vector<2x32xf32>
    %79 = vector.extract_strided_slice %75 {offsets = [0, 96], sizes = [2, 32], strides = [1, 1]} : vector<2x128xf32> to vector<2x32xf32>
    %80 = arith.mulf %77, %42 : vector<2x32xf32>
    %81 = arith.mulf %76, %78 : vector<2x32xf32>
    %82 = arith.addf %80, %81 : vector<2x32xf32>
    %83 = math.tanh %82 : vector<2x32xf32>
    %84 = arith.mulf %79, %83 : vector<2x32xf32>
    %cst_31 = arith.constant dense<0.000000e+00> : vector<2x128xf32>
    %85 = tpu.matmul %65, %11, %cst_31 {dimension_numbers = #tpu.dot_dimension_numbers<[1], [0], [0], [1], [0, 0, 1, 1], [], []>} : vector<2x32xf32>, vector<32x128xf32>, vector<2x128xf32> -> vector<2x128xf32>
    %86 = vector.broadcast %12 : vector<1x128xf32> to vector<2x128xf32>
    %87 = arith.addf %86, %85 : vector<2x128xf32>
    %cst_32 = arith.constant dense<0.000000e+00> : vector<2x128xf32>
    %88 = tpu.matmul %84, %10, %cst_32 {dimension_numbers = #tpu.dot_dimension_numbers<[1], [0], [0], [1], [0, 0, 1, 1], [], []>} : vector<2x32xf32>, vector<32x128xf32>, vector<2x128xf32> -> vector<2x128xf32>
    %89 = arith.addf %87, %88 : vector<2x128xf32>
    %90 = arith.negf %89 : vector<2x128xf32>
    %91 = math.exp %90 : vector<2x128xf32>
    %cst_33 = arith.constant 1.000000e+00 : f32
    %92 = vector.broadcast %cst_33 : f32 to vector<2x128xf32>
    %93 = arith.addf %92, %91 : vector<2x128xf32>
    %94 = arith.divf %92, %93 : vector<2x128xf32>
    %95 = arith.mulf %94, %21 : vector<2x128xf32>
    %96 = arith.addf %95, %24 : vector<2x128xf32>
    %97 = vector.extract_strided_slice %96 {offsets = [0, 0], sizes = [2, 32], strides = [1, 1]} : vector<2x128xf32> to vector<2x32xf32>
    %98 = vector.extract_strided_slice %96 {offsets = [0, 32], sizes = [2, 32], strides = [1, 1]} : vector<2x128xf32> to vector<2x32xf32>
    %99 = vector.extract_strided_slice %96 {offsets = [0, 64], sizes = [2, 32], strides = [1, 1]} : vector<2x128xf32> to vector<2x32xf32>
    %100 = vector.extract_strided_slice %96 {offsets = [0, 96], sizes = [2, 32], strides = [1, 1]} : vector<2x128xf32> to vector<2x32xf32>
    %101 = arith.mulf %98, %63 : vector<2x32xf32>
    %102 = arith.mulf %97, %99 : vector<2x32xf32>
    %103 = arith.addf %101, %102 : vector<2x32xf32>
    %104 = math.tanh %103 : vector<2x32xf32>
    %105 = arith.mulf %100, %104 : vector<2x32xf32>
    %106 = vector.extract_strided_slice %6 {offsets = [4, 0], sizes = [2, 128], strides = [1, 1]} : vector<16x128xf32> to vector<2x128xf32>
    %cst_34 = arith.constant dense<0.000000e+00> : vector<2x128xf32>
    %107 = tpu.matmul %84, %8, %cst_34 {dimension_numbers = #tpu.dot_dimension_numbers<[1], [0], [0], [1], [0, 0, 1, 1], [], []>} : vector<2x32xf32>, vector<32x128xf32>, vector<2x128xf32> -> vector<2x128xf32>
    %108 = arith.addf %106, %107 : vector<2x128xf32>
    %109 = arith.negf %108 : vector<2x128xf32>
    %110 = math.exp %109 : vector<2x128xf32>
    %cst_35 = arith.constant 1.000000e+00 : f32
    %111 = vector.broadcast %cst_35 : f32 to vector<2x128xf32>
    %112 = arith.addf %111, %110 : vector<2x128xf32>
    %113 = arith.divf %111, %112 : vector<2x128xf32>
    %114 = arith.mulf %113, %21 : vector<2x128xf32>
    %115 = arith.addf %114, %24 : vector<2x128xf32>
    %116 = vector.extract_strided_slice %115 {offsets = [0, 0], sizes = [2, 32], strides = [1, 1]} : vector<2x128xf32> to vector<2x32xf32>
    %117 = vector.extract_strided_slice %115 {offsets = [0, 32], sizes = [2, 32], strides = [1, 1]} : vector<2x128xf32> to vector<2x32xf32>
    %118 = vector.extract_strided_slice %115 {offsets = [0, 64], sizes = [2, 32], strides = [1, 1]} : vector<2x128xf32> to vector<2x32xf32>
    %119 = vector.extract_strided_slice %115 {offsets = [0, 96], sizes = [2, 32], strides = [1, 1]} : vector<2x128xf32> to vector<2x32xf32>
    %120 = arith.mulf %117, %82 : vector<2x32xf32>
    %121 = arith.mulf %116, %118 : vector<2x32xf32>
    %122 = arith.addf %120, %121 : vector<2x32xf32>
    %123 = math.tanh %122 : vector<2x32xf32>
    %124 = arith.mulf %119, %123 : vector<2x32xf32>
    %cst_36 = arith.constant dense<0.000000e+00> : vector<2x128xf32>
    %125 = tpu.matmul %105, %11, %cst_36 {dimension_numbers = #tpu.dot_dimension_numbers<[1], [0], [0], [1], [0, 0, 1, 1], [], []>} : vector<2x32xf32>, vector<32x128xf32>, vector<2x128xf32> -> vector<2x128xf32>
    %126 = vector.broadcast %12 : vector<1x128xf32> to vector<2x128xf32>
    %127 = arith.addf %126, %125 : vector<2x128xf32>
    %cst_37 = arith.constant dense<0.000000e+00> : vector<2x128xf32>
    %128 = tpu.matmul %124, %10, %cst_37 {dimension_numbers = #tpu.dot_dimension_numbers<[1], [0], [0], [1], [0, 0, 1, 1], [], []>} : vector<2x32xf32>, vector<32x128xf32>, vector<2x128xf32> -> vector<2x128xf32>
    %129 = arith.addf %127, %128 : vector<2x128xf32>
    %130 = arith.negf %129 : vector<2x128xf32>
    %131 = math.exp %130 : vector<2x128xf32>
    %cst_38 = arith.constant 1.000000e+00 : f32
    %132 = vector.broadcast %cst_38 : f32 to vector<2x128xf32>
    %133 = arith.addf %132, %131 : vector<2x128xf32>
    %134 = arith.divf %132, %133 : vector<2x128xf32>
    %135 = arith.mulf %134, %21 : vector<2x128xf32>
    %136 = arith.addf %135, %24 : vector<2x128xf32>
    %137 = vector.extract_strided_slice %136 {offsets = [0, 0], sizes = [2, 32], strides = [1, 1]} : vector<2x128xf32> to vector<2x32xf32>
    %138 = vector.extract_strided_slice %136 {offsets = [0, 32], sizes = [2, 32], strides = [1, 1]} : vector<2x128xf32> to vector<2x32xf32>
    %139 = vector.extract_strided_slice %136 {offsets = [0, 64], sizes = [2, 32], strides = [1, 1]} : vector<2x128xf32> to vector<2x32xf32>
    %140 = vector.extract_strided_slice %136 {offsets = [0, 96], sizes = [2, 32], strides = [1, 1]} : vector<2x128xf32> to vector<2x32xf32>
    %141 = arith.mulf %138, %103 : vector<2x32xf32>
    %142 = arith.mulf %137, %139 : vector<2x32xf32>
    %143 = arith.addf %141, %142 : vector<2x32xf32>
    %144 = math.tanh %143 : vector<2x32xf32>
    %145 = arith.mulf %140, %144 : vector<2x32xf32>
    %146 = vector.extract_strided_slice %6 {offsets = [6, 0], sizes = [2, 128], strides = [1, 1]} : vector<16x128xf32> to vector<2x128xf32>
    %cst_39 = arith.constant dense<0.000000e+00> : vector<2x128xf32>
    %147 = tpu.matmul %124, %8, %cst_39 {dimension_numbers = #tpu.dot_dimension_numbers<[1], [0], [0], [1], [0, 0, 1, 1], [], []>} : vector<2x32xf32>, vector<32x128xf32>, vector<2x128xf32> -> vector<2x128xf32>
    %148 = arith.addf %146, %147 : vector<2x128xf32>
    %149 = arith.negf %148 : vector<2x128xf32>
    %150 = math.exp %149 : vector<2x128xf32>
    %cst_40 = arith.constant 1.000000e+00 : f32
    %151 = vector.broadcast %cst_40 : f32 to vector<2x128xf32>
    %152 = arith.addf %151, %150 : vector<2x128xf32>
    %153 = arith.divf %151, %152 : vector<2x128xf32>
    %154 = arith.mulf %153, %21 : vector<2x128xf32>
    %155 = arith.addf %154, %24 : vector<2x128xf32>
    %156 = vector.extract_strided_slice %155 {offsets = [0, 0], sizes = [2, 32], strides = [1, 1]} : vector<2x128xf32> to vector<2x32xf32>
    %157 = vector.extract_strided_slice %155 {offsets = [0, 32], sizes = [2, 32], strides = [1, 1]} : vector<2x128xf32> to vector<2x32xf32>
    %158 = vector.extract_strided_slice %155 {offsets = [0, 64], sizes = [2, 32], strides = [1, 1]} : vector<2x128xf32> to vector<2x32xf32>
    %159 = vector.extract_strided_slice %155 {offsets = [0, 96], sizes = [2, 32], strides = [1, 1]} : vector<2x128xf32> to vector<2x32xf32>
    %160 = arith.mulf %157, %122 : vector<2x32xf32>
    %161 = arith.mulf %156, %158 : vector<2x32xf32>
    %162 = arith.addf %160, %161 : vector<2x32xf32>
    %163 = math.tanh %162 : vector<2x32xf32>
    %164 = arith.mulf %159, %163 : vector<2x32xf32>
    %cst_41 = arith.constant dense<0.000000e+00> : vector<2x128xf32>
    %165 = tpu.matmul %145, %11, %cst_41 {dimension_numbers = #tpu.dot_dimension_numbers<[1], [0], [0], [1], [0, 0, 1, 1], [], []>} : vector<2x32xf32>, vector<32x128xf32>, vector<2x128xf32> -> vector<2x128xf32>
    %166 = vector.broadcast %12 : vector<1x128xf32> to vector<2x128xf32>
    %167 = arith.addf %166, %165 : vector<2x128xf32>
    %cst_42 = arith.constant dense<0.000000e+00> : vector<2x128xf32>
    %168 = tpu.matmul %164, %10, %cst_42 {dimension_numbers = #tpu.dot_dimension_numbers<[1], [0], [0], [1], [0, 0, 1, 1], [], []>} : vector<2x32xf32>, vector<32x128xf32>, vector<2x128xf32> -> vector<2x128xf32>
    %169 = arith.addf %167, %168 : vector<2x128xf32>
    %170 = arith.negf %169 : vector<2x128xf32>
    %171 = math.exp %170 : vector<2x128xf32>
    %cst_43 = arith.constant 1.000000e+00 : f32
    %172 = vector.broadcast %cst_43 : f32 to vector<2x128xf32>
    %173 = arith.addf %172, %171 : vector<2x128xf32>
    %174 = arith.divf %172, %173 : vector<2x128xf32>
    %175 = arith.mulf %174, %21 : vector<2x128xf32>
    %176 = arith.addf %175, %24 : vector<2x128xf32>
    %177 = vector.extract_strided_slice %176 {offsets = [0, 0], sizes = [2, 32], strides = [1, 1]} : vector<2x128xf32> to vector<2x32xf32>
    %178 = vector.extract_strided_slice %176 {offsets = [0, 32], sizes = [2, 32], strides = [1, 1]} : vector<2x128xf32> to vector<2x32xf32>
    %179 = vector.extract_strided_slice %176 {offsets = [0, 64], sizes = [2, 32], strides = [1, 1]} : vector<2x128xf32> to vector<2x32xf32>
    %180 = vector.extract_strided_slice %176 {offsets = [0, 96], sizes = [2, 32], strides = [1, 1]} : vector<2x128xf32> to vector<2x32xf32>
    %181 = arith.mulf %178, %143 : vector<2x32xf32>
    %182 = arith.mulf %177, %179 : vector<2x32xf32>
    %183 = arith.addf %181, %182 : vector<2x32xf32>
    %184 = math.tanh %183 : vector<2x32xf32>
    %185 = arith.mulf %180, %184 : vector<2x32xf32>
    %186 = vector.extract_strided_slice %6 {offsets = [8, 0], sizes = [2, 128], strides = [1, 1]} : vector<16x128xf32> to vector<2x128xf32>
    %cst_44 = arith.constant dense<0.000000e+00> : vector<2x128xf32>
    %187 = tpu.matmul %164, %8, %cst_44 {dimension_numbers = #tpu.dot_dimension_numbers<[1], [0], [0], [1], [0, 0, 1, 1], [], []>} : vector<2x32xf32>, vector<32x128xf32>, vector<2x128xf32> -> vector<2x128xf32>
    %188 = arith.addf %186, %187 : vector<2x128xf32>
    %189 = arith.negf %188 : vector<2x128xf32>
    %190 = math.exp %189 : vector<2x128xf32>
    %cst_45 = arith.constant 1.000000e+00 : f32
    %191 = vector.broadcast %cst_45 : f32 to vector<2x128xf32>
    %192 = arith.addf %191, %190 : vector<2x128xf32>
    %193 = arith.divf %191, %192 : vector<2x128xf32>
    %194 = arith.mulf %193, %21 : vector<2x128xf32>
    %195 = arith.addf %194, %24 : vector<2x128xf32>
    %196 = vector.extract_strided_slice %195 {offsets = [0, 0], sizes = [2, 32], strides = [1, 1]} : vector<2x128xf32> to vector<2x32xf32>
    %197 = vector.extract_strided_slice %195 {offsets = [0, 32], sizes = [2, 32], strides = [1, 1]} : vector<2x128xf32> to vector<2x32xf32>
    %198 = vector.extract_strided_slice %195 {offsets = [0, 64], sizes = [2, 32], strides = [1, 1]} : vector<2x128xf32> to vector<2x32xf32>
    %199 = vector.extract_strided_slice %195 {offsets = [0, 96], sizes = [2, 32], strides = [1, 1]} : vector<2x128xf32> to vector<2x32xf32>
    %200 = arith.mulf %197, %162 : vector<2x32xf32>
    %201 = arith.mulf %196, %198 : vector<2x32xf32>
    %202 = arith.addf %200, %201 : vector<2x32xf32>
    %203 = math.tanh %202 : vector<2x32xf32>
    %204 = arith.mulf %199, %203 : vector<2x32xf32>
    %cst_46 = arith.constant dense<0.000000e+00> : vector<2x128xf32>
    %205 = tpu.matmul %185, %11, %cst_46 {dimension_numbers = #tpu.dot_dimension_numbers<[1], [0], [0], [1], [0, 0, 1, 1], [], []>} : vector<2x32xf32>, vector<32x128xf32>, vector<2x128xf32> -> vector<2x128xf32>
    %206 = vector.broadcast %12 : vector<1x128xf32> to vector<2x128xf32>
    %207 = arith.addf %206, %205 : vector<2x128xf32>
    %cst_47 = arith.constant dense<0.000000e+00> : vector<2x128xf32>
    %208 = tpu.matmul %204, %10, %cst_47 {dimension_numbers = #tpu.dot_dimension_numbers<[1], [0], [0], [1], [0, 0, 1, 1], [], []>} : vector<2x32xf32>, vector<32x128xf32>, vector<2x128xf32> -> vector<2x128xf32>
    %209 = arith.addf %207, %208 : vector<2x128xf32>
    %210 = arith.negf %209 : vector<2x128xf32>
    %211 = math.exp %210 : vector<2x128xf32>
    %cst_48 = arith.constant 1.000000e+00 : f32
    %212 = vector.broadcast %cst_48 : f32 to vector<2x128xf32>
    %213 = arith.addf %212, %211 : vector<2x128xf32>
    %214 = arith.divf %212, %213 : vector<2x128xf32>
    %215 = arith.mulf %214, %21 : vector<2x128xf32>
    %216 = arith.addf %215, %24 : vector<2x128xf32>
    %217 = vector.extract_strided_slice %216 {offsets = [0, 0], sizes = [2, 32], strides = [1, 1]} : vector<2x128xf32> to vector<2x32xf32>
    %218 = vector.extract_strided_slice %216 {offsets = [0, 32], sizes = [2, 32], strides = [1, 1]} : vector<2x128xf32> to vector<2x32xf32>
    %219 = vector.extract_strided_slice %216 {offsets = [0, 64], sizes = [2, 32], strides = [1, 1]} : vector<2x128xf32> to vector<2x32xf32>
    %220 = vector.extract_strided_slice %216 {offsets = [0, 96], sizes = [2, 32], strides = [1, 1]} : vector<2x128xf32> to vector<2x32xf32>
    %221 = arith.mulf %218, %183 : vector<2x32xf32>
    %222 = arith.mulf %217, %219 : vector<2x32xf32>
    %223 = arith.addf %221, %222 : vector<2x32xf32>
    %224 = math.tanh %223 : vector<2x32xf32>
    %225 = arith.mulf %220, %224 : vector<2x32xf32>
    %226 = vector.extract_strided_slice %6 {offsets = [10, 0], sizes = [2, 128], strides = [1, 1]} : vector<16x128xf32> to vector<2x128xf32>
    %cst_49 = arith.constant dense<0.000000e+00> : vector<2x128xf32>
    %227 = tpu.matmul %204, %8, %cst_49 {dimension_numbers = #tpu.dot_dimension_numbers<[1], [0], [0], [1], [0, 0, 1, 1], [], []>} : vector<2x32xf32>, vector<32x128xf32>, vector<2x128xf32> -> vector<2x128xf32>
    %228 = arith.addf %226, %227 : vector<2x128xf32>
    %229 = arith.negf %228 : vector<2x128xf32>
    %230 = math.exp %229 : vector<2x128xf32>
    %cst_50 = arith.constant 1.000000e+00 : f32
    %231 = vector.broadcast %cst_50 : f32 to vector<2x128xf32>
    %232 = arith.addf %231, %230 : vector<2x128xf32>
    %233 = arith.divf %231, %232 : vector<2x128xf32>
    %234 = arith.mulf %233, %21 : vector<2x128xf32>
    %235 = arith.addf %234, %24 : vector<2x128xf32>
    %236 = vector.extract_strided_slice %235 {offsets = [0, 0], sizes = [2, 32], strides = [1, 1]} : vector<2x128xf32> to vector<2x32xf32>
    %237 = vector.extract_strided_slice %235 {offsets = [0, 32], sizes = [2, 32], strides = [1, 1]} : vector<2x128xf32> to vector<2x32xf32>
    %238 = vector.extract_strided_slice %235 {offsets = [0, 64], sizes = [2, 32], strides = [1, 1]} : vector<2x128xf32> to vector<2x32xf32>
    %239 = vector.extract_strided_slice %235 {offsets = [0, 96], sizes = [2, 32], strides = [1, 1]} : vector<2x128xf32> to vector<2x32xf32>
    %240 = arith.mulf %237, %202 : vector<2x32xf32>
    %241 = arith.mulf %236, %238 : vector<2x32xf32>
    %242 = arith.addf %240, %241 : vector<2x32xf32>
    %243 = math.tanh %242 : vector<2x32xf32>
    %244 = arith.mulf %239, %243 : vector<2x32xf32>
    %cst_51 = arith.constant dense<0.000000e+00> : vector<2x128xf32>
    %245 = tpu.matmul %225, %11, %cst_51 {dimension_numbers = #tpu.dot_dimension_numbers<[1], [0], [0], [1], [0, 0, 1, 1], [], []>} : vector<2x32xf32>, vector<32x128xf32>, vector<2x128xf32> -> vector<2x128xf32>
    %246 = vector.broadcast %12 : vector<1x128xf32> to vector<2x128xf32>
    %247 = arith.addf %246, %245 : vector<2x128xf32>
    %cst_52 = arith.constant dense<0.000000e+00> : vector<2x128xf32>
    %248 = tpu.matmul %244, %10, %cst_52 {dimension_numbers = #tpu.dot_dimension_numbers<[1], [0], [0], [1], [0, 0, 1, 1], [], []>} : vector<2x32xf32>, vector<32x128xf32>, vector<2x128xf32> -> vector<2x128xf32>
    %249 = arith.addf %247, %248 : vector<2x128xf32>
    %250 = arith.negf %249 : vector<2x128xf32>
    %251 = math.exp %250 : vector<2x128xf32>
    %cst_53 = arith.constant 1.000000e+00 : f32
    %252 = vector.broadcast %cst_53 : f32 to vector<2x128xf32>
    %253 = arith.addf %252, %251 : vector<2x128xf32>
    %254 = arith.divf %252, %253 : vector<2x128xf32>
    %255 = arith.mulf %254, %21 : vector<2x128xf32>
    %256 = arith.addf %255, %24 : vector<2x128xf32>
    %257 = vector.extract_strided_slice %256 {offsets = [0, 0], sizes = [2, 32], strides = [1, 1]} : vector<2x128xf32> to vector<2x32xf32>
    %258 = vector.extract_strided_slice %256 {offsets = [0, 32], sizes = [2, 32], strides = [1, 1]} : vector<2x128xf32> to vector<2x32xf32>
    %259 = vector.extract_strided_slice %256 {offsets = [0, 64], sizes = [2, 32], strides = [1, 1]} : vector<2x128xf32> to vector<2x32xf32>
    %260 = vector.extract_strided_slice %256 {offsets = [0, 96], sizes = [2, 32], strides = [1, 1]} : vector<2x128xf32> to vector<2x32xf32>
    %261 = arith.mulf %258, %223 : vector<2x32xf32>
    %262 = arith.mulf %257, %259 : vector<2x32xf32>
    %263 = arith.addf %261, %262 : vector<2x32xf32>
    %264 = math.tanh %263 : vector<2x32xf32>
    %265 = arith.mulf %260, %264 : vector<2x32xf32>
    %266 = vector.extract_strided_slice %6 {offsets = [12, 0], sizes = [2, 128], strides = [1, 1]} : vector<16x128xf32> to vector<2x128xf32>
    %cst_54 = arith.constant dense<0.000000e+00> : vector<2x128xf32>
    %267 = tpu.matmul %244, %8, %cst_54 {dimension_numbers = #tpu.dot_dimension_numbers<[1], [0], [0], [1], [0, 0, 1, 1], [], []>} : vector<2x32xf32>, vector<32x128xf32>, vector<2x128xf32> -> vector<2x128xf32>
    %268 = arith.addf %266, %267 : vector<2x128xf32>
    %269 = arith.negf %268 : vector<2x128xf32>
    %270 = math.exp %269 : vector<2x128xf32>
    %cst_55 = arith.constant 1.000000e+00 : f32
    %271 = vector.broadcast %cst_55 : f32 to vector<2x128xf32>
    %272 = arith.addf %271, %270 : vector<2x128xf32>
    %273 = arith.divf %271, %272 : vector<2x128xf32>
    %274 = arith.mulf %273, %21 : vector<2x128xf32>
    %275 = arith.addf %274, %24 : vector<2x128xf32>
    %276 = vector.extract_strided_slice %275 {offsets = [0, 0], sizes = [2, 32], strides = [1, 1]} : vector<2x128xf32> to vector<2x32xf32>
    %277 = vector.extract_strided_slice %275 {offsets = [0, 32], sizes = [2, 32], strides = [1, 1]} : vector<2x128xf32> to vector<2x32xf32>
    %278 = vector.extract_strided_slice %275 {offsets = [0, 64], sizes = [2, 32], strides = [1, 1]} : vector<2x128xf32> to vector<2x32xf32>
    %279 = vector.extract_strided_slice %275 {offsets = [0, 96], sizes = [2, 32], strides = [1, 1]} : vector<2x128xf32> to vector<2x32xf32>
    %280 = arith.mulf %277, %242 : vector<2x32xf32>
    %281 = arith.mulf %276, %278 : vector<2x32xf32>
    %282 = arith.addf %280, %281 : vector<2x32xf32>
    %283 = math.tanh %282 : vector<2x32xf32>
    %284 = arith.mulf %279, %283 : vector<2x32xf32>
    %cst_56 = arith.constant dense<0.000000e+00> : vector<2x128xf32>
    %285 = tpu.matmul %265, %11, %cst_56 {dimension_numbers = #tpu.dot_dimension_numbers<[1], [0], [0], [1], [0, 0, 1, 1], [], []>} : vector<2x32xf32>, vector<32x128xf32>, vector<2x128xf32> -> vector<2x128xf32>
    %286 = vector.broadcast %12 : vector<1x128xf32> to vector<2x128xf32>
    %287 = arith.addf %286, %285 : vector<2x128xf32>
    %cst_57 = arith.constant dense<0.000000e+00> : vector<2x128xf32>
    %288 = tpu.matmul %284, %10, %cst_57 {dimension_numbers = #tpu.dot_dimension_numbers<[1], [0], [0], [1], [0, 0, 1, 1], [], []>} : vector<2x32xf32>, vector<32x128xf32>, vector<2x128xf32> -> vector<2x128xf32>
    %289 = arith.addf %287, %288 : vector<2x128xf32>
    %290 = arith.negf %289 : vector<2x128xf32>
    %291 = math.exp %290 : vector<2x128xf32>
    %cst_58 = arith.constant 1.000000e+00 : f32
    %292 = vector.broadcast %cst_58 : f32 to vector<2x128xf32>
    %293 = arith.addf %292, %291 : vector<2x128xf32>
    %294 = arith.divf %292, %293 : vector<2x128xf32>
    %295 = arith.mulf %294, %21 : vector<2x128xf32>
    %296 = arith.addf %295, %24 : vector<2x128xf32>
    %297 = vector.extract_strided_slice %296 {offsets = [0, 0], sizes = [2, 32], strides = [1, 1]} : vector<2x128xf32> to vector<2x32xf32>
    %298 = vector.extract_strided_slice %296 {offsets = [0, 32], sizes = [2, 32], strides = [1, 1]} : vector<2x128xf32> to vector<2x32xf32>
    %299 = vector.extract_strided_slice %296 {offsets = [0, 64], sizes = [2, 32], strides = [1, 1]} : vector<2x128xf32> to vector<2x32xf32>
    %300 = vector.extract_strided_slice %296 {offsets = [0, 96], sizes = [2, 32], strides = [1, 1]} : vector<2x128xf32> to vector<2x32xf32>
    %301 = arith.mulf %298, %263 : vector<2x32xf32>
    %302 = arith.mulf %297, %299 : vector<2x32xf32>
    %303 = arith.addf %301, %302 : vector<2x32xf32>
    %304 = math.tanh %303 : vector<2x32xf32>
    %305 = arith.mulf %300, %304 : vector<2x32xf32>
    %306 = vector.extract_strided_slice %6 {offsets = [14, 0], sizes = [2, 128], strides = [1, 1]} : vector<16x128xf32> to vector<2x128xf32>
    %cst_59 = arith.constant dense<0.000000e+00> : vector<2x128xf32>
    %307 = tpu.matmul %284, %8, %cst_59 {dimension_numbers = #tpu.dot_dimension_numbers<[1], [0], [0], [1], [0, 0, 1, 1], [], []>} : vector<2x32xf32>, vector<32x128xf32>, vector<2x128xf32> -> vector<2x128xf32>
    %308 = arith.addf %306, %307 : vector<2x128xf32>
    %309 = arith.negf %308 : vector<2x128xf32>
    %310 = math.exp %309 : vector<2x128xf32>
    %cst_60 = arith.constant 1.000000e+00 : f32
    %311 = vector.broadcast %cst_60 : f32 to vector<2x128xf32>
    %312 = arith.addf %311, %310 : vector<2x128xf32>
    %313 = arith.divf %311, %312 : vector<2x128xf32>
    %314 = arith.mulf %313, %21 : vector<2x128xf32>
    %315 = arith.addf %314, %24 : vector<2x128xf32>
    %316 = vector.extract_strided_slice %315 {offsets = [0, 0], sizes = [2, 32], strides = [1, 1]} : vector<2x128xf32> to vector<2x32xf32>
    %317 = vector.extract_strided_slice %315 {offsets = [0, 32], sizes = [2, 32], strides = [1, 1]} : vector<2x128xf32> to vector<2x32xf32>
    %318 = vector.extract_strided_slice %315 {offsets = [0, 64], sizes = [2, 32], strides = [1, 1]} : vector<2x128xf32> to vector<2x32xf32>
    %319 = vector.extract_strided_slice %315 {offsets = [0, 96], sizes = [2, 32], strides = [1, 1]} : vector<2x128xf32> to vector<2x32xf32>
    %320 = arith.mulf %317, %282 : vector<2x32xf32>
    %321 = arith.mulf %316, %318 : vector<2x32xf32>
    %322 = arith.addf %320, %321 : vector<2x32xf32>
    %323 = math.tanh %322 : vector<2x32xf32>
    %324 = arith.mulf %319, %323 : vector<2x32xf32>
    %cst_61 = arith.constant dense<0.000000e+00> : vector<2x128xf32>
    %325 = tpu.matmul %305, %11, %cst_61 {dimension_numbers = #tpu.dot_dimension_numbers<[1], [0], [0], [1], [0, 0, 1, 1], [], []>} : vector<2x32xf32>, vector<32x128xf32>, vector<2x128xf32> -> vector<2x128xf32>
    %326 = vector.broadcast %12 : vector<1x128xf32> to vector<2x128xf32>
    %327 = arith.addf %326, %325 : vector<2x128xf32>
    %cst_62 = arith.constant dense<0.000000e+00> : vector<2x128xf32>
    %328 = tpu.matmul %324, %10, %cst_62 {dimension_numbers = #tpu.dot_dimension_numbers<[1], [0], [0], [1], [0, 0, 1, 1], [], []>} : vector<2x32xf32>, vector<32x128xf32>, vector<2x128xf32> -> vector<2x128xf32>
    %329 = arith.addf %327, %328 : vector<2x128xf32>
    %330 = arith.negf %329 : vector<2x128xf32>
    %331 = math.exp %330 : vector<2x128xf32>
    %cst_63 = arith.constant 1.000000e+00 : f32
    %332 = vector.broadcast %cst_63 : f32 to vector<2x128xf32>
    %333 = arith.addf %332, %331 : vector<2x128xf32>
    %334 = arith.divf %332, %333 : vector<2x128xf32>
    %335 = arith.mulf %334, %21 : vector<2x128xf32>
    %336 = arith.addf %335, %24 : vector<2x128xf32>
    %337 = vector.extract_strided_slice %336 {offsets = [0, 0], sizes = [2, 32], strides = [1, 1]} : vector<2x128xf32> to vector<2x32xf32>
    %338 = vector.extract_strided_slice %336 {offsets = [0, 32], sizes = [2, 32], strides = [1, 1]} : vector<2x128xf32> to vector<2x32xf32>
    %339 = vector.extract_strided_slice %336 {offsets = [0, 64], sizes = [2, 32], strides = [1, 1]} : vector<2x128xf32> to vector<2x32xf32>
    %340 = vector.extract_strided_slice %336 {offsets = [0, 96], sizes = [2, 32], strides = [1, 1]} : vector<2x128xf32> to vector<2x32xf32>
    %341 = arith.mulf %338, %303 : vector<2x32xf32>
    %342 = arith.mulf %337, %339 : vector<2x32xf32>
    %343 = arith.addf %341, %342 : vector<2x32xf32>
    %344 = math.tanh %343 : vector<2x32xf32>
    %345 = arith.mulf %340, %344 : vector<2x32xf32>
    %c0_64 = arith.constant 0 : index
    %c0_65 = arith.constant 0 : index
    %346 = vector.load %arg13[%c0_64, %c0_65] : memref<16x32xf32, #tpu.memory_space<vmem>>, vector<2x32xf32>
    tpu.vector_store %arg13[%c0_64, %c0_65], %345 {strides = array<i32>} : memref<16x32xf32, #tpu.memory_space<vmem>>, vector<2x32xf32>,
    %cst_66 = arith.constant dense<0.000000e+00> : vector<2x128xf32>
    %347 = tpu.matmul %324, %8, %cst_66 {dimension_numbers = #tpu.dot_dimension_numbers<[1], [0], [0], [1], [0, 0, 1, 1], [], []>} : vector<2x32xf32>, vector<32x128xf32>, vector<2x128xf32> -> vector<2x128xf32>
    %348 = vector.broadcast %9 : vector<1x128xf32> to vector<2x128xf32>
    %349 = arith.addf %348, %347 : vector<2x128xf32>
    %cst_67 = arith.constant dense<0.000000e+00> : vector<2x128xf32>
    %350 = tpu.matmul %345, %7, %cst_67 {dimension_numbers = #tpu.dot_dimension_numbers<[1], [0], [0], [1], [0, 0, 1, 1], [], []>} : vector<2x32xf32>, vector<32x128xf32>, vector<2x128xf32> -> vector<2x128xf32>
    %351 = arith.addf %349, %350 : vector<2x128xf32>
    %352 = arith.negf %351 : vector<2x128xf32>
    %353 = math.exp %352 : vector<2x128xf32>
    %cst_68 = arith.constant 1.000000e+00 : f32
    %354 = vector.broadcast %cst_68 : f32 to vector<2x128xf32>
    %355 = arith.addf %354, %353 : vector<2x128xf32>
    %356 = arith.divf %354, %355 : vector<2x128xf32>
    %357 = arith.mulf %356, %21 : vector<2x128xf32>
    %358 = arith.addf %357, %24 : vector<2x128xf32>
    %359 = vector.extract_strided_slice %358 {offsets = [0, 0], sizes = [2, 32], strides = [1, 1]} : vector<2x128xf32> to vector<2x32xf32>
    %360 = vector.extract_strided_slice %358 {offsets = [0, 32], sizes = [2, 32], strides = [1, 1]} : vector<2x128xf32> to vector<2x32xf32>
    %361 = vector.extract_strided_slice %358 {offsets = [0, 64], sizes = [2, 32], strides = [1, 1]} : vector<2x128xf32> to vector<2x32xf32>
    %362 = vector.extract_strided_slice %358 {offsets = [0, 96], sizes = [2, 32], strides = [1, 1]} : vector<2x128xf32> to vector<2x32xf32>
    %363 = arith.mulf %360, %322 : vector<2x32xf32>
    %364 = arith.mulf %359, %361 : vector<2x32xf32>
    %365 = arith.addf %363, %364 : vector<2x32xf32>
    %366 = math.tanh %365 : vector<2x32xf32>
    %367 = arith.mulf %362, %366 : vector<2x32xf32>
    %cst_69 = arith.constant dense<0.000000e+00> : vector<2x128xf32>
    %368 = tpu.matmul %345, %11, %cst_69 {dimension_numbers = #tpu.dot_dimension_numbers<[1], [0], [0], [1], [0, 0, 1, 1], [], []>} : vector<2x32xf32>, vector<32x128xf32>, vector<2x128xf32> -> vector<2x128xf32>
    %369 = vector.broadcast %12 : vector<1x128xf32> to vector<2x128xf32>
    %370 = arith.addf %369, %368 : vector<2x128xf32>
    %cst_70 = arith.constant dense<0.000000e+00> : vector<2x128xf32>
    %371 = tpu.matmul %367, %10, %cst_70 {dimension_numbers = #tpu.dot_dimension_numbers<[1], [0], [0], [1], [0, 0, 1, 1], [], []>} : vector<2x32xf32>, vector<32x128xf32>, vector<2x128xf32> -> vector<2x128xf32>
    %372 = arith.addf %370, %371 : vector<2x128xf32>
    %373 = arith.negf %372 : vector<2x128xf32>
    %374 = math.exp %373 : vector<2x128xf32>
    %cst_71 = arith.constant 1.000000e+00 : f32
    %375 = vector.broadcast %cst_71 : f32 to vector<2x128xf32>
    %376 = arith.addf %375, %374 : vector<2x128xf32>
    %377 = arith.divf %375, %376 : vector<2x128xf32>
    %378 = arith.mulf %377, %21 : vector<2x128xf32>
    %379 = arith.addf %378, %24 : vector<2x128xf32>
    %380 = vector.extract_strided_slice %379 {offsets = [0, 0], sizes = [2, 32], strides = [1, 1]} : vector<2x128xf32> to vector<2x32xf32>
    %381 = vector.extract_strided_slice %379 {offsets = [0, 32], sizes = [2, 32], strides = [1, 1]} : vector<2x128xf32> to vector<2x32xf32>
    %382 = vector.extract_strided_slice %379 {offsets = [0, 64], sizes = [2, 32], strides = [1, 1]} : vector<2x128xf32> to vector<2x32xf32>
    %383 = vector.extract_strided_slice %379 {offsets = [0, 96], sizes = [2, 32], strides = [1, 1]} : vector<2x128xf32> to vector<2x32xf32>
    %384 = arith.mulf %381, %343 : vector<2x32xf32>
    %385 = arith.mulf %380, %382 : vector<2x32xf32>
    %386 = arith.addf %384, %385 : vector<2x32xf32>
    %387 = math.tanh %386 : vector<2x32xf32>
    %388 = arith.mulf %383, %387 : vector<2x32xf32>
    %c2 = arith.constant 2 : index
    %c0_72 = arith.constant 0 : index
    %389 = vector.load %arg13[%c2, %c0_72] : memref<16x32xf32, #tpu.memory_space<vmem>>, vector<2x32xf32>
    tpu.vector_store %arg13[%c2, %c0_72], %388 {strides = array<i32>} : memref<16x32xf32, #tpu.memory_space<vmem>>, vector<2x32xf32>,
    %cst_73 = arith.constant dense<0.000000e+00> : vector<2x128xf32>
    %390 = tpu.matmul %367, %8, %cst_73 {dimension_numbers = #tpu.dot_dimension_numbers<[1], [0], [0], [1], [0, 0, 1, 1], [], []>} : vector<2x32xf32>, vector<32x128xf32>, vector<2x128xf32> -> vector<2x128xf32>
    %391 = vector.broadcast %9 : vector<1x128xf32> to vector<2x128xf32>
    %392 = arith.addf %391, %390 : vector<2x128xf32>
    %cst_74 = arith.constant dense<0.000000e+00> : vector<2x128xf32>
    %393 = tpu.matmul %388, %7, %cst_74 {dimension_numbers = #tpu.dot_dimension_numbers<[1], [0], [0], [1], [0, 0, 1, 1], [], []>} : vector<2x32xf32>, vector<32x128xf32>, vector<2x128xf32> -> vector<2x128xf32>
    %394 = arith.addf %392, %393 : vector<2x128xf32>
    %395 = arith.negf %394 : vector<2x128xf32>
    %396 = math.exp %395 : vector<2x128xf32>
    %cst_75 = arith.constant 1.000000e+00 : f32
    %397 = vector.broadcast %cst_75 : f32 to vector<2x128xf32>
    %398 = arith.addf %397, %396 : vector<2x128xf32>
    %399 = arith.divf %397, %398 : vector<2x128xf32>
    %400 = arith.mulf %399, %21 : vector<2x128xf32>
    %401 = arith.addf %400, %24 : vector<2x128xf32>
    %402 = vector.extract_strided_slice %401 {offsets = [0, 0], sizes = [2, 32], strides = [1, 1]} : vector<2x128xf32> to vector<2x32xf32>
    %403 = vector.extract_strided_slice %401 {offsets = [0, 32], sizes = [2, 32], strides = [1, 1]} : vector<2x128xf32> to vector<2x32xf32>
    %404 = vector.extract_strided_slice %401 {offsets = [0, 64], sizes = [2, 32], strides = [1, 1]} : vector<2x128xf32> to vector<2x32xf32>
    %405 = vector.extract_strided_slice %401 {offsets = [0, 96], sizes = [2, 32], strides = [1, 1]} : vector<2x128xf32> to vector<2x32xf32>
    %406 = arith.mulf %403, %365 : vector<2x32xf32>
    %407 = arith.mulf %402, %404 : vector<2x32xf32>
    %408 = arith.addf %406, %407 : vector<2x32xf32>
    %409 = math.tanh %408 : vector<2x32xf32>
    %410 = arith.mulf %405, %409 : vector<2x32xf32>
    %cst_76 = arith.constant dense<0.000000e+00> : vector<2x128xf32>
    %411 = tpu.matmul %388, %11, %cst_76 {dimension_numbers = #tpu.dot_dimension_numbers<[1], [0], [0], [1], [0, 0, 1, 1], [], []>} : vector<2x32xf32>, vector<32x128xf32>, vector<2x128xf32> -> vector<2x128xf32>
    %412 = vector.broadcast %12 : vector<1x128xf32> to vector<2x128xf32>
    %413 = arith.addf %412, %411 : vector<2x128xf32>
    %cst_77 = arith.constant dense<0.000000e+00> : vector<2x128xf32>
    %414 = tpu.matmul %410, %10, %cst_77 {dimension_numbers = #tpu.dot_dimension_numbers<[1], [0], [0], [1], [0, 0, 1, 1], [], []>} : vector<2x32xf32>, vector<32x128xf32>, vector<2x128xf32> -> vector<2x128xf32>
    %415 = arith.addf %413, %414 : vector<2x128xf32>
    %416 = arith.negf %415 : vector<2x128xf32>
    %417 = math.exp %416 : vector<2x128xf32>
    %cst_78 = arith.constant 1.000000e+00 : f32
    %418 = vector.broadcast %cst_78 : f32 to vector<2x128xf32>
    %419 = arith.addf %418, %417 : vector<2x128xf32>
    %420 = arith.divf %418, %419 : vector<2x128xf32>
    %421 = arith.mulf %420, %21 : vector<2x128xf32>
    %422 = arith.addf %421, %24 : vector<2x128xf32>
    %423 = vector.extract_strided_slice %422 {offsets = [0, 0], sizes = [2, 32], strides = [1, 1]} : vector<2x128xf32> to vector<2x32xf32>
    %424 = vector.extract_strided_slice %422 {offsets = [0, 32], sizes = [2, 32], strides = [1, 1]} : vector<2x128xf32> to vector<2x32xf32>
    %425 = vector.extract_strided_slice %422 {offsets = [0, 64], sizes = [2, 32], strides = [1, 1]} : vector<2x128xf32> to vector<2x32xf32>
    %426 = vector.extract_strided_slice %422 {offsets = [0, 96], sizes = [2, 32], strides = [1, 1]} : vector<2x128xf32> to vector<2x32xf32>
    %427 = arith.mulf %424, %386 : vector<2x32xf32>
    %428 = arith.mulf %423, %425 : vector<2x32xf32>
    %429 = arith.addf %427, %428 : vector<2x32xf32>
    %430 = math.tanh %429 : vector<2x32xf32>
    %431 = arith.mulf %426, %430 : vector<2x32xf32>
    %c4 = arith.constant 4 : index
    %c0_79 = arith.constant 0 : index
    %432 = vector.load %arg13[%c4, %c0_79] : memref<16x32xf32, #tpu.memory_space<vmem>>, vector<2x32xf32>
    tpu.vector_store %arg13[%c4, %c0_79], %431 {strides = array<i32>} : memref<16x32xf32, #tpu.memory_space<vmem>>, vector<2x32xf32>,
    %cst_80 = arith.constant dense<0.000000e+00> : vector<2x128xf32>
    %433 = tpu.matmul %410, %8, %cst_80 {dimension_numbers = #tpu.dot_dimension_numbers<[1], [0], [0], [1], [0, 0, 1, 1], [], []>} : vector<2x32xf32>, vector<32x128xf32>, vector<2x128xf32> -> vector<2x128xf32>
    %434 = vector.broadcast %9 : vector<1x128xf32> to vector<2x128xf32>
    %435 = arith.addf %434, %433 : vector<2x128xf32>
    %cst_81 = arith.constant dense<0.000000e+00> : vector<2x128xf32>
    %436 = tpu.matmul %431, %7, %cst_81 {dimension_numbers = #tpu.dot_dimension_numbers<[1], [0], [0], [1], [0, 0, 1, 1], [], []>} : vector<2x32xf32>, vector<32x128xf32>, vector<2x128xf32> -> vector<2x128xf32>
    %437 = arith.addf %435, %436 : vector<2x128xf32>
    %438 = arith.negf %437 : vector<2x128xf32>
    %439 = math.exp %438 : vector<2x128xf32>
    %cst_82 = arith.constant 1.000000e+00 : f32
    %440 = vector.broadcast %cst_82 : f32 to vector<2x128xf32>
    %441 = arith.addf %440, %439 : vector<2x128xf32>
    %442 = arith.divf %440, %441 : vector<2x128xf32>
    %443 = arith.mulf %442, %21 : vector<2x128xf32>
    %444 = arith.addf %443, %24 : vector<2x128xf32>
    %445 = vector.extract_strided_slice %444 {offsets = [0, 0], sizes = [2, 32], strides = [1, 1]} : vector<2x128xf32> to vector<2x32xf32>
    %446 = vector.extract_strided_slice %444 {offsets = [0, 32], sizes = [2, 32], strides = [1, 1]} : vector<2x128xf32> to vector<2x32xf32>
    %447 = vector.extract_strided_slice %444 {offsets = [0, 64], sizes = [2, 32], strides = [1, 1]} : vector<2x128xf32> to vector<2x32xf32>
    %448 = vector.extract_strided_slice %444 {offsets = [0, 96], sizes = [2, 32], strides = [1, 1]} : vector<2x128xf32> to vector<2x32xf32>
    %449 = arith.mulf %446, %408 : vector<2x32xf32>
    %450 = arith.mulf %445, %447 : vector<2x32xf32>
    %451 = arith.addf %449, %450 : vector<2x32xf32>
    %452 = math.tanh %451 : vector<2x32xf32>
    %453 = arith.mulf %448, %452 : vector<2x32xf32>
    %cst_83 = arith.constant dense<0.000000e+00> : vector<2x128xf32>
    %454 = tpu.matmul %431, %11, %cst_83 {dimension_numbers = #tpu.dot_dimension_numbers<[1], [0], [0], [1], [0, 0, 1, 1], [], []>} : vector<2x32xf32>, vector<32x128xf32>, vector<2x128xf32> -> vector<2x128xf32>
    %455 = vector.broadcast %12 : vector<1x128xf32> to vector<2x128xf32>
    %456 = arith.addf %455, %454 : vector<2x128xf32>
    %cst_84 = arith.constant dense<0.000000e+00> : vector<2x128xf32>
    %457 = tpu.matmul %453, %10, %cst_84 {dimension_numbers = #tpu.dot_dimension_numbers<[1], [0], [0], [1], [0, 0, 1, 1], [], []>} : vector<2x32xf32>, vector<32x128xf32>, vector<2x128xf32> -> vector<2x128xf32>
    %458 = arith.addf %456, %457 : vector<2x128xf32>
    %459 = arith.negf %458 : vector<2x128xf32>
    %460 = math.exp %459 : vector<2x128xf32>
    %cst_85 = arith.constant 1.000000e+00 : f32
    %461 = vector.broadcast %cst_85 : f32 to vector<2x128xf32>
    %462 = arith.addf %461, %460 : vector<2x128xf32>
    %463 = arith.divf %461, %462 : vector<2x128xf32>
    %464 = arith.mulf %463, %21 : vector<2x128xf32>
    %465 = arith.addf %464, %24 : vector<2x128xf32>
    %466 = vector.extract_strided_slice %465 {offsets = [0, 0], sizes = [2, 32], strides = [1, 1]} : vector<2x128xf32> to vector<2x32xf32>
    %467 = vector.extract_strided_slice %465 {offsets = [0, 32], sizes = [2, 32], strides = [1, 1]} : vector<2x128xf32> to vector<2x32xf32>
    %468 = vector.extract_strided_slice %465 {offsets = [0, 64], sizes = [2, 32], strides = [1, 1]} : vector<2x128xf32> to vector<2x32xf32>
    %469 = vector.extract_strided_slice %465 {offsets = [0, 96], sizes = [2, 32], strides = [1, 1]} : vector<2x128xf32> to vector<2x32xf32>
    %470 = arith.mulf %467, %429 : vector<2x32xf32>
    %471 = arith.mulf %466, %468 : vector<2x32xf32>
    %472 = arith.addf %470, %471 : vector<2x32xf32>
    %473 = math.tanh %472 : vector<2x32xf32>
    %474 = arith.mulf %469, %473 : vector<2x32xf32>
    %c6 = arith.constant 6 : index
    %c0_86 = arith.constant 0 : index
    %475 = vector.load %arg13[%c6, %c0_86] : memref<16x32xf32, #tpu.memory_space<vmem>>, vector<2x32xf32>
    tpu.vector_store %arg13[%c6, %c0_86], %474 {strides = array<i32>} : memref<16x32xf32, #tpu.memory_space<vmem>>, vector<2x32xf32>,
    %cst_87 = arith.constant dense<0.000000e+00> : vector<2x128xf32>
    %476 = tpu.matmul %453, %8, %cst_87 {dimension_numbers = #tpu.dot_dimension_numbers<[1], [0], [0], [1], [0, 0, 1, 1], [], []>} : vector<2x32xf32>, vector<32x128xf32>, vector<2x128xf32> -> vector<2x128xf32>
    %477 = vector.broadcast %9 : vector<1x128xf32> to vector<2x128xf32>
    %478 = arith.addf %477, %476 : vector<2x128xf32>
    %cst_88 = arith.constant dense<0.000000e+00> : vector<2x128xf32>
    %479 = tpu.matmul %474, %7, %cst_88 {dimension_numbers = #tpu.dot_dimension_numbers<[1], [0], [0], [1], [0, 0, 1, 1], [], []>} : vector<2x32xf32>, vector<32x128xf32>, vector<2x128xf32> -> vector<2x128xf32>
    %480 = arith.addf %478, %479 : vector<2x128xf32>
    %481 = arith.negf %480 : vector<2x128xf32>
    %482 = math.exp %481 : vector<2x128xf32>
    %cst_89 = arith.constant 1.000000e+00 : f32
    %483 = vector.broadcast %cst_89 : f32 to vector<2x128xf32>
    %484 = arith.addf %483, %482 : vector<2x128xf32>
    %485 = arith.divf %483, %484 : vector<2x128xf32>
    %486 = arith.mulf %485, %21 : vector<2x128xf32>
    %487 = arith.addf %486, %24 : vector<2x128xf32>
    %488 = vector.extract_strided_slice %487 {offsets = [0, 0], sizes = [2, 32], strides = [1, 1]} : vector<2x128xf32> to vector<2x32xf32>
    %489 = vector.extract_strided_slice %487 {offsets = [0, 32], sizes = [2, 32], strides = [1, 1]} : vector<2x128xf32> to vector<2x32xf32>
    %490 = vector.extract_strided_slice %487 {offsets = [0, 64], sizes = [2, 32], strides = [1, 1]} : vector<2x128xf32> to vector<2x32xf32>
    %491 = vector.extract_strided_slice %487 {offsets = [0, 96], sizes = [2, 32], strides = [1, 1]} : vector<2x128xf32> to vector<2x32xf32>
    %492 = arith.mulf %489, %451 : vector<2x32xf32>
    %493 = arith.mulf %488, %490 : vector<2x32xf32>
    %494 = arith.addf %492, %493 : vector<2x32xf32>
    %495 = math.tanh %494 : vector<2x32xf32>
    %496 = arith.mulf %491, %495 : vector<2x32xf32>
    %cst_90 = arith.constant dense<0.000000e+00> : vector<2x128xf32>
    %497 = tpu.matmul %474, %11, %cst_90 {dimension_numbers = #tpu.dot_dimension_numbers<[1], [0], [0], [1], [0, 0, 1, 1], [], []>} : vector<2x32xf32>, vector<32x128xf32>, vector<2x128xf32> -> vector<2x128xf32>
    %498 = vector.broadcast %12 : vector<1x128xf32> to vector<2x128xf32>
    %499 = arith.addf %498, %497 : vector<2x128xf32>
    %cst_91 = arith.constant dense<0.000000e+00> : vector<2x128xf32>
    %500 = tpu.matmul %496, %10, %cst_91 {dimension_numbers = #tpu.dot_dimension_numbers<[1], [0], [0], [1], [0, 0, 1, 1], [], []>} : vector<2x32xf32>, vector<32x128xf32>, vector<2x128xf32> -> vector<2x128xf32>
    %501 = arith.addf %499, %500 : vector<2x128xf32>
    %502 = arith.negf %501 : vector<2x128xf32>
    %503 = math.exp %502 : vector<2x128xf32>
    %cst_92 = arith.constant 1.000000e+00 : f32
    %504 = vector.broadcast %cst_92 : f32 to vector<2x128xf32>
    %505 = arith.addf %504, %503 : vector<2x128xf32>
    %506 = arith.divf %504, %505 : vector<2x128xf32>
    %507 = arith.mulf %506, %21 : vector<2x128xf32>
    %508 = arith.addf %507, %24 : vector<2x128xf32>
    %509 = vector.extract_strided_slice %508 {offsets = [0, 0], sizes = [2, 32], strides = [1, 1]} : vector<2x128xf32> to vector<2x32xf32>
    %510 = vector.extract_strided_slice %508 {offsets = [0, 32], sizes = [2, 32], strides = [1, 1]} : vector<2x128xf32> to vector<2x32xf32>
    %511 = vector.extract_strided_slice %508 {offsets = [0, 64], sizes = [2, 32], strides = [1, 1]} : vector<2x128xf32> to vector<2x32xf32>
    %512 = vector.extract_strided_slice %508 {offsets = [0, 96], sizes = [2, 32], strides = [1, 1]} : vector<2x128xf32> to vector<2x32xf32>
    %513 = arith.mulf %510, %472 : vector<2x32xf32>
    %514 = arith.mulf %509, %511 : vector<2x32xf32>
    %515 = arith.addf %513, %514 : vector<2x32xf32>
    %516 = math.tanh %515 : vector<2x32xf32>
    %517 = arith.mulf %512, %516 : vector<2x32xf32>
    %c8 = arith.constant 8 : index
    %c0_93 = arith.constant 0 : index
    %518 = vector.load %arg13[%c8, %c0_93] : memref<16x32xf32, #tpu.memory_space<vmem>>, vector<2x32xf32>
    tpu.vector_store %arg13[%c8, %c0_93], %517 {strides = array<i32>} : memref<16x32xf32, #tpu.memory_space<vmem>>, vector<2x32xf32>,
    %cst_94 = arith.constant dense<0.000000e+00> : vector<2x128xf32>
    %519 = tpu.matmul %496, %8, %cst_94 {dimension_numbers = #tpu.dot_dimension_numbers<[1], [0], [0], [1], [0, 0, 1, 1], [], []>} : vector<2x32xf32>, vector<32x128xf32>, vector<2x128xf32> -> vector<2x128xf32>
    %520 = vector.broadcast %9 : vector<1x128xf32> to vector<2x128xf32>
    %521 = arith.addf %520, %519 : vector<2x128xf32>
    %cst_95 = arith.constant dense<0.000000e+00> : vector<2x128xf32>
    %522 = tpu.matmul %517, %7, %cst_95 {dimension_numbers = #tpu.dot_dimension_numbers<[1], [0], [0], [1], [0, 0, 1, 1], [], []>} : vector<2x32xf32>, vector<32x128xf32>, vector<2x128xf32> -> vector<2x128xf32>
    %523 = arith.addf %521, %522 : vector<2x128xf32>
    %524 = arith.negf %523 : vector<2x128xf32>
    %525 = math.exp %524 : vector<2x128xf32>
    %cst_96 = arith.constant 1.000000e+00 : f32
    %526 = vector.broadcast %cst_96 : f32 to vector<2x128xf32>
    %527 = arith.addf %526, %525 : vector<2x128xf32>
    %528 = arith.divf %526, %527 : vector<2x128xf32>
    %529 = arith.mulf %528, %21 : vector<2x128xf32>
    %530 = arith.addf %529, %24 : vector<2x128xf32>
    %531 = vector.extract_strided_slice %530 {offsets = [0, 0], sizes = [2, 32], strides = [1, 1]} : vector<2x128xf32> to vector<2x32xf32>
    %532 = vector.extract_strided_slice %530 {offsets = [0, 32], sizes = [2, 32], strides = [1, 1]} : vector<2x128xf32> to vector<2x32xf32>
    %533 = vector.extract_strided_slice %530 {offsets = [0, 64], sizes = [2, 32], strides = [1, 1]} : vector<2x128xf32> to vector<2x32xf32>
    %534 = vector.extract_strided_slice %530 {offsets = [0, 96], sizes = [2, 32], strides = [1, 1]} : vector<2x128xf32> to vector<2x32xf32>
    %535 = arith.mulf %532, %494 : vector<2x32xf32>
    %536 = arith.mulf %531, %533 : vector<2x32xf32>
    %537 = arith.addf %535, %536 : vector<2x32xf32>
    %538 = math.tanh %537 : vector<2x32xf32>
    %539 = arith.mulf %534, %538 : vector<2x32xf32>
    %cst_97 = arith.constant dense<0.000000e+00> : vector<2x128xf32>
    %540 = tpu.matmul %517, %11, %cst_97 {dimension_numbers = #tpu.dot_dimension_numbers<[1], [0], [0], [1], [0, 0, 1, 1], [], []>} : vector<2x32xf32>, vector<32x128xf32>, vector<2x128xf32> -> vector<2x128xf32>
    %541 = vector.broadcast %12 : vector<1x128xf32> to vector<2x128xf32>
    %542 = arith.addf %541, %540 : vector<2x128xf32>
    %cst_98 = arith.constant dense<0.000000e+00> : vector<2x128xf32>
    %543 = tpu.matmul %539, %10, %cst_98 {dimension_numbers = #tpu.dot_dimension_numbers<[1], [0], [0], [1], [0, 0, 1, 1], [], []>} : vector<2x32xf32>, vector<32x128xf32>, vector<2x128xf32> -> vector<2x128xf32>
    %544 = arith.addf %542, %543 : vector<2x128xf32>
    %545 = arith.negf %544 : vector<2x128xf32>
    %546 = math.exp %545 : vector<2x128xf32>
    %cst_99 = arith.constant 1.000000e+00 : f32
    %547 = vector.broadcast %cst_99 : f32 to vector<2x128xf32>
    %548 = arith.addf %547, %546 : vector<2x128xf32>
    %549 = arith.divf %547, %548 : vector<2x128xf32>
    %550 = arith.mulf %549, %21 : vector<2x128xf32>
    %551 = arith.addf %550, %24 : vector<2x128xf32>
    %552 = vector.extract_strided_slice %551 {offsets = [0, 0], sizes = [2, 32], strides = [1, 1]} : vector<2x128xf32> to vector<2x32xf32>
    %553 = vector.extract_strided_slice %551 {offsets = [0, 32], sizes = [2, 32], strides = [1, 1]} : vector<2x128xf32> to vector<2x32xf32>
    %554 = vector.extract_strided_slice %551 {offsets = [0, 64], sizes = [2, 32], strides = [1, 1]} : vector<2x128xf32> to vector<2x32xf32>
    %555 = vector.extract_strided_slice %551 {offsets = [0, 96], sizes = [2, 32], strides = [1, 1]} : vector<2x128xf32> to vector<2x32xf32>
    %556 = arith.mulf %553, %515 : vector<2x32xf32>
    %557 = arith.mulf %552, %554 : vector<2x32xf32>
    %558 = arith.addf %556, %557 : vector<2x32xf32>
    %559 = math.tanh %558 : vector<2x32xf32>
    %560 = arith.mulf %555, %559 : vector<2x32xf32>
    %c10 = arith.constant 10 : index
    %c0_100 = arith.constant 0 : index
    %561 = vector.load %arg13[%c10, %c0_100] : memref<16x32xf32, #tpu.memory_space<vmem>>, vector<2x32xf32>
    tpu.vector_store %arg13[%c10, %c0_100], %560 {strides = array<i32>} : memref<16x32xf32, #tpu.memory_space<vmem>>, vector<2x32xf32>,
    %cst_101 = arith.constant dense<0.000000e+00> : vector<2x128xf32>
    %562 = tpu.matmul %539, %8, %cst_101 {dimension_numbers = #tpu.dot_dimension_numbers<[1], [0], [0], [1], [0, 0, 1, 1], [], []>} : vector<2x32xf32>, vector<32x128xf32>, vector<2x128xf32> -> vector<2x128xf32>
    %563 = vector.broadcast %9 : vector<1x128xf32> to vector<2x128xf32>
    %564 = arith.addf %563, %562 : vector<2x128xf32>
    %cst_102 = arith.constant dense<0.000000e+00> : vector<2x128xf32>
    %565 = tpu.matmul %560, %7, %cst_102 {dimension_numbers = #tpu.dot_dimension_numbers<[1], [0], [0], [1], [0, 0, 1, 1], [], []>} : vector<2x32xf32>, vector<32x128xf32>, vector<2x128xf32> -> vector<2x128xf32>
    %566 = arith.addf %564, %565 : vector<2x128xf32>
    %567 = arith.negf %566 : vector<2x128xf32>
    %568 = math.exp %567 : vector<2x128xf32>
    %cst_103 = arith.constant 1.000000e+00 : f32
    %569 = vector.broadcast %cst_103 : f32 to vector<2x128xf32>
    %570 = arith.addf %569, %568 : vector<2x128xf32>
    %571 = arith.divf %569, %570 : vector<2x128xf32>
    %572 = arith.mulf %571, %21 : vector<2x128xf32>
    %573 = arith.addf %572, %24 : vector<2x128xf32>
    %574 = vector.extract_strided_slice %573 {offsets = [0, 0], sizes = [2, 32], strides = [1, 1]} : vector<2x128xf32> to vector<2x32xf32>
    %575 = vector.extract_strided_slice %573 {offsets = [0, 32], sizes = [2, 32], strides = [1, 1]} : vector<2x128xf32> to vector<2x32xf32>
    %576 = vector.extract_strided_slice %573 {offsets = [0, 64], sizes = [2, 32], strides = [1, 1]} : vector<2x128xf32> to vector<2x32xf32>
    %577 = vector.extract_strided_slice %573 {offsets = [0, 96], sizes = [2, 32], strides = [1, 1]} : vector<2x128xf32> to vector<2x32xf32>
    %578 = arith.mulf %575, %537 : vector<2x32xf32>
    %579 = arith.mulf %574, %576 : vector<2x32xf32>
    %580 = arith.addf %578, %579 : vector<2x32xf32>
    %581 = math.tanh %580 : vector<2x32xf32>
    %582 = arith.mulf %577, %581 : vector<2x32xf32>
    %cst_104 = arith.constant dense<0.000000e+00> : vector<2x128xf32>
    %583 = tpu.matmul %560, %11, %cst_104 {dimension_numbers = #tpu.dot_dimension_numbers<[1], [0], [0], [1], [0, 0, 1, 1], [], []>} : vector<2x32xf32>, vector<32x128xf32>, vector<2x128xf32> -> vector<2x128xf32>
    %584 = vector.broadcast %12 : vector<1x128xf32> to vector<2x128xf32>
    %585 = arith.addf %584, %583 : vector<2x128xf32>
    %cst_105 = arith.constant dense<0.000000e+00> : vector<2x128xf32>
    %586 = tpu.matmul %582, %10, %cst_105 {dimension_numbers = #tpu.dot_dimension_numbers<[1], [0], [0], [1], [0, 0, 1, 1], [], []>} : vector<2x32xf32>, vector<32x128xf32>, vector<2x128xf32> -> vector<2x128xf32>
    %587 = arith.addf %585, %586 : vector<2x128xf32>
    %588 = arith.negf %587 : vector<2x128xf32>
    %589 = math.exp %588 : vector<2x128xf32>
    %cst_106 = arith.constant 1.000000e+00 : f32
    %590 = vector.broadcast %cst_106 : f32 to vector<2x128xf32>
    %591 = arith.addf %590, %589 : vector<2x128xf32>
    %592 = arith.divf %590, %591 : vector<2x128xf32>
    %593 = arith.mulf %592, %21 : vector<2x128xf32>
    %594 = arith.addf %593, %24 : vector<2x128xf32>
    %595 = vector.extract_strided_slice %594 {offsets = [0, 0], sizes = [2, 32], strides = [1, 1]} : vector<2x128xf32> to vector<2x32xf32>
    %596 = vector.extract_strided_slice %594 {offsets = [0, 32], sizes = [2, 32], strides = [1, 1]} : vector<2x128xf32> to vector<2x32xf32>
    %597 = vector.extract_strided_slice %594 {offsets = [0, 64], sizes = [2, 32], strides = [1, 1]} : vector<2x128xf32> to vector<2x32xf32>
    %598 = vector.extract_strided_slice %594 {offsets = [0, 96], sizes = [2, 32], strides = [1, 1]} : vector<2x128xf32> to vector<2x32xf32>
    %599 = arith.mulf %596, %558 : vector<2x32xf32>
    %600 = arith.mulf %595, %597 : vector<2x32xf32>
    %601 = arith.addf %599, %600 : vector<2x32xf32>
    %602 = math.tanh %601 : vector<2x32xf32>
    %603 = arith.mulf %598, %602 : vector<2x32xf32>
    %c12 = arith.constant 12 : index
    %c0_107 = arith.constant 0 : index
    %604 = vector.load %arg13[%c12, %c0_107] : memref<16x32xf32, #tpu.memory_space<vmem>>, vector<2x32xf32>
    tpu.vector_store %arg13[%c12, %c0_107], %603 {strides = array<i32>} : memref<16x32xf32, #tpu.memory_space<vmem>>, vector<2x32xf32>,
    %cst_108 = arith.constant dense<0.000000e+00> : vector<2x128xf32>
    %605 = tpu.matmul %582, %8, %cst_108 {dimension_numbers = #tpu.dot_dimension_numbers<[1], [0], [0], [1], [0, 0, 1, 1], [], []>} : vector<2x32xf32>, vector<32x128xf32>, vector<2x128xf32> -> vector<2x128xf32>
    %606 = vector.broadcast %9 : vector<1x128xf32> to vector<2x128xf32>
    %607 = arith.addf %606, %605 : vector<2x128xf32>
    %cst_109 = arith.constant dense<0.000000e+00> : vector<2x128xf32>
    %608 = tpu.matmul %603, %7, %cst_109 {dimension_numbers = #tpu.dot_dimension_numbers<[1], [0], [0], [1], [0, 0, 1, 1], [], []>} : vector<2x32xf32>, vector<32x128xf32>, vector<2x128xf32> -> vector<2x128xf32>
    %609 = arith.addf %607, %608 : vector<2x128xf32>
    %610 = arith.negf %609 : vector<2x128xf32>
    %611 = math.exp %610 : vector<2x128xf32>
    %cst_110 = arith.constant 1.000000e+00 : f32
    %612 = vector.broadcast %cst_110 : f32 to vector<2x128xf32>
    %613 = arith.addf %612, %611 : vector<2x128xf32>
    %614 = arith.divf %612, %613 : vector<2x128xf32>
    %615 = arith.mulf %614, %21 : vector<2x128xf32>
    %616 = arith.addf %615, %24 : vector<2x128xf32>
    %617 = vector.extract_strided_slice %616 {offsets = [0, 0], sizes = [2, 32], strides = [1, 1]} : vector<2x128xf32> to vector<2x32xf32>
    %618 = vector.extract_strided_slice %616 {offsets = [0, 32], sizes = [2, 32], strides = [1, 1]} : vector<2x128xf32> to vector<2x32xf32>
    %619 = vector.extract_strided_slice %616 {offsets = [0, 64], sizes = [2, 32], strides = [1, 1]} : vector<2x128xf32> to vector<2x32xf32>
    %620 = vector.extract_strided_slice %616 {offsets = [0, 96], sizes = [2, 32], strides = [1, 1]} : vector<2x128xf32> to vector<2x32xf32>
    %621 = arith.mulf %618, %580 : vector<2x32xf32>
    %622 = arith.mulf %617, %619 : vector<2x32xf32>
    %623 = arith.addf %621, %622 : vector<2x32xf32>
    %624 = math.tanh %623 : vector<2x32xf32>
    %625 = arith.mulf %620, %624 : vector<2x32xf32>
    %cst_111 = arith.constant dense<0.000000e+00> : vector<2x128xf32>
    %626 = tpu.matmul %603, %11, %cst_111 {dimension_numbers = #tpu.dot_dimension_numbers<[1], [0], [0], [1], [0, 0, 1, 1], [], []>} : vector<2x32xf32>, vector<32x128xf32>, vector<2x128xf32> -> vector<2x128xf32>
    %627 = vector.broadcast %12 : vector<1x128xf32> to vector<2x128xf32>
    %628 = arith.addf %627, %626 : vector<2x128xf32>
    %cst_112 = arith.constant dense<0.000000e+00> : vector<2x128xf32>
    %629 = tpu.matmul %625, %10, %cst_112 {dimension_numbers = #tpu.dot_dimension_numbers<[1], [0], [0], [1], [0, 0, 1, 1], [], []>} : vector<2x32xf32>, vector<32x128xf32>, vector<2x128xf32> -> vector<2x128xf32>
    %630 = arith.addf %628, %629 : vector<2x128xf32>
    %631 = arith.negf %630 : vector<2x128xf32>
    %632 = math.exp %631 : vector<2x128xf32>
    %cst_113 = arith.constant 1.000000e+00 : f32
    %633 = vector.broadcast %cst_113 : f32 to vector<2x128xf32>
    %634 = arith.addf %633, %632 : vector<2x128xf32>
    %635 = arith.divf %633, %634 : vector<2x128xf32>
    %636 = arith.mulf %635, %21 : vector<2x128xf32>
    %637 = arith.addf %636, %24 : vector<2x128xf32>
    %638 = vector.extract_strided_slice %637 {offsets = [0, 0], sizes = [2, 32], strides = [1, 1]} : vector<2x128xf32> to vector<2x32xf32>
    %639 = vector.extract_strided_slice %637 {offsets = [0, 32], sizes = [2, 32], strides = [1, 1]} : vector<2x128xf32> to vector<2x32xf32>
    %640 = vector.extract_strided_slice %637 {offsets = [0, 64], sizes = [2, 32], strides = [1, 1]} : vector<2x128xf32> to vector<2x32xf32>
    %641 = vector.extract_strided_slice %637 {offsets = [0, 96], sizes = [2, 32], strides = [1, 1]} : vector<2x128xf32> to vector<2x32xf32>
    %642 = arith.mulf %639, %601 : vector<2x32xf32>
    %643 = arith.mulf %638, %640 : vector<2x32xf32>
    %644 = arith.addf %642, %643 : vector<2x32xf32>
    %645 = math.tanh %644 : vector<2x32xf32>
    %646 = arith.mulf %641, %645 : vector<2x32xf32>
    %c14 = arith.constant 14 : index
    %c0_114 = arith.constant 0 : index
    %647 = vector.load %arg13[%c14, %c0_114] : memref<16x32xf32, #tpu.memory_space<vmem>>, vector<2x32xf32>
    tpu.vector_store %arg13[%c14, %c0_114], %646 {strides = array<i32>} : memref<16x32xf32, #tpu.memory_space<vmem>>, vector<2x32xf32>,
    %c0_115 = arith.constant 0 : index
    %c0_116 = arith.constant 0 : index
    %648 = vector.load %arg13[%c0_115, %c0_116] : memref<16x32xf32, #tpu.memory_space<vmem>>, vector<16x32xf32>
    %c0_117 = arith.constant 0 : index
    %c0_118 = arith.constant 0 : index
    %649 = vector.load %arg10[%c0_117, %c0_118] : memref<32x64xf32, #tpu.memory_space<vmem>>, vector<32x64xf32>
    %cst_119 = arith.constant dense<0.000000e+00> : vector<16x64xf32>
    %650 = tpu.matmul %648, %649, %cst_119 {dimension_numbers = #tpu.dot_dimension_numbers<[1], [0], [0], [1], [0, 0, 1, 1], [], []>} : vector<16x32xf32>, vector<32x64xf32>, vector<16x64xf32> -> vector<16x64xf32>
    %c0_120 = arith.constant 0 : index
    %c0_121 = arith.constant 0 : index
    %651 = vector.load %arg11[%c0_120, %c0_121] : memref<1x64xf32, #tpu.memory_space<vmem>>, vector<1x64xf32>
    %652 = vector.broadcast %651 : vector<1x64xf32> to vector<16x64xf32>
    %653 = arith.addf %650, %652 : vector<16x64xf32>
    %c0_122 = arith.constant 0 : index
    %c64 = arith.constant 64 : index
    %654 = vector.load %arg12[%c0_122, %c64] : memref<16x128xf32, #tpu.memory_space<vmem>>, vector<16x64xf32>
    tpu.vector_store %arg12[%c0_122, %c64], %653 {strides = array<i32>} : memref<16x128xf32, #tpu.memory_space<vmem>>, vector<16x64xf32>,
    return
  }
  func.func @transform_0(%arg0: i32) -> (i32, i32) {
    %c0_i32 = arith.constant 0 : i32
    %c0_i32_0 = arith.constant 0 : i32
    %c0_i32_1 = arith.constant 0 : i32
    return %c0_i32, %c0_i32_0 : i32, i32
  }
  func.func @transform_1(%arg0: i32) -> (i32, i32) {
    %c0_i32 = arith.constant 0 : i32
    %c0_i32_0 = arith.constant 0 : i32
    %c0_i32_1 = arith.constant 0 : i32
    return %c0_i32, %c0_i32_0 : i32, i32
  }
  func.func @transform_2(%arg0: i32) -> (i32, i32) {
    %c0_i32 = arith.constant 0 : i32
    %c0_i32_0 = arith.constant 0 : i32
    %c0_i32_1 = arith.constant 0 : i32
    return %c0_i32, %c0_i32_0 : i32, i32
  }
  func.func @transform_3(%arg0: i32) -> (i32, i32) {
    %c0_i32 = arith.constant 0 : i32
    %c0_i32_0 = arith.constant 0 : i32
    %c0_i32_1 = arith.constant 0 : i32
    return %c0_i32, %c0_i32_0 : i32, i32
  }
  func.func @transform_4(%arg0: i32) -> (i32, i32) {
    %c0_i32 = arith.constant 0 : i32
    %c0_i32_0 = arith.constant 0 : i32
    %c0_i32_1 = arith.constant 0 : i32
    return %c0_i32, %c0_i32_0 : i32, i32
  }
  func.func @transform_5(%arg0: i32) -> (i32, i32) {
    %c0_i32 = arith.constant 0 : i32
    %c0_i32_0 = arith.constant 0 : i32
    %c0_i32_1 = arith.constant 0 : i32
    return %c0_i32, %c0_i32_0 : i32, i32
  }
  func.func @transform_6(%arg0: i32) -> (i32, i32) {
    %c0_i32 = arith.constant 0 : i32
    %c0_i32_0 = arith.constant 0 : i32
    %c0_i32_1 = arith.constant 0 : i32
    return %c0_i32, %c0_i32_0 : i32, i32
  }
  func.func @transform_7(%arg0: i32) -> (i32, i32) {
    %c0_i32 = arith.constant 0 : i32
    %c0_i32_0 = arith.constant 0 : i32
    %c0_i32_1 = arith.constant 0 : i32
    return %c0_i32, %c0_i32_0 : i32, i32
  }
  func.func @transform_8(%arg0: i32) -> (i32, i32) {
    %c0_i32 = arith.constant 0 : i32
    %c0_i32_0 = arith.constant 0 : i32
    %c0_i32_1 = arith.constant 0 : i32
    return %c0_i32, %c0_i32_0 : i32, i32
  }
  func.func @transform_9(%arg0: i32) -> (i32, i32) {
    %c0_i32 = arith.constant 0 : i32
    %c0_i32_0 = arith.constant 0 : i32
    %c0_i32_1 = arith.constant 0 : i32
    return %c0_i32, %c0_i32_0 : i32, i32
  }
  func.func @transform_10(%arg0: i32) -> (i32, i32) {
    %c0_i32 = arith.constant 0 : i32
    %c0_i32_0 = arith.constant 0 : i32
    %c0_i32_1 = arith.constant 0 : i32
    return %c0_i32, %c0_i32_0 : i32, i32
  }
  func.func @transform_11(%arg0: i32) -> (i32, i32) {
    %c0_i32 = arith.constant 0 : i32
    %c0_i32_0 = arith.constant 0 : i32
    %c0_i32_1 = arith.constant 0 : i32
    return %c0_i32, %c0_i32_0 : i32, i32
  }
}

</mosaic_0001>

<llo_original>
// kernel: tile.18
$region0: #{tile.18}
  #allocation0 [shape = 's32[1]{0}', space=sflag, size = 0x4, scoped, tag = 'scoped memory for tile.18']
  %s0 = inlined_call_operand.vmem [shape: f32[8], index: 0, kind: input, shape index: {}]
  %s1 = inlined_call_operand.vmem [shape: f32[8,8], index: 1, kind: output, shape index: {}]
  // Predicated region
  $region2: #{tile.18} parent=0 // pred_check
    _
  $region3: #{tile.18} parent=0 // pred_check_branch
    %3 = sbr.rel (0) target = $region5
  $region4: #{tile.18} parent=0 // pred_region
    _
  $region5: #{tile.18} parent=0 // pred_fallthru
    _
  %v4 = vld [vmem:[%s0] ss:$0 sm:$0xff]
  %5 = vst [vmem:[%s1] sm:$0xff] %v4

// kernel: tile.13
$region0: #{tile.13}
  #allocation0 [shape = 's32[1]{0}', space=sflag, size = 0x4, scoped, tag = 'scoped memory for tile.13']
  %s0 = inlined_call_operand.vmem [shape: f32[4], index: 0, kind: input, shape index: {}]
  %s1 = inlined_call_operand.vmem [shape: f32[8,4], index: 1, kind: output, shape index: {}]
  // Predicated region
  $region2: #{tile.13} parent=0 // pred_check
    _
  $region3: #{tile.13} parent=0 // pred_check_branch
    %3 = sbr.rel (0) target = $region5
  $region4: #{tile.13} parent=0 // pred_region
    _
  $region5: #{tile.13} parent=0 // pred_fallthru
    _
  %v4 = vld [vmem:[%s0] ss:$0 sm:$0xff]
  %5 = vst [vmem:[%s1] sm:$0xff] %v4

// kernel: tile.19
$region0: #{tile.19}
  %s0 = inlined_call_operand.vmem [shape: f32[8,8], index: 0, kind: input, shape index: {}]
  %s1 = inlined_call_operand.vmem [shape: f32[1,64], index: 1, kind: output, shape index: {}]
  $region1: #{tile.19} parent=0
    #allocation0 [shape = 'u8[4096]{0}', space=vmem, size = 0x1000, scoped, tag = 'scoped mem for output reshape']
    %v2 = vld [vmem:[%s0] sm:$0x1]
    %vm3 = vcmask 64512
    %4 = vst.msk [vmem:[#allocation0] sm:$0x1] %vm3, %v2
    %s5 = scalar_lea.vmem %s0, 7
    %v6 = vld [vmem:[%s5] sm:$0x1]
    %7 = vrot.lane.b32.xlu0 %v6, 56
    %v8 = vpop.permute.xlu0 %7
    %vm9 = vcmask 523712
    %10 = vst.msk [vmem:[#allocation0] sm:$0x1] %vm9, %v8
    %s11 = scalar_lea.vmem %s0, 6
    %v12 = vld [vmem:[%s11] sm:$0x1]
    %13 = vrot.lane.b32.xlu0 %v12, 48
    %v14 = vpop.permute.xlu0 %13
    %vm15 = vcmask 458112
    %16 = vst.msk [vmem:[#allocation0] sm:$0x1] %vm15, %v14
    %s17 = scalar_lea.vmem %s0, 5
    %v18 = vld [vmem:[%s17] sm:$0x1]
    %19 = vrot.lane.b32.xlu0 %v18, 40
    %v20 = vpop.permute.xlu0 %19
    %vm21 = vcmask 392512
    %22 = vst.msk [vmem:[#allocation0] sm:$0x1] %vm21, %v20
    %s23 = scalar_lea.vmem %s0, 4
    %v24 = vld [vmem:[%s23] sm:$0x1]
    %25 = vrot.lane.b32.xlu0 %v24, 32
    %v26 = vpop.permute.xlu0 %25
    %vm27 = vcmask 326912
    %28 = vst.msk [vmem:[#allocation0] sm:$0x1] %vm27, %v26
    %s29 = scalar_lea.vmem %s0, 3
    %v30 = vld [vmem:[%s29] sm:$0x1]
    %31 = vrot.lane.b32.xlu0 %v30, 24
    %v32 = vpop.permute.xlu0 %31
    %vm33 = vcmask 261312
    %34 = vst.msk [vmem:[#allocation0] sm:$0x1] %vm33, %v32
    %s35 = scalar_lea.vmem %s0, 2
    %v36 = vld [vmem:[%s35] sm:$0x1]
    %37 = vrot.lane.b32.xlu0 %v36, 16
    %v38 = vpop.permute.xlu0 %37
    %vm39 = vcmask 195712
    %40 = vst.msk [vmem:[#allocation0] sm:$0x1] %vm39, %v38
    %s41 = scalar_lea.vmem %s0, 1
    %v42 = vld [vmem:[%s41] sm:$0x1]
    %43 = vrot.lane.b32.xlu0 %v42, 8
    %v44 = vpop.permute.xlu0 %43
    %vm45 = vcmask 130112
    %46 = vst.msk [vmem:[#allocation0] sm:$0x1] %vm45, %v44
    %s48 = ssub.s32 2, 1
    %v49 = vld [vmem:[#allocation0] sm:%s48]
    %s51 = ssub.s32 2, 1
    %52 = vst [vmem:[%s1] sm:%s51] %v49

// kernel: recurrent_content_transfer.1
$region0: #{recurrent_content_transfer.1}
  #allocation0 [shape = 'u32[]', space=smem, size = 0x4, offset = 0x4, fixed_abs, tag = 'smem constant byte address 0x4 - core index']
  #allocation1 [shape = 'u32[72,128]{1,0:T(1,128)}', space=vmem, size = 0x9000, scoped, tag = 'internal scratch']
  #allocation2 [shape = 'f32[16,32]{1,0:T(8,128)}', space=vmem, size = 0x2000, scoped, tag = 'scratch operand']
  %s0 = inlined_call_operand.vmem [shape: f32[16,64], index: 0, kind: input, shape index: {}]
  %s1 = inlined_call_operand.vmem [shape: f32[64,128], index: 1, kind: input, shape index: {}]
  %s2 = inlined_call_operand.vmem [shape: f32[1,128], index: 2, kind: input, shape index: {}]
  %s3 = inlined_call_operand.vmem [shape: f32[32,128], index: 3, kind: input, shape index: {}]
  %s4 = inlined_call_operand.vmem [shape: f32[32,128], index: 4, kind: input, shape index: {}]
  %s5 = inlined_call_operand.vmem [shape: f32[1,128], index: 5, kind: input, shape index: {}]
  %s6 = inlined_call_operand.vmem [shape: f32[32,128], index: 6, kind: input, shape index: {}]
  %s7 = inlined_call_operand.vmem [shape: f32[32,128], index: 7, kind: input, shape index: {}]
  %s8 = inlined_call_operand.vmem [shape: f32[1,128], index: 8, kind: input, shape index: {}]
  %s9 = inlined_call_operand.vmem [shape: f32[32,64], index: 9, kind: input, shape index: {}]
  %s10 = inlined_call_operand.vmem [shape: f32[1,64], index: 10, kind: input, shape index: {}]
  %s11 = inlined_call_operand.vmem [shape: f32[16,128], index: 11, kind: output, shape index: {}]
  %s12 = sld [smem:[#allocation0]]
  $region54: #{recurrent_content_transfer.1} parent=0
    _
  %s14 = ssub.s32 1, %s12
  %s15 = scalar_select 0, %s14, %s12
  // Predicated region
  $region2: #{recurrent_content_transfer.1} parent=0 // pred_check
    _
  $region3: #{recurrent_content_transfer.1} parent=0 // pred_check_branch
    %17 = sbr.rel (0) target = $region5
  $region4: #{recurrent_content_transfer.1} parent=0 // pred_region
    _
  $region5: #{recurrent_content_transfer.1} parent=0 // pred_fallthru
    _
  // Predicated region
  $region6: #{recurrent_content_transfer.1} parent=0 // pred_check
    _
  $region7: #{recurrent_content_transfer.1} parent=0 // pred_check_branch
    %19 = sbr.rel (0) target = $region9
  $region8: #{recurrent_content_transfer.1} parent=0 // pred_region
    _
  $region9: #{recurrent_content_transfer.1} parent=0 // pred_fallthru
    _
  // Predicated region
  $region10: #{recurrent_content_transfer.1} parent=0 // pred_check
    _
  $region11: #{recurrent_content_transfer.1} parent=0 // pred_check_branch
    %21 = sbr.rel (0) target = $region13
  $region12: #{recurrent_content_transfer.1} parent=0 // pred_region
    _
  $region13: #{recurrent_content_transfer.1} parent=0 // pred_fallthru
    _
  // Predicated region
  $region14: #{recurrent_content_transfer.1} parent=0 // pred_check
    _
  $region15: #{recurrent_content_transfer.1} parent=0 // pred_check_branch
    %23 = sbr.rel (0) target = $region17
  $region16: #{recurrent_content_transfer.1} parent=0 // pred_region
    _
  $region17: #{recurrent_content_transfer.1} parent=0 // pred_fallthru
    _
  // Predicated region
  $region18: #{recurrent_content_transfer.1} parent=0 // pred_check
    _
  $region19: #{recurrent_content_transfer.1} parent=0 // pred_check_branch
    %25 = sbr.rel (0) target = $region21
  $region20: #{recurrent_content_transfer.1} parent=0 // pred_region
    _
  $region21: #{recurrent_content_transfer.1} parent=0 // pred_fallthru
    _
  // Predicated region
  $region22: #{recurrent_content_transfer.1} parent=0 // pred_check
    _
  $region23: #{recurrent_content_transfer.1} parent=0 // pred_check_branch
    %27 = sbr.rel (0) target = $region25
  $region24: #{recurrent_content_transfer.1} parent=0 // pred_region
    _
  $region25: #{recurrent_content_transfer.1} parent=0 // pred_fallthru
    _
  // Predicated region
  $region26: #{recurrent_content_transfer.1} parent=0 // pred_check
    _
  $region27: #{recurrent_content_transfer.1} parent=0 // pred_check_branch
    %29 = sbr.rel (0) target = $region29
  $region28: #{recurrent_content_transfer.1} parent=0 // pred_region
    _
  $region29: #{recurrent_content_transfer.1} parent=0 // pred_fallthru
    _
  // Predicated region
  $region30: #{recurrent_content_transfer.1} parent=0 // pred_check
    _
  $region31: #{recurrent_content_transfer.1} parent=0 // pred_check_branch
    %31 = sbr.rel (0) target = $region33
  $region32: #{recurrent_content_transfer.1} parent=0 // pred_region
    _
  $region33: #{recurrent_content_transfer.1} parent=0 // pred_fallthru
    _
  // Predicated region
  $region34: #{recurrent_content_transfer.1} parent=0 // pred_check
    _
  $region35: #{recurrent_content_transfer.1} parent=0 // pred_check_branch
    %33 = sbr.rel (0) target = $region37
  $region36: #{recurrent_content_transfer.1} parent=0 // pred_region
    _
  $region37: #{recurrent_content_transfer.1} parent=0 // pred_fallthru
    _
  // Predicated region
  $region38: #{recurrent_content_transfer.1} parent=0 // pred_check
    _
  $region39: #{recurrent_content_transfer.1} parent=0 // pred_check_branch
    %35 = sbr.rel (0) target = $region41
  $region40: #{recurrent_content_transfer.1} parent=0 // pred_region
    _
  $region41: #{recurrent_content_transfer.1} parent=0 // pred_fallthru
    _
  // Predicated region
  $region42: #{recurrent_content_transfer.1} parent=0 // pred_check
    _
  $region43: #{recurrent_content_transfer.1} parent=0 // pred_check_branch
    %37 = sbr.rel (0) target = $region45
  $region44: #{recurrent_content_transfer.1} parent=0 // pred_region
    _
  $region45: #{recurrent_content_transfer.1} parent=0 // pred_fallthru
    _
  %v38 = vld [vmem:[%s0] sm:$0xff]
  %v39 = vld [vmem:[%s0 + $0x8] sm:$0xff]
  %vm40 = vcmask 523264
  %41 = vst.msk [vmem:[%s11] sm:$0xff] %vm40, %v38
  %42 = vst.msk [vmem:[%s11 + $0x8] sm:$0xff] %vm40, %v39
  %v43 = vld [vmem:[%s1] sm:$0xff]
  %v44 = vld [vmem:[%s1 + $0x8] sm:$0xff]
  %v45 = vld [vmem:[%s1 + $0x10] sm:$0xff]
  %v46 = vld [vmem:[%s1 + $0x18] sm:$0xff]
  %v47 = vld [vmem:[%s1 + $0x20] sm:$0xff]
  %v48 = vld [vmem:[%s1 + $0x28] sm:$0xff]
  %v49 = vld [vmem:[%s1 + $0x30] sm:$0xff]
  %v50 = vld [vmem:[%s1 + $0x38] sm:$0xff]
  %v51 = vld [vmem:[%s2] sm:$0x1]
  %v53 = vperm.slane %v51, 0
  %v56 = vsel %vm40, %v38, 0
  %v59 = vsel %vm40, %v39, 0
  %61 = vmatpush.msra.mxu0 0.0
  %62 = vmatpush.msra.mxu0 0.0
  %63 = vmatpush.msra.mxu0 0.0
  %64 = vmatpush.msra.mxu0 0.0
  %65 = vmatpush.msra.mxu0 0.0
  %66 = vmatpush.msra.mxu0 0.0
  %67 = vmatpush.msra.mxu0 0.0
  %68 = vmatpush.msra.mxu0 0.0
  %69 = vmatpush.msra.mxu0 %v50
  %70 = vmatpush.msra.mxu0 %v49
  %71 = vmatpush.msra.mxu0 %v48
  %72 = vmatpush.msra.mxu0 %v47
  %73 = vmatpush.msra.mxu0 %v46
  %74 = vmatpush.msra.mxu0 %v45
  %75 = vmatpush.msra.mxu0 %v44
  %76 = vmatpush.msra.mxu0 %v43
  %77 = vmatmul.f32.gmra.mxu0 %v56
  %v78 = vpop.f32.mrf.mxu0
  %v79 = vadd.f32 %v53, %v78
  %80 = vmatmul.f32.gmra.mxu0 %v59
  %v81 = vpop.f32.mrf.mxu0
  %v82 = vadd.f32 %v53, %v81
  %83 = vdwg.mxu0
  %v84 = vld [vmem:[%s3] sm:$0xff]
  %v85 = vld [vmem:[%s3 + $0x8] sm:$0xff]
  %v86 = vld [vmem:[%s3 + $0x10] sm:$0xff]
  %v87 = vld [vmem:[%s3 + $0x18] sm:$0xff]
  %v88 = vld [vmem:[%s4] sm:$0xff]
  %v89 = vld [vmem:[%s4 + $0x8] sm:$0xff]
  %v90 = vld [vmem:[%s4 + $0x10] sm:$0xff]
  %v91 = vld [vmem:[%s4 + $0x18] sm:$0xff]
  %v92 = vld [vmem:[%s5] sm:$0x1]
  %v93 = vld [vmem:[%s6] sm:$0xff]
  %v94 = vld [vmem:[%s6 + $0x8] sm:$0xff]
  %v95 = vld [vmem:[%s6 + $0x10] sm:$0xff]
  %v96 = vld [vmem:[%s6 + $0x18] sm:$0xff]
  %v97 = vld [vmem:[%s7] sm:$0xff]
  %v98 = vld [vmem:[%s7 + $0x8] sm:$0xff]
  %v99 = vld [vmem:[%s7 + $0x10] sm:$0xff]
  %v100 = vld [vmem:[%s7 + $0x18] sm:$0xff]
  %v101 = vld [vmem:[%s8] sm:$0x1]
  %v102 = vlaneseq
  %v103 = vand.u32 %v102, 127
  %vm104 = vcmp.ge.s32.totalorder %v103, 64
  %vm105 = vcmp.lt.s32.totalorder %v103, 96
  %vm106 = vmand %vm104, %vm105
  %v107 = vsel %vm106, 2.0, 1.0
  %v108 = vsel %vm106, -1.0, 0.0
  %vm109 = vcmask 261120
  %v111 = vsel %vm109, 0.0, 0
  %113 = vmatpush.msra.mxu0 0.0
  %114 = vmatpush.msra.mxu0 0.0
  %115 = vmatpush.msra.mxu0 0.0
  %116 = vmatpush.msra.mxu0 0.0
  %117 = vmatpush.msra.mxu0 0.0
  %118 = vmatpush.msra.mxu0 0.0
  %119 = vmatpush.msra.mxu0 0.0
  %120 = vmatpush.msra.mxu0 0.0
  %121 = vmatpush.msra.mxu0 0.0
  %122 = vmatpush.msra.mxu0 0.0
  %123 = vmatpush.msra.mxu0 0.0
  %124 = vmatpush.msra.mxu0 0.0
  %125 = vmatpush.msra.mxu0 %v91
  %126 = vmatpush.msra.mxu0 %v90
  %127 = vmatpush.msra.mxu0 %v89
  %128 = vmatpush.msra.mxu0 %v88
  %129 = vmatmul.f32.gmra.mxu0 %v111
  %v130 = vpop.f32.mrf.mxu0
  %v131 = vadd.f32 0.0, %v130
  %132 = vdwg.mxu0
  %v133 = vadd.f32 %v79, %v131
  %v134 = vxor.u32 %v133, 2147483648
  %v135 = vmul.f32 %v134, 1.442695
  %v136 = vpow.pop %v135
  %v137 = vadd.f32 %v136, 1.0
  %v138 = vrcp.pop %v137
  %v139 = vmul.f32 %v137, %v138
  %v140 = vsub.f32 1.0, %v139
  %v141 = vmul.f32 %v138, %v140
  %v142 = vadd.f32 %v138, %v141
  %vm143 = vweird.f32 %v137
  %vm144 = vweird.f32 %v138
  %vm145 = vmor %vm143, %vm144
  %v146 = vsel %vm145, %v138, %v142
  %v147 = vand.u32 2147483647, %v137
  %vm148 = vcmp.eq.f32.partialorder %v147, 8.507059e+37
  %v149 = vand.u32 %v137, 2147483648
  %v150 = vor.u32 1.1754944e-38, %v149
  %v151 = vsel %vm148, %v150, %v146
  %v152 = vmul.f32 1.0, %v151
  %v153 = vmul.f32 %v152, %v107
  %v154 = vadd.f32 %v153, %v108
  %v155 = vmul.f32 %v154, 0.0
  %157 = vrot.lane.b32.xlu0 %v154, 64
  %v158 = vpop.permute.xlu0 %157
  %v160 = vmul.f32 %v154, %v158
  %162 = vrot.lane.b32.xlu0 %v160, 32
  %v163 = vpop.permute.xlu0 %162
  %v165 = vadd.f32 %v155, %v163
  %v166 = vtanh.pop %v165
  %168 = vrot.lane.b32.xlu0 %v166, 64
  %v169 = vpop.permute.xlu0 %168
  %v171 = vmul.f32 %v154, %v169
  %172 = vmatpush.msra.mxu0 0.0
  %173 = vmatpush.msra.mxu0 0.0
  %174 = vmatpush.msra.mxu0 0.0
  %175 = vmatpush.msra.mxu0 0.0
  %176 = vmatpush.msra.mxu0 0.0
  %177 = vmatpush.msra.mxu0 0.0
  %178 = vmatpush.msra.mxu0 0.0
  %179 = vmatpush.msra.mxu0 0.0
  %180 = vmatpush.msra.mxu0 0.0
  %181 = vmatpush.msra.mxu0 0.0
  %182 = vmatpush.msra.mxu0 0.0
  %183 = vmatpush.msra.mxu0 0.0
  %184 = vmatpush.msra.mxu0 %v100
  %185 = vmatpush.msra.mxu0 %v99
  %186 = vmatpush.msra.mxu0 %v98
  %187 = vmatpush.msra.mxu0 %v97
  %188 = vmatmul.f32.gmra.mxu0 %v111
  %v189 = vpop.f32.mrf.mxu0
  %v190 = vadd.f32 0.0, %v189
  %191 = vdwg.mxu0
  %v193 = vperm.slane %v101, 0
  %v195 = vadd.f32 %v193, %v190
  %197 = vrot.lane.b32.xlu0 %v171, 32
  %v198 = vpop.permute.xlu0 %197
  %v199 = vsel %vm109, %v198, 0
  %201 = vmatpush.msra.mxu0 0.0
  %202 = vmatpush.msra.mxu0 0.0
  %203 = vmatpush.msra.mxu0 0.0
  %204 = vmatpush.msra.mxu0 0.0
  %205 = vmatpush.msra.mxu0 0.0
  %206 = vmatpush.msra.mxu0 0.0
  %207 = vmatpush.msra.mxu0 0.0
  %208 = vmatpush.msra.mxu0 0.0
  %209 = vmatpush.msra.mxu0 0.0
  %210 = vmatpush.msra.mxu0 0.0
  %211 = vmatpush.msra.mxu0 0.0
  %212 = vmatpush.msra.mxu0 0.0
  %213 = vmatpush.msra.mxu0 %v96
  %214 = vmatpush.msra.mxu0 %v95
  %215 = vmatpush.msra.mxu0 %v94
  %216 = vmatpush.msra.mxu0 %v93
  %217 = vmatmul.f32.gmra.mxu0 %v199
  %v218 = vpop.f32.mrf.mxu0
  %v219 = vadd.f32 0.0, %v218
  %220 = vdwg.mxu0
  %v221 = vadd.f32 %v195, %v219
  %v222 = vxor.u32 %v221, 2147483648
  %v223 = vmul.f32 %v222, 1.442695
  %v224 = vpow.pop %v223
  %v225 = vadd.f32 %v224, 1.0
  %v226 = vrcp.pop %v225
  %v227 = vmul.f32 %v225, %v226
  %v228 = vsub.f32 1.0, %v227
  %v229 = vmul.f32 %v226, %v228
  %v230 = vadd.f32 %v226, %v229
  %vm231 = vweird.f32 %v225
  %vm232 = vweird.f32 %v226
  %vm233 = vmor %vm231, %vm232
  %v234 = vsel %vm233, %v226, %v230
  %v235 = vand.u32 2147483647, %v225
  %vm236 = vcmp.eq.f32.partialorder %v235, 8.507059e+37
  %v237 = vand.u32 %v225, 2147483648
  %v238 = vor.u32 1.1754944e-38, %v237
  %v239 = vsel %vm236, %v238, %v234
  %v240 = vmul.f32 1.0, %v239
  %v241 = vmul.f32 %v240, %v107
  %v242 = vadd.f32 %v241, %v108
  %v243 = vmul.f32 %v242, 0.0
  %245 = vrot.lane.b32.xlu0 %v242, 64
  %v246 = vpop.permute.xlu0 %245
  %v248 = vmul.f32 %v242, %v246
  %250 = vrot.lane.b32.xlu0 %v248, 32
  %v251 = vpop.permute.xlu0 %250
  %v253 = vadd.f32 %v243, %v251
  %v254 = vtanh.pop %v253
  %256 = vrot.lane.b32.xlu0 %v254, 64
  %v257 = vpop.permute.xlu0 %256
  %v259 = vmul.f32 %v242, %v257
  %260 = vmatpush.msra.mxu0 0.0
  %261 = vmatpush.msra.mxu0 0.0
  %262 = vmatpush.msra.mxu0 0.0
  %263 = vmatpush.msra.mxu0 0.0
  %264 = vmatpush.msra.mxu0 0.0
  %265 = vmatpush.msra.mxu0 0.0
  %266 = vmatpush.msra.mxu0 0.0
  %267 = vmatpush.msra.mxu0 0.0
  %268 = vmatpush.msra.mxu0 0.0
  %269 = vmatpush.msra.mxu0 0.0
  %270 = vmatpush.msra.mxu0 0.0
  %271 = vmatpush.msra.mxu0 0.0
  %272 = vmatpush.msra.mxu0 %v91
  %273 = vmatpush.msra.mxu0 %v90
  %274 = vmatpush.msra.mxu0 %v89
  %275 = vmatpush.msra.mxu0 %v88
  %276 = vmatmul.f32.gmra.mxu0 %v199
  %v277 = vpop.f32.mrf.mxu0
  %v278 = vadd.f32 0.0, %v277
  %279 = vdwg.mxu0
  %v281 = vrot.slane %v278, 6
  %v283 = vadd.f32 %v79, %v281
  %v284 = vxor.u32 %v283, 2147483648
  %v285 = vmul.f32 %v284, 1.442695
  %v286 = vpow.pop %v285
  %v287 = vadd.f32 %v286, 1.0
  %v288 = vrcp.pop %v287
  %v289 = vmul.f32 %v287, %v288
  %v290 = vsub.f32 1.0, %v289
  %v291 = vmul.f32 %v288, %v290
  %v292 = vadd.f32 %v288, %v291
  %vm293 = vweird.f32 %v287
  %vm294 = vweird.f32 %v288
  %vm295 = vmor %vm293, %vm294
  %v296 = vsel %vm295, %v288, %v292
  %v297 = vand.u32 2147483647, %v287
  %vm298 = vcmp.eq.f32.partialorder %v297, 8.507059e+37
  %v299 = vand.u32 %v287, 2147483648
  %v300 = vor.u32 1.1754944e-38, %v299
  %v301 = vsel %vm298, %v300, %v296
  %v302 = vmul.f32 1.0, %v301
  %v303 = vmul.f32 %v302, %v107
  %v304 = vadd.f32 %v303, %v108
  %v306 = vrot.slane %v165, 6
  %v308 = vmul.f32 %v304, %v306
  %310 = vrot.lane.b32.xlu0 %v304, 64
  %v311 = vpop.permute.xlu0 %310
  %v313 = vmul.f32 %v304, %v311
  %315 = vrot.lane.b32.xlu0 %v313, 32
  %v316 = vpop.permute.xlu0 %315
  %v318 = vadd.f32 %v308, %v316
  %v319 = vtanh.pop %v318
  %321 = vrot.lane.b32.xlu0 %v319, 64
  %v322 = vpop.permute.xlu0 %321
  %v324 = vmul.f32 %v304, %v322
  %326 = vrot.lane.b32.xlu0 %v259, 32
  %v327 = vpop.permute.xlu0 %326
  %v328 = vsel %vm109, %v327, 0
  %330 = vmatpush.msra.mxu0 0.0
  %331 = vmatpush.msra.mxu0 0.0
  %332 = vmatpush.msra.mxu0 0.0
  %333 = vmatpush.msra.mxu0 0.0
  %334 = vmatpush.msra.mxu0 0.0
  %335 = vmatpush.msra.mxu0 0.0
  %336 = vmatpush.msra.mxu0 0.0
  %337 = vmatpush.msra.mxu0 0.0
  %338 = vmatpush.msra.mxu0 0.0
  %339 = vmatpush.msra.mxu0 0.0
  %340 = vmatpush.msra.mxu0 0.0
  %341 = vmatpush.msra.mxu0 0.0
  %342 = vmatpush.msra.mxu0 %v100
  %343 = vmatpush.msra.mxu0 %v99
  %344 = vmatpush.msra.mxu0 %v98
  %345 = vmatpush.msra.mxu0 %v97
  %346 = vmatmul.f32.gmra.mxu0 %v328
  %v347 = vpop.f32.mrf.mxu0
  %v348 = vadd.f32 0.0, %v347
  %349 = vdwg.mxu0
  %v350 = vadd.f32 %v193, %v348
  %v352 = vrot.slane %v324, 2
  %353 = vrot.lane.b32.xlu0 %v352, 32
  %v354 = vpop.permute.xlu0 %353
  %v355 = vsel %vm109, %v354, 0
  %357 = vmatpush.msra.mxu0 0.0
  %358 = vmatpush.msra.mxu0 0.0
  %359 = vmatpush.msra.mxu0 0.0
  %360 = vmatpush.msra.mxu0 0.0
  %361 = vmatpush.msra.mxu0 0.0
  %362 = vmatpush.msra.mxu0 0.0
  %363 = vmatpush.msra.mxu0 0.0
  %364 = vmatpush.msra.mxu0 0.0
  %365 = vmatpush.msra.mxu0 0.0
  %366 = vmatpush.msra.mxu0 0.0
  %367 = vmatpush.msra.mxu0 0.0
  %368 = vmatpush.msra.mxu0 0.0
  %369 = vmatpush.msra.mxu0 %v96
  %370 = vmatpush.msra.mxu0 %v95
  %371 = vmatpush.msra.mxu0 %v94
  %372 = vmatpush.msra.mxu0 %v93
  %373 = vmatmul.f32.gmra.mxu0 %v355
  %v374 = vpop.f32.mrf.mxu0
  %v375 = vadd.f32 0.0, %v374
  %376 = vdwg.mxu0
  %v377 = vadd.f32 %v350, %v375
  %v378 = vxor.u32 %v377, 2147483648
  %v379 = vmul.f32 %v378, 1.442695
  %v380 = vpow.pop %v379
  %v381 = vadd.f32 %v380, 1.0
  %v382 = vrcp.pop %v381
  %v383 = vmul.f32 %v381, %v382
  %v384 = vsub.f32 1.0, %v383
  %v385 = vmul.f32 %v382, %v384
  %v386 = vadd.f32 %v382, %v385
  %vm387 = vweird.f32 %v381
  %vm388 = vweird.f32 %v382
  %vm389 = vmor %vm387, %vm388
  %v390 = vsel %vm389, %v382, %v386
  %v391 = vand.u32 2147483647, %v381
  %vm392 = vcmp.eq.f32.partialorder %v391, 8.507059e+37
  %v393 = vand.u32 %v381, 2147483648
  %v394 = vor.u32 1.1754944e-38, %v393
  %v395 = vsel %vm392, %v394, %v390
  %v396 = vmul.f32 1.0, %v395
  %v397 = vmul.f32 %v396, %v107
  %v398 = vadd.f32 %v397, %v108
  %v399 = vmul.f32 %v398, %v253
  %401 = vrot.lane.b32.xlu0 %v398, 64
  %v402 = vpop.permute.xlu0 %401
  %v404 = vmul.f32 %v398, %v402
  %406 = vrot.lane.b32.xlu0 %v404, 32
  %v407 = vpop.permute.xlu0 %406
  %v409 = vadd.f32 %v399, %v407
  %v410 = vtanh.pop %v409
  %412 = vrot.lane.b32.xlu0 %v410, 64
  %v413 = vpop.permute.xlu0 %412
  %v415 = vmul.f32 %v398, %v413
  %416 = vmatpush.msra.mxu0 0.0
  %417 = vmatpush.msra.mxu0 0.0
  %418 = vmatpush.msra.mxu0 0.0
  %419 = vmatpush.msra.mxu0 0.0
  %420 = vmatpush.msra.mxu0 0.0
  %421 = vmatpush.msra.mxu0 0.0
  %422 = vmatpush.msra.mxu0 0.0
  %423 = vmatpush.msra.mxu0 0.0
  %424 = vmatpush.msra.mxu0 0.0
  %425 = vmatpush.msra.mxu0 0.0
  %426 = vmatpush.msra.mxu0 0.0
  %427 = vmatpush.msra.mxu0 0.0
  %428 = vmatpush.msra.mxu0 %v91
  %429 = vmatpush.msra.mxu0 %v90
  %430 = vmatpush.msra.mxu0 %v89
  %431 = vmatpush.msra.mxu0 %v88
  %432 = vmatmul.f32.gmra.mxu0 %v355
  %v433 = vpop.f32.mrf.mxu0
  %v434 = vadd.f32 0.0, %v433
  %435 = vdwg.mxu0
  %v437 = vrot.slane %v434, 4
  %v439 = vadd.f32 %v79, %v437
  %v440 = vxor.u32 %v439, 2147483648
  %v441 = vmul.f32 %v440, 1.442695
  %v442 = vpow.pop %v441
  %v443 = vadd.f32 %v442, 1.0
  %v444 = vrcp.pop %v443
  %v445 = vmul.f32 %v443, %v444
  %v446 = vsub.f32 1.0, %v445
  %v447 = vmul.f32 %v444, %v446
  %v448 = vadd.f32 %v444, %v447
  %vm449 = vweird.f32 %v443
  %vm450 = vweird.f32 %v444
  %vm451 = vmor %vm449, %vm450
  %v452 = vsel %vm451, %v444, %v448
  %v453 = vand.u32 2147483647, %v443
  %vm454 = vcmp.eq.f32.partialorder %v453, 8.507059e+37
  %v455 = vand.u32 %v443, 2147483648
  %v456 = vor.u32 1.1754944e-38, %v455
  %v457 = vsel %vm454, %v456, %v452
  %v458 = vmul.f32 1.0, %v457
  %v459 = vmul.f32 %v458, %v107
  %v460 = vadd.f32 %v459, %v108
  %v462 = vrot.slane %v318, 6
  %v464 = vmul.f32 %v460, %v462
  %466 = vrot.lane.b32.xlu0 %v460, 64
  %v467 = vpop.permute.xlu0 %466
  %v469 = vmul.f32 %v460, %v467
  %471 = vrot.lane.b32.xlu0 %v469, 32
  %v472 = vpop.permute.xlu0 %471
  %v474 = vadd.f32 %v464, %v472
  %v475 = vtanh.pop %v474
  %477 = vrot.lane.b32.xlu0 %v475, 64
  %v478 = vpop.permute.xlu0 %477
  %v480 = vmul.f32 %v460, %v478
  %482 = vrot.lane.b32.xlu0 %v415, 32
  %v483 = vpop.permute.xlu0 %482
  %v484 = vsel %vm109, %v483, 0
  %486 = vmatpush.msra.mxu0 0.0
  %487 = vmatpush.msra.mxu0 0.0
  %488 = vmatpush.msra.mxu0 0.0
  %489 = vmatpush.msra.mxu0 0.0
  %490 = vmatpush.msra.mxu0 0.0
  %491 = vmatpush.msra.mxu0 0.0
  %492 = vmatpush.msra.mxu0 0.0
  %493 = vmatpush.msra.mxu0 0.0
  %494 = vmatpush.msra.mxu0 0.0
  %495 = vmatpush.msra.mxu0 0.0
  %496 = vmatpush.msra.mxu0 0.0
  %497 = vmatpush.msra.mxu0 0.0
  %498 = vmatpush.msra.mxu0 %v100
  %499 = vmatpush.msra.mxu0 %v99
  %500 = vmatpush.msra.mxu0 %v98
  %501 = vmatpush.msra.mxu0 %v97
  %502 = vmatmul.f32.gmra.mxu0 %v484
  %v503 = vpop.f32.mrf.mxu0
  %v504 = vadd.f32 0.0, %v503
  %505 = vdwg.mxu0
  %v506 = vadd.f32 %v193, %v504
  %v508 = vrot.slane %v480, 4
  %509 = vrot.lane.b32.xlu0 %v508, 32
  %v510 = vpop.permute.xlu0 %509
  %v511 = vsel %vm109, %v510, 0
  %513 = vmatpush.msra.mxu0 0.0
  %514 = vmatpush.msra.mxu0 0.0
  %515 = vmatpush.msra.mxu0 0.0
  %516 = vmatpush.msra.mxu0 0.0
  %517 = vmatpush.msra.mxu0 0.0
  %518 = vmatpush.msra.mxu0 0.0
  %519 = vmatpush.msra.mxu0 0.0
  %520 = vmatpush.msra.mxu0 0.0
  %521 = vmatpush.msra.mxu0 0.0
  %522 = vmatpush.msra.mxu0 0.0
  %523 = vmatpush.msra.mxu0 0.0
  %524 = vmatpush.msra.mxu0 0.0
  %525 = vmatpush.msra.mxu0 %v96
  %526 = vmatpush.msra.mxu0 %v95
  %527 = vmatpush.msra.mxu0 %v94
  %528 = vmatpush.msra.mxu0 %v93
  %529 = vmatmul.f32.gmra.mxu0 %v511
  %v530 = vpop.f32.mrf.mxu0
  %v531 = vadd.f32 0.0, %v530
  %532 = vdwg.mxu0
  %v533 = vadd.f32 %v506, %v531
  %v534 = vxor.u32 %v533, 2147483648
  %v535 = vmul.f32 %v534, 1.442695
  %v536 = vpow.pop %v535
  %v537 = vadd.f32 %v536, 1.0
  %v538 = vrcp.pop %v537
  %v539 = vmul.f32 %v537, %v538
  %v540 = vsub.f32 1.0, %v539
  %v541 = vmul.f32 %v538, %v540
  %v542 = vadd.f32 %v538, %v541
  %vm543 = vweird.f32 %v537
  %vm544 = vweird.f32 %v538
  %vm545 = vmor %vm543, %vm544
  %v546 = vsel %vm545, %v538, %v542
  %v547 = vand.u32 2147483647, %v537
  %vm548 = vcmp.eq.f32.partialorder %v547, 8.507059e+37
  %v549 = vand.u32 %v537, 2147483648
  %v550 = vor.u32 1.1754944e-38, %v549
  %v551 = vsel %vm548, %v550, %v546
  %v552 = vmul.f32 1.0, %v551
  %v553 = vmul.f32 %v552, %v107
  %v554 = vadd.f32 %v553, %v108
  %v555 = vmul.f32 %v554, %v409
  %557 = vrot.lane.b32.xlu0 %v554, 64
  %v558 = vpop.permute.xlu0 %557
  %v560 = vmul.f32 %v554, %v558
  %562 = vrot.lane.b32.xlu0 %v560, 32
  %v563 = vpop.permute.xlu0 %562
  %v565 = vadd.f32 %v555, %v563
  %v566 = vtanh.pop %v565
  %568 = vrot.lane.b32.xlu0 %v566, 64
  %v569 = vpop.permute.xlu0 %568
  %v571 = vmul.f32 %v554, %v569
  %572 = vmatpush.msra.mxu0 0.0
  %573 = vmatpush.msra.mxu0 0.0
  %574 = vmatpush.msra.mxu0 0.0
  %575 = vmatpush.msra.mxu0 0.0
  %576 = vmatpush.msra.mxu0 0.0
  %577 = vmatpush.msra.mxu0 0.0
  %578 = vmatpush.msra.mxu0 0.0
  %579 = vmatpush.msra.mxu0 0.0
  %580 = vmatpush.msra.mxu0 0.0
  %581 = vmatpush.msra.mxu0 0.0
  %582 = vmatpush.msra.mxu0 0.0
  %583 = vmatpush.msra.mxu0 0.0
  %584 = vmatpush.msra.mxu0 %v91
  %585 = vmatpush.msra.mxu0 %v90
  %586 = vmatpush.msra.mxu0 %v89
  %587 = vmatpush.msra.mxu0 %v88
  %588 = vmatmul.f32.gmra.mxu0 %v511
  %v589 = vpop.f32.mrf.mxu0
  %v590 = vadd.f32 0.0, %v589
  %591 = vdwg.mxu0
  %v593 = vrot.slane %v590, 2
  %v595 = vadd.f32 %v79, %v593
  %v596 = vxor.u32 %v595, 2147483648
  %v597 = vmul.f32 %v596, 1.442695
  %v598 = vpow.pop %v597
  %v599 = vadd.f32 %v598, 1.0
  %v600 = vrcp.pop %v599
  %v601 = vmul.f32 %v599, %v600
  %v602 = vsub.f32 1.0, %v601
  %v603 = vmul.f32 %v600, %v602
  %v604 = vadd.f32 %v600, %v603
  %vm605 = vweird.f32 %v599
  %vm606 = vweird.f32 %v600
  %vm607 = vmor %vm605, %vm606
  %v608 = vsel %vm607, %v600, %v604
  %v609 = vand.u32 2147483647, %v599
  %vm610 = vcmp.eq.f32.partialorder %v609, 8.507059e+37
  %v611 = vand.u32 %v599, 2147483648
  %v612 = vor.u32 1.1754944e-38, %v611
  %v613 = vsel %vm610, %v612, %v608
  %v614 = vmul.f32 1.0, %v613
  %v615 = vmul.f32 %v614, %v107
  %v616 = vadd.f32 %v615, %v108
  %v618 = vrot.slane %v474, 6
  %v620 = vmul.f32 %v616, %v618
  %622 = vrot.lane.b32.xlu0 %v616, 64
  %v623 = vpop.permute.xlu0 %622
  %v625 = vmul.f32 %v616, %v623
  %627 = vrot.lane.b32.xlu0 %v625, 32
  %v628 = vpop.permute.xlu0 %627
  %v630 = vadd.f32 %v620, %v628
  %v631 = vtanh.pop %v630
  %633 = vrot.lane.b32.xlu0 %v631, 64
  %v634 = vpop.permute.xlu0 %633
  %v636 = vmul.f32 %v616, %v634
  %638 = vrot.lane.b32.xlu0 %v571, 32
  %v639 = vpop.permute.xlu0 %638
  %v640 = vsel %vm109, %v639, 0
  %642 = vmatpush.msra.mxu0 0.0
  %643 = vmatpush.msra.mxu0 0.0
  %644 = vmatpush.msra.mxu0 0.0
  %645 = vmatpush.msra.mxu0 0.0
  %646 = vmatpush.msra.mxu0 0.0
  %647 = vmatpush.msra.mxu0 0.0
  %648 = vmatpush.msra.mxu0 0.0
  %649 = vmatpush.msra.mxu0 0.0
  %650 = vmatpush.msra.mxu0 0.0
  %651 = vmatpush.msra.mxu0 0.0
  %652 = vmatpush.msra.mxu0 0.0
  %653 = vmatpush.msra.mxu0 0.0
  %654 = vmatpush.msra.mxu0 %v100
  %655 = vmatpush.msra.mxu0 %v99
  %656 = vmatpush.msra.mxu0 %v98
  %657 = vmatpush.msra.mxu0 %v97
  %658 = vmatmul.f32.gmra.mxu0 %v640
  %v659 = vpop.f32.mrf.mxu0
  %v660 = vadd.f32 0.0, %v659
  %661 = vdwg.mxu0
  %v662 = vadd.f32 %v193, %v660
  %v664 = vrot.slane %v636, 6
  %665 = vrot.lane.b32.xlu0 %v664, 32
  %v666 = vpop.permute.xlu0 %665
  %v667 = vsel %vm109, %v666, 0
  %669 = vmatpush.msra.mxu0 0.0
  %670 = vmatpush.msra.mxu0 0.0
  %671 = vmatpush.msra.mxu0 0.0
  %672 = vmatpush.msra.mxu0 0.0
  %673 = vmatpush.msra.mxu0 0.0
  %674 = vmatpush.msra.mxu0 0.0
  %675 = vmatpush.msra.mxu0 0.0
  %676 = vmatpush.msra.mxu0 0.0
  %677 = vmatpush.msra.mxu0 0.0
  %678 = vmatpush.msra.mxu0 0.0
  %679 = vmatpush.msra.mxu0 0.0
  %680 = vmatpush.msra.mxu0 0.0
  %681 = vmatpush.msra.mxu0 %v96
  %682 = vmatpush.msra.mxu0 %v95
  %683 = vmatpush.msra.mxu0 %v94
  %684 = vmatpush.msra.mxu0 %v93
  %685 = vmatmul.f32.gmra.mxu0 %v667
  %v686 = vpop.f32.mrf.mxu0
  %v687 = vadd.f32 0.0, %v686
  %688 = vdwg.mxu0
  %v689 = vadd.f32 %v662, %v687
  %v690 = vxor.u32 %v689, 2147483648
  %v691 = vmul.f32 %v690, 1.442695
  %v692 = vpow.pop %v691
  %v693 = vadd.f32 %v692, 1.0
  %v694 = vrcp.pop %v693
  %v695 = vmul.f32 %v693, %v694
  %v696 = vsub.f32 1.0, %v695
  %v697 = vmul.f32 %v694, %v696
  %v698 = vadd.f32 %v694, %v697
  %vm699 = vweird.f32 %v693
  %vm700 = vweird.f32 %v694
  %vm701 = vmor %vm699, %vm700
  %v702 = vsel %vm701, %v694, %v698
  %v703 = vand.u32 2147483647, %v693
  %vm704 = vcmp.eq.f32.partialorder %v703, 8.507059e+37
  %v705 = vand.u32 %v693, 2147483648
  %v706 = vor.u32 1.1754944e-38, %v705
  %v707 = vsel %vm704, %v706, %v702
  %v708 = vmul.f32 1.0, %v707
  %v709 = vmul.f32 %v708, %v107
  %v710 = vadd.f32 %v709, %v108
  %v711 = vmul.f32 %v710, %v565
  %713 = vrot.lane.b32.xlu0 %v710, 64
  %v714 = vpop.permute.xlu0 %713
  %v716 = vmul.f32 %v710, %v714
  %718 = vrot.lane.b32.xlu0 %v716, 32
  %v719 = vpop.permute.xlu0 %718
  %v721 = vadd.f32 %v711, %v719
  %v722 = vtanh.pop %v721
  %724 = vrot.lane.b32.xlu0 %v722, 64
  %v725 = vpop.permute.xlu0 %724
  %v727 = vmul.f32 %v710, %v725
  %728 = vmatpush.msra.mxu0 0.0
  %729 = vmatpush.msra.mxu0 0.0
  %730 = vmatpush.msra.mxu0 0.0
  %731 = vmatpush.msra.mxu0 0.0
  %732 = vmatpush.msra.mxu0 0.0
  %733 = vmatpush.msra.mxu0 0.0
  %734 = vmatpush.msra.mxu0 0.0
  %735 = vmatpush.msra.mxu0 0.0
  %736 = vmatpush.msra.mxu0 0.0
  %737 = vmatpush.msra.mxu0 0.0
  %738 = vmatpush.msra.mxu0 0.0
  %739 = vmatpush.msra.mxu0 0.0
  %740 = vmatpush.msra.mxu0 %v91
  %741 = vmatpush.msra.mxu0 %v90
  %742 = vmatpush.msra.mxu0 %v89
  %743 = vmatpush.msra.mxu0 %v88
  %744 = vmatmul.f32.gmra.mxu0 %v667
  %v745 = vpop.f32.mrf.mxu0
  %v746 = vadd.f32 0.0, %v745
  %747 = vdwg.mxu0
  %v748 = vadd.f32 %v82, %v746
  %v749 = vxor.u32 %v748, 2147483648
  %v750 = vmul.f32 %v749, 1.442695
  %v751 = vpow.pop %v750
  %v752 = vadd.f32 %v751, 1.0
  %v753 = vrcp.pop %v752
  %v754 = vmul.f32 %v752, %v753
  %v755 = vsub.f32 1.0, %v754
  %v756 = vmul.f32 %v753, %v755
  %v757 = vadd.f32 %v753, %v756
  %vm758 = vweird.f32 %v752
  %vm759 = vweird.f32 %v753
  %vm760 = vmor %vm758, %vm759
  %v761 = vsel %vm760, %v753, %v757
  %v762 = vand.u32 2147483647, %v752
  %vm763 = vcmp.eq.f32.partialorder %v762, 8.507059e+37
  %v764 = vand.u32 %v752, 2147483648
  %v765 = vor.u32 1.1754944e-38, %v764
  %v766 = vsel %vm763, %v765, %v761
  %v767 = vmul.f32 1.0, %v766
  %v768 = vmul.f32 %v767, %v107
  %v769 = vadd.f32 %v768, %v108
  %v771 = vrot.slane %v630, 6
  %v773 = vmul.f32 %v769, %v771
  %775 = vrot.lane.b32.xlu0 %v769, 64
  %v776 = vpop.permute.xlu0 %775
  %v778 = vmul.f32 %v769, %v776
  %780 = vrot.lane.b32.xlu0 %v778, 32
  %v781 = vpop.permute.xlu0 %780
  %v783 = vadd.f32 %v773, %v781
  %v784 = vtanh.pop %v783
  %786 = vrot.lane.b32.xlu0 %v784, 64
  %v787 = vpop.permute.xlu0 %786
  %v789 = vmul.f32 %v769, %v787
  %791 = vrot.lane.b32.xlu0 %v727, 32
  %v792 = vpop.permute.xlu0 %791
  %v793 = vsel %vm109, %v792, 0
  %795 = vmatpush.msra.mxu0 0.0
  %796 = vmatpush.msra.mxu0 0.0
  %797 = vmatpush.msra.mxu0 0.0
  %798 = vmatpush.msra.mxu0 0.0
  %799 = vmatpush.msra.mxu0 0.0
  %800 = vmatpush.msra.mxu0 0.0
  %801 = vmatpush.msra.mxu0 0.0
  %802 = vmatpush.msra.mxu0 0.0
  %803 = vmatpush.msra.mxu0 0.0
  %804 = vmatpush.msra.mxu0 0.0
  %805 = vmatpush.msra.mxu0 0.0
  %806 = vmatpush.msra.mxu0 0.0
  %807 = vmatpush.msra.mxu0 %v100
  %808 = vmatpush.msra.mxu0 %v99
  %809 = vmatpush.msra.mxu0 %v98
  %810 = vmatpush.msra.mxu0 %v97
  %811 = vmatmul.f32.gmra.mxu0 %v793
  %v812 = vpop.f32.mrf.mxu0
  %v813 = vadd.f32 0.0, %v812
  %814 = vdwg.mxu0
  %v815 = vadd.f32 %v193, %v813
  %817 = vrot.lane.b32.xlu0 %v789, 32
  %v818 = vpop.permute.xlu0 %817
  %v819 = vsel %vm109, %v818, 0
  %821 = vmatpush.msra.mxu0 0.0
  %822 = vmatpush.msra.mxu0 0.0
  %823 = vmatpush.msra.mxu0 0.0
  %824 = vmatpush.msra.mxu0 0.0
  %825 = vmatpush.msra.mxu0 0.0
  %826 = vmatpush.msra.mxu0 0.0
  %827 = vmatpush.msra.mxu0 0.0
  %828 = vmatpush.msra.mxu0 0.0
  %829 = vmatpush.msra.mxu0 0.0
  %830 = vmatpush.msra.mxu0 0.0
  %831 = vmatpush.msra.mxu0 0.0
  %832 = vmatpush.msra.mxu0 0.0
  %833 = vmatpush.msra.mxu0 %v96
  %834 = vmatpush.msra.mxu0 %v95
  %835 = vmatpush.msra.mxu0 %v94
  %836 = vmatpush.msra.mxu0 %v93
  %837 = vmatmul.f32.gmra.mxu0 %v819
  %v838 = vpop.f32.mrf.mxu0
  %v839 = vadd.f32 0.0, %v838
  %840 = vdwg.mxu0
  %v841 = vadd.f32 %v815, %v839
  %v842 = vxor.u32 %v841, 2147483648
  %v843 = vmul.f32 %v842, 1.442695
  %v844 = vpow.pop %v843
  %v845 = vadd.f32 %v844, 1.0
  %v846 = vrcp.pop %v845
  %v847 = vmul.f32 %v845, %v846
  %v848 = vsub.f32 1.0, %v847
  %v849 = vmul.f32 %v846, %v848
  %v850 = vadd.f32 %v846, %v849
  %vm851 = vweird.f32 %v845
  %vm852 = vweird.f32 %v846
  %vm853 = vmor %vm851, %vm852
  %v854 = vsel %vm853, %v846, %v850
  %v855 = vand.u32 2147483647, %v845
  %vm856 = vcmp.eq.f32.partialorder %v855, 8.507059e+37
  %v857 = vand.u32 %v845, 2147483648
  %v858 = vor.u32 1.1754944e-38, %v857
  %v859 = vsel %vm856, %v858, %v854
  %v860 = vmul.f32 1.0, %v859
  %v861 = vmul.f32 %v860, %v107
  %v862 = vadd.f32 %v861, %v108
  %v863 = vmul.f32 %v862, %v721
  %865 = vrot.lane.b32.xlu0 %v862, 64
  %v866 = vpop.permute.xlu0 %865
  %v868 = vmul.f32 %v862, %v866
  %870 = vrot.lane.b32.xlu0 %v868, 32
  %v871 = vpop.permute.xlu0 %870
  %v873 = vadd.f32 %v863, %v871
  %v874 = vtanh.pop %v873
  %876 = vrot.lane.b32.xlu0 %v874, 64
  %v877 = vpop.permute.xlu0 %876
  %v879 = vmul.f32 %v862, %v877
  %880 = vmatpush.msra.mxu0 0.0
  %881 = vmatpush.msra.mxu0 0.0
  %882 = vmatpush.msra.mxu0 0.0
  %883 = vmatpush.msra.mxu0 0.0
  %884 = vmatpush.msra.mxu0 0.0
  %885 = vmatpush.msra.mxu0 0.0
  %886 = vmatpush.msra.mxu0 0.0
  %887 = vmatpush.msra.mxu0 0.0
  %888 = vmatpush.msra.mxu0 0.0
  %889 = vmatpush.msra.mxu0 0.0
  %890 = vmatpush.msra.mxu0 0.0
  %891 = vmatpush.msra.mxu0 0.0
  %892 = vmatpush.msra.mxu0 %v91
  %893 = vmatpush.msra.mxu0 %v90
  %894 = vmatpush.msra.mxu0 %v89
  %895 = vmatpush.msra.mxu0 %v88
  %896 = vmatmul.f32.gmra.mxu0 %v819
  %v897 = vpop.f32.mrf.mxu0
  %v898 = vadd.f32 0.0, %v897
  %899 = vdwg.mxu0
  %v901 = vrot.slane %v898, 6
  %v903 = vadd.f32 %v82, %v901
  %v904 = vxor.u32 %v903, 2147483648
  %v905 = vmul.f32 %v904, 1.442695
  %v906 = vpow.pop %v905
  %v907 = vadd.f32 %v906, 1.0
  %v908 = vrcp.pop %v907
  %v909 = vmul.f32 %v907, %v908
  %v910 = vsub.f32 1.0, %v909
  %v911 = vmul.f32 %v908, %v910
  %v912 = vadd.f32 %v908, %v911
  %vm913 = vweird.f32 %v907
  %vm914 = vweird.f32 %v908
  %vm915 = vmor %vm913, %vm914
  %v916 = vsel %vm915, %v908, %v912
  %v917 = vand.u32 2147483647, %v907
  %vm918 = vcmp.eq.f32.partialorder %v917, 8.507059e+37
  %v919 = vand.u32 %v907, 2147483648
  %v920 = vor.u32 1.1754944e-38, %v919
  %v921 = vsel %vm918, %v920, %v916
  %v922 = vmul.f32 1.0, %v921
  %v923 = vmul.f32 %v922, %v107
  %v924 = vadd.f32 %v923, %v108
  %v926 = vrot.slane %v783, 6
  %v928 = vmul.f32 %v924, %v926
  %930 = vrot.lane.b32.xlu0 %v924, 64
  %v931 = vpop.permute.xlu0 %930
  %v933 = vmul.f32 %v924, %v931
  %935 = vrot.lane.b32.xlu0 %v933, 32
  %v936 = vpop.permute.xlu0 %935
  %v938 = vadd.f32 %v928, %v936
  %v939 = vtanh.pop %v938
  %941 = vrot.lane.b32.xlu0 %v939, 64
  %v942 = vpop.permute.xlu0 %941
  %v944 = vmul.f32 %v924, %v942
  %946 = vrot.lane.b32.xlu0 %v879, 32
  %v947 = vpop.permute.xlu0 %946
  %v948 = vsel %vm109, %v947, 0
  %950 = vmatpush.msra.mxu0 0.0
  %951 = vmatpush.msra.mxu0 0.0
  %952 = vmatpush.msra.mxu0 0.0
  %953 = vmatpush.msra.mxu0 0.0
  %954 = vmatpush.msra.mxu0 0.0
  %955 = vmatpush.msra.mxu0 0.0
  %956 = vmatpush.msra.mxu0 0.0
  %957 = vmatpush.msra.mxu0 0.0
  %958 = vmatpush.msra.mxu0 0.0
  %959 = vmatpush.msra.mxu0 0.0
  %960 = vmatpush.msra.mxu0 0.0
  %961 = vmatpush.msra.mxu0 0.0
  %962 = vmatpush.msra.mxu0 %v100
  %963 = vmatpush.msra.mxu0 %v99
  %964 = vmatpush.msra.mxu0 %v98
  %965 = vmatpush.msra.mxu0 %v97
  %966 = vmatmul.f32.gmra.mxu0 %v948
  %v967 = vpop.f32.mrf.mxu0
  %v968 = vadd.f32 0.0, %v967
  %969 = vdwg.mxu0
  %v970 = vadd.f32 %v193, %v968
  %v972 = vrot.slane %v944, 2
  %973 = vrot.lane.b32.xlu0 %v972, 32
  %v974 = vpop.permute.xlu0 %973
  %v975 = vsel %vm109, %v974, 0
  %977 = vmatpush.msra.mxu0 0.0
  %978 = vmatpush.msra.mxu0 0.0
  %979 = vmatpush.msra.mxu0 0.0
  %980 = vmatpush.msra.mxu0 0.0
  %981 = vmatpush.msra.mxu0 0.0
  %982 = vmatpush.msra.mxu0 0.0
  %983 = vmatpush.msra.mxu0 0.0
  %984 = vmatpush.msra.mxu0 0.0
  %985 = vmatpush.msra.mxu0 0.0
  %986 = vmatpush.msra.mxu0 0.0
  %987 = vmatpush.msra.mxu0 0.0
  %988 = vmatpush.msra.mxu0 0.0
  %989 = vmatpush.msra.mxu0 %v96
  %990 = vmatpush.msra.mxu0 %v95
  %991 = vmatpush.msra.mxu0 %v94
  %992 = vmatpush.msra.mxu0 %v93
  %993 = vmatmul.f32.gmra.mxu0 %v975
  %v994 = vpop.f32.mrf.mxu0
  %v995 = vadd.f32 0.0, %v994
  %996 = vdwg.mxu0
  %v997 = vadd.f32 %v970, %v995
  %v998 = vxor.u32 %v997, 2147483648
  %v999 = vmul.f32 %v998, 1.442695
  %v1000 = vpow.pop %v999
  %v1001 = vadd.f32 %v1000, 1.0
  %v1002 = vrcp.pop %v1001
  %v1003 = vmul.f32 %v1001, %v1002
  %v1004 = vsub.f32 1.0, %v1003
  %v1005 = vmul.f32 %v1002, %v1004
  %v1006 = vadd.f32 %v1002, %v1005
  %vm1007 = vweird.f32 %v1001
  %vm1008 = vweird.f32 %v1002
  %vm1009 = vmor %vm1007, %vm1008
  %v1010 = vsel %vm1009, %v1002, %v1006
  %v1011 = vand.u32 2147483647, %v1001
  %vm1012 = vcmp.eq.f32.partialorder %v1011, 8.507059e+37
  %v1013 = vand.u32 %v1001, 2147483648
  %v1014 = vor.u32 1.1754944e-38, %v1013
  %v1015 = vsel %vm1012, %v1014, %v1010
  %v1016 = vmul.f32 1.0, %v1015
  %v1017 = vmul.f32 %v1016, %v107
  %v1018 = vadd.f32 %v1017, %v108
  %v1019 = vmul.f32 %v1018, %v873
  %1021 = vrot.lane.b32.xlu0 %v1018, 64
  %v1022 = vpop.permute.xlu0 %1021
  %v1024 = vmul.f32 %v1018, %v1022
  %1026 = vrot.lane.b32.xlu0 %v1024, 32
  %v1027 = vpop.permute.xlu0 %1026
  %v1029 = vadd.f32 %v1019, %v1027
  %v1030 = vtanh.pop %v1029
  %1032 = vrot.lane.b32.xlu0 %v1030, 64
  %v1033 = vpop.permute.xlu0 %1032
  %v1035 = vmul.f32 %v1018, %v1033
  %1036 = vmatpush.msra.mxu0 0.0
  %1037 = vmatpush.msra.mxu0 0.0
  %1038 = vmatpush.msra.mxu0 0.0
  %1039 = vmatpush.msra.mxu0 0.0
  %1040 = vmatpush.msra.mxu0 0.0
  %1041 = vmatpush.msra.mxu0 0.0
  %1042 = vmatpush.msra.mxu0 0.0
  %1043 = vmatpush.msra.mxu0 0.0
  %1044 = vmatpush.msra.mxu0 0.0
  %1045 = vmatpush.msra.mxu0 0.0
  %1046 = vmatpush.msra.mxu0 0.0
  %1047 = vmatpush.msra.mxu0 0.0
  %1048 = vmatpush.msra.mxu0 %v91
  %1049 = vmatpush.msra.mxu0 %v90
  %1050 = vmatpush.msra.mxu0 %v89
  %1051 = vmatpush.msra.mxu0 %v88
  %1052 = vmatmul.f32.gmra.mxu0 %v975
  %v1053 = vpop.f32.mrf.mxu0
  %v1054 = vadd.f32 0.0, %v1053
  %1055 = vdwg.mxu0
  %v1057 = vrot.slane %v1054, 4
  %v1059 = vadd.f32 %v82, %v1057
  %v1060 = vxor.u32 %v1059, 2147483648
  %v1061 = vmul.f32 %v1060, 1.442695
  %v1062 = vpow.pop %v1061
  %v1063 = vadd.f32 %v1062, 1.0
  %v1064 = vrcp.pop %v1063
  %v1065 = vmul.f32 %v1063, %v1064
  %v1066 = vsub.f32 1.0, %v1065
  %v1067 = vmul.f32 %v1064, %v1066
  %v1068 = vadd.f32 %v1064, %v1067
  %vm1069 = vweird.f32 %v1063
  %vm1070 = vweird.f32 %v1064
  %vm1071 = vmor %vm1069, %vm1070
  %v1072 = vsel %vm1071, %v1064, %v1068
  %v1073 = vand.u32 2147483647, %v1063
  %vm1074 = vcmp.eq.f32.partialorder %v1073, 8.507059e+37
  %v1075 = vand.u32 %v1063, 2147483648
  %v1076 = vor.u32 1.1754944e-38, %v1075
  %v1077 = vsel %vm1074, %v1076, %v1072
  %v1078 = vmul.f32 1.0, %v1077
  %v1079 = vmul.f32 %v1078, %v107
  %v1080 = vadd.f32 %v1079, %v108
  %v1082 = vrot.slane %v938, 6
  %v1084 = vmul.f32 %v1080, %v1082
  %1086 = vrot.lane.b32.xlu0 %v1080, 64
  %v1087 = vpop.permute.xlu0 %1086
  %v1089 = vmul.f32 %v1080, %v1087
  %1091 = vrot.lane.b32.xlu0 %v1089, 32
  %v1092 = vpop.permute.xlu0 %1091
  %v1094 = vadd.f32 %v1084, %v1092
  %v1095 = vtanh.pop %v1094
  %1097 = vrot.lane.b32.xlu0 %v1095, 64
  %v1098 = vpop.permute.xlu0 %1097
  %v1100 = vmul.f32 %v1080, %v1098
  %1102 = vrot.lane.b32.xlu0 %v1035, 32
  %v1103 = vpop.permute.xlu0 %1102
  %v1104 = vsel %vm109, %v1103, 0
  %1106 = vmatpush.msra.mxu0 0.0
  %1107 = vmatpush.msra.mxu0 0.0
  %1108 = vmatpush.msra.mxu0 0.0
  %1109 = vmatpush.msra.mxu0 0.0
  %1110 = vmatpush.msra.mxu0 0.0
  %1111 = vmatpush.msra.mxu0 0.0
  %1112 = vmatpush.msra.mxu0 0.0
  %1113 = vmatpush.msra.mxu0 0.0
  %1114 = vmatpush.msra.mxu0 0.0
  %1115 = vmatpush.msra.mxu0 0.0
  %1116 = vmatpush.msra.mxu0 0.0
  %1117 = vmatpush.msra.mxu0 0.0
  %1118 = vmatpush.msra.mxu0 %v100
  %1119 = vmatpush.msra.mxu0 %v99
  %1120 = vmatpush.msra.mxu0 %v98
  %1121 = vmatpush.msra.mxu0 %v97
  %1122 = vmatmul.f32.gmra.mxu0 %v1104
  %v1123 = vpop.f32.mrf.mxu0
  %v1124 = vadd.f32 0.0, %v1123
  %1125 = vdwg.mxu0
  %v1126 = vadd.f32 %v193, %v1124
  %v1128 = vrot.slane %v1100, 4
  %1129 = vrot.lane.b32.xlu0 %v1128, 32
  %v1130 = vpop.permute.xlu0 %1129
  %v1131 = vsel %vm109, %v1130, 0
  %1133 = vmatpush.msra.mxu0 0.0
  %1134 = vmatpush.msra.mxu0 0.0
  %1135 = vmatpush.msra.mxu0 0.0
  %1136 = vmatpush.msra.mxu0 0.0
  %1137 = vmatpush.msra.mxu0 0.0
  %1138 = vmatpush.msra.mxu0 0.0
  %1139 = vmatpush.msra.mxu0 0.0
  %1140 = vmatpush.msra.mxu0 0.0
  %1141 = vmatpush.msra.mxu0 0.0
  %1142 = vmatpush.msra.mxu0 0.0
  %1143 = vmatpush.msra.mxu0 0.0
  %1144 = vmatpush.msra.mxu0 0.0
  %1145 = vmatpush.msra.mxu0 %v96
  %1146 = vmatpush.msra.mxu0 %v95
  %1147 = vmatpush.msra.mxu0 %v94
  %1148 = vmatpush.msra.mxu0 %v93
  %1149 = vmatmul.f32.gmra.mxu0 %v1131
  %v1150 = vpop.f32.mrf.mxu0
  %v1151 = vadd.f32 0.0, %v1150
  %1152 = vdwg.mxu0
  %v1153 = vadd.f32 %v1126, %v1151
  %v1154 = vxor.u32 %v1153, 2147483648
  %v1155 = vmul.f32 %v1154, 1.442695
  %v1156 = vpow.pop %v1155
  %v1157 = vadd.f32 %v1156, 1.0
  %v1158 = vrcp.pop %v1157
  %v1159 = vmul.f32 %v1157, %v1158
  %v1160 = vsub.f32 1.0, %v1159
  %v1161 = vmul.f32 %v1158, %v1160
  %v1162 = vadd.f32 %v1158, %v1161
  %vm1163 = vweird.f32 %v1157
  %vm1164 = vweird.f32 %v1158
  %vm1165 = vmor %vm1163, %vm1164
  %v1166 = vsel %vm1165, %v1158, %v1162
  %v1167 = vand.u32 2147483647, %v1157
  %vm1168 = vcmp.eq.f32.partialorder %v1167, 8.507059e+37
  %v1169 = vand.u32 %v1157, 2147483648
  %v1170 = vor.u32 1.1754944e-38, %v1169
  %v1171 = vsel %vm1168, %v1170, %v1166
  %v1172 = vmul.f32 1.0, %v1171
  %v1173 = vmul.f32 %v1172, %v107
  %v1174 = vadd.f32 %v1173, %v108
  %v1175 = vmul.f32 %v1174, %v1029
  %1177 = vrot.lane.b32.xlu0 %v1174, 64
  %v1178 = vpop.permute.xlu0 %1177
  %v1180 = vmul.f32 %v1174, %v1178
  %1182 = vrot.lane.b32.xlu0 %v1180, 32
  %v1183 = vpop.permute.xlu0 %1182
  %v1185 = vadd.f32 %v1175, %v1183
  %v1186 = vtanh.pop %v1185
  %1188 = vrot.lane.b32.xlu0 %v1186, 64
  %v1189 = vpop.permute.xlu0 %1188
  %v1191 = vmul.f32 %v1174, %v1189
  %1192 = vmatpush.msra.mxu0 0.0
  %1193 = vmatpush.msra.mxu0 0.0
  %1194 = vmatpush.msra.mxu0 0.0
  %1195 = vmatpush.msra.mxu0 0.0
  %1196 = vmatpush.msra.mxu0 0.0
  %1197 = vmatpush.msra.mxu0 0.0
  %1198 = vmatpush.msra.mxu0 0.0
  %1199 = vmatpush.msra.mxu0 0.0
  %1200 = vmatpush.msra.mxu0 0.0
  %1201 = vmatpush.msra.mxu0 0.0
  %1202 = vmatpush.msra.mxu0 0.0
  %1203 = vmatpush.msra.mxu0 0.0
  %1204 = vmatpush.msra.mxu0 %v91
  %1205 = vmatpush.msra.mxu0 %v90
  %1206 = vmatpush.msra.mxu0 %v89
  %1207 = vmatpush.msra.mxu0 %v88
  %1208 = vmatmul.f32.gmra.mxu0 %v1131
  %v1209 = vpop.f32.mrf.mxu0
  %v1210 = vadd.f32 0.0, %v1209
  %1211 = vdwg.mxu0
  %v1213 = vrot.slane %v1210, 2
  %v1215 = vadd.f32 %v82, %v1213
  %v1216 = vxor.u32 %v1215, 2147483648
  %v1217 = vmul.f32 %v1216, 1.442695
  %v1218 = vpow.pop %v1217
  %v1219 = vadd.f32 %v1218, 1.0
  %v1220 = vrcp.pop %v1219
  %v1221 = vmul.f32 %v1219, %v1220
  %v1222 = vsub.f32 1.0, %v1221
  %v1223 = vmul.f32 %v1220, %v1222
  %v1224 = vadd.f32 %v1220, %v1223
  %vm1225 = vweird.f32 %v1219
  %vm1226 = vweird.f32 %v1220
  %vm1227 = vmor %vm1225, %vm1226
  %v1228 = vsel %vm1227, %v1220, %v1224
  %v1229 = vand.u32 2147483647, %v1219
  %vm1230 = vcmp.eq.f32.partialorder %v1229, 8.507059e+37
  %v1231 = vand.u32 %v1219, 2147483648
  %v1232 = vor.u32 1.1754944e-38, %v1231
  %v1233 = vsel %vm1230, %v1232, %v1228
  %v1234 = vmul.f32 1.0, %v1233
  %v1235 = vmul.f32 %v1234, %v107
  %v1236 = vadd.f32 %v1235, %v108
  %v1238 = vrot.slane %v1094, 6
  %v1240 = vmul.f32 %v1236, %v1238
  %1242 = vrot.lane.b32.xlu0 %v1236, 64
  %v1243 = vpop.permute.xlu0 %1242
  %v1245 = vmul.f32 %v1236, %v1243
  %1247 = vrot.lane.b32.xlu0 %v1245, 32
  %v1248 = vpop.permute.xlu0 %1247
  %v1250 = vadd.f32 %v1240, %v1248
  %v1251 = vtanh.pop %v1250
  %1253 = vrot.lane.b32.xlu0 %v1251, 64
  %v1254 = vpop.permute.xlu0 %1253
  %v1256 = vmul.f32 %v1236, %v1254
  %1258 = vrot.lane.b32.xlu0 %v1191, 32
  %v1259 = vpop.permute.xlu0 %1258
  %v1260 = vsel %vm109, %v1259, 0
  %1262 = vmatpush.msra.mxu0 0.0
  %1263 = vmatpush.msra.mxu0 0.0
  %1264 = vmatpush.msra.mxu0 0.0
  %1265 = vmatpush.msra.mxu0 0.0
  %1266 = vmatpush.msra.mxu0 0.0
  %1267 = vmatpush.msra.mxu0 0.0
  %1268 = vmatpush.msra.mxu0 0.0
  %1269 = vmatpush.msra.mxu0 0.0
  %1270 = vmatpush.msra.mxu0 0.0
  %1271 = vmatpush.msra.mxu0 0.0
  %1272 = vmatpush.msra.mxu0 0.0
  %1273 = vmatpush.msra.mxu0 0.0
  %1274 = vmatpush.msra.mxu0 %v100
  %1275 = vmatpush.msra.mxu0 %v99
  %1276 = vmatpush.msra.mxu0 %v98
  %1277 = vmatpush.msra.mxu0 %v97
  %1278 = vmatmul.f32.gmra.mxu0 %v1260
  %v1279 = vpop.f32.mrf.mxu0
  %v1280 = vadd.f32 0.0, %v1279
  %1281 = vdwg.mxu0
  %v1282 = vadd.f32 %v193, %v1280
  %v1284 = vrot.slane %v1256, 6
  %1285 = vrot.lane.b32.xlu0 %v1284, 32
  %v1286 = vpop.permute.xlu0 %1285
  %v1287 = vsel %vm109, %v1286, 0
  %1289 = vmatpush.msra.mxu0 0.0
  %1290 = vmatpush.msra.mxu0 0.0
  %1291 = vmatpush.msra.mxu0 0.0
  %1292 = vmatpush.msra.mxu0 0.0
  %1293 = vmatpush.msra.mxu0 0.0
  %1294 = vmatpush.msra.mxu0 0.0
  %1295 = vmatpush.msra.mxu0 0.0
  %1296 = vmatpush.msra.mxu0 0.0
  %1297 = vmatpush.msra.mxu0 0.0
  %1298 = vmatpush.msra.mxu0 0.0
  %1299 = vmatpush.msra.mxu0 0.0
  %1300 = vmatpush.msra.mxu0 0.0
  %1301 = vmatpush.msra.mxu0 %v96
  %1302 = vmatpush.msra.mxu0 %v95
  %1303 = vmatpush.msra.mxu0 %v94
  %1304 = vmatpush.msra.mxu0 %v93
  %1305 = vmatmul.f32.gmra.mxu0 %v1287
  %v1306 = vpop.f32.mrf.mxu0
  %v1307 = vadd.f32 0.0, %v1306
  %1308 = vdwg.mxu0
  %v1309 = vadd.f32 %v1282, %v1307
  %v1310 = vxor.u32 %v1309, 2147483648
  %v1311 = vmul.f32 %v1310, 1.442695
  %v1312 = vpow.pop %v1311
  %v1313 = vadd.f32 %v1312, 1.0
  %v1314 = vrcp.pop %v1313
  %v1315 = vmul.f32 %v1313, %v1314
  %v1316 = vsub.f32 1.0, %v1315
  %v1317 = vmul.f32 %v1314, %v1316
  %v1318 = vadd.f32 %v1314, %v1317
  %vm1319 = vweird.f32 %v1313
  %vm1320 = vweird.f32 %v1314
  %vm1321 = vmor %vm1319, %vm1320
  %v1322 = vsel %vm1321, %v1314, %v1318
  %v1323 = vand.u32 2147483647, %v1313
  %vm1324 = vcmp.eq.f32.partialorder %v1323, 8.507059e+37
  %v1325 = vand.u32 %v1313, 2147483648
  %v1326 = vor.u32 1.1754944e-38, %v1325
  %v1327 = vsel %vm1324, %v1326, %v1322
  %v1328 = vmul.f32 1.0, %v1327
  %v1329 = vmul.f32 %v1328, %v107
  %v1330 = vadd.f32 %v1329, %v108
  %v1331 = vmul.f32 %v1330, %v1185
  %1333 = vrot.lane.b32.xlu0 %v1330, 64
  %v1334 = vpop.permute.xlu0 %1333
  %v1336 = vmul.f32 %v1330, %v1334
  %1338 = vrot.lane.b32.xlu0 %v1336, 32
  %v1339 = vpop.permute.xlu0 %1338
  %v1341 = vadd.f32 %v1331, %v1339
  %v1342 = vtanh.pop %v1341
  %1344 = vrot.lane.b32.xlu0 %v1342, 64
  %v1345 = vpop.permute.xlu0 %1344
  %v1347 = vmul.f32 %v1330, %v1345
  %1349 = vrot.lane.b32.xlu0 %v1347, 32
  %v1350 = vpop.permute.xlu0 %1349
  %vm1352 = vcmask 254976
  %1353 = vst.msk [vmem:[#allocation2] sm:$0x3] %vm1352, %v1350
  %1354 = vmatpush.msra.mxu0 0.0
  %1355 = vmatpush.msra.mxu0 0.0
  %1356 = vmatpush.msra.mxu0 0.0
  %1357 = vmatpush.msra.mxu0 0.0
  %1358 = vmatpush.msra.mxu0 0.0
  %1359 = vmatpush.msra.mxu0 0.0
  %1360 = vmatpush.msra.mxu0 0.0
  %1361 = vmatpush.msra.mxu0 0.0
  %1362 = vmatpush.msra.mxu0 0.0
  %1363 = vmatpush.msra.mxu0 0.0
  %1364 = vmatpush.msra.mxu0 0.0
  %1365 = vmatpush.msra.mxu0 0.0
  %1366 = vmatpush.msra.mxu0 %v91
  %1367 = vmatpush.msra.mxu0 %v90
  %1368 = vmatpush.msra.mxu0 %v89
  %1369 = vmatpush.msra.mxu0 %v88
  %1370 = vmatmul.f32.gmra.mxu0 %v1287
  %v1371 = vpop.f32.mrf.mxu0
  %v1372 = vadd.f32 0.0, %v1371
  %1373 = vdwg.mxu0
  %v1375 = vperm.slane %v92, 0
  %v1377 = vadd.f32 %v1375, %v1372
  %v1378 = vsel %vm109, %v1350, 0
  %1380 = vmatpush.msra.mxu0 0.0
  %1381 = vmatpush.msra.mxu0 0.0
  %1382 = vmatpush.msra.mxu0 0.0
  %1383 = vmatpush.msra.mxu0 0.0
  %1384 = vmatpush.msra.mxu0 0.0
  %1385 = vmatpush.msra.mxu0 0.0
  %1386 = vmatpush.msra.mxu0 0.0
  %1387 = vmatpush.msra.mxu0 0.0
  %1388 = vmatpush.msra.mxu0 0.0
  %1389 = vmatpush.msra.mxu0 0.0
  %1390 = vmatpush.msra.mxu0 0.0
  %1391 = vmatpush.msra.mxu0 0.0
  %1392 = vmatpush.msra.mxu0 %v87
  %1393 = vmatpush.msra.mxu0 %v86
  %1394 = vmatpush.msra.mxu0 %v85
  %1395 = vmatpush.msra.mxu0 %v84
  %1396 = vmatmul.f32.gmra.mxu0 %v1378
  %v1397 = vpop.f32.mrf.mxu0
  %v1398 = vadd.f32 0.0, %v1397
  %1399 = vdwg.mxu0
  %v1400 = vadd.f32 %v1377, %v1398
  %v1401 = vxor.u32 %v1400, 2147483648
  %v1402 = vmul.f32 %v1401, 1.442695
  %v1403 = vpow.pop %v1402
  %v1404 = vadd.f32 %v1403, 1.0
  %v1405 = vrcp.pop %v1404
  %v1406 = vmul.f32 %v1404, %v1405
  %v1407 = vsub.f32 1.0, %v1406
  %v1408 = vmul.f32 %v1405, %v1407
  %v1409 = vadd.f32 %v1405, %v1408
  %vm1410 = vweird.f32 %v1404
  %vm1411 = vweird.f32 %v1405
  %vm1412 = vmor %vm1410, %vm1411
  %v1413 = vsel %vm1412, %v1405, %v1409
  %v1414 = vand.u32 2147483647, %v1404
  %vm1415 = vcmp.eq.f32.partialorder %v1414, 8.507059e+37
  %v1416 = vand.u32 %v1404, 2147483648
  %v1417 = vor.u32 1.1754944e-38, %v1416
  %v1418 = vsel %vm1415, %v1417, %v1413
  %v1419 = vmul.f32 1.0, %v1418
  %v1420 = vmul.f32 %v1419, %v107
  %v1421 = vadd.f32 %v1420, %v108
  %v1423 = vrot.slane %v1250, 6
  %v1425 = vmul.f32 %v1421, %v1423
  %1427 = vrot.lane.b32.xlu0 %v1421, 64
  %v1428 = vpop.permute.xlu0 %1427
  %v1430 = vmul.f32 %v1421, %v1428
  %1432 = vrot.lane.b32.xlu0 %v1430, 32
  %v1433 = vpop.permute.xlu0 %1432
  %v1435 = vadd.f32 %v1425, %v1433
  %v1436 = vtanh.pop %v1435
  %1438 = vrot.lane.b32.xlu0 %v1436, 64
  %v1439 = vpop.permute.xlu0 %1438
  %v1441 = vmul.f32 %v1421, %v1439
  %1442 = vmatpush.msra.mxu0 0.0
  %1443 = vmatpush.msra.mxu0 0.0
  %1444 = vmatpush.msra.mxu0 0.0
  %1445 = vmatpush.msra.mxu0 0.0
  %1446 = vmatpush.msra.mxu0 0.0
  %1447 = vmatpush.msra.mxu0 0.0
  %1448 = vmatpush.msra.mxu0 0.0
  %1449 = vmatpush.msra.mxu0 0.0
  %1450 = vmatpush.msra.mxu0 0.0
  %1451 = vmatpush.msra.mxu0 0.0
  %1452 = vmatpush.msra.mxu0 0.0
  %1453 = vmatpush.msra.mxu0 0.0
  %1454 = vmatpush.msra.mxu0 %v100
  %1455 = vmatpush.msra.mxu0 %v99
  %1456 = vmatpush.msra.mxu0 %v98
  %1457 = vmatpush.msra.mxu0 %v97
  %1458 = vmatmul.f32.gmra.mxu0 %v1378
  %v1459 = vpop.f32.mrf.mxu0
  %v1460 = vadd.f32 0.0, %v1459
  %1461 = vdwg.mxu0
  %v1462 = vadd.f32 %v193, %v1460
  %1464 = vrot.lane.b32.xlu0 %v1441, 32
  %v1465 = vpop.permute.xlu0 %1464
  %v1466 = vsel %vm109, %v1465, 0
  %1468 = vmatpush.msra.mxu0 0.0
  %1469 = vmatpush.msra.mxu0 0.0
  %1470 = vmatpush.msra.mxu0 0.0
  %1471 = vmatpush.msra.mxu0 0.0
  %1472 = vmatpush.msra.mxu0 0.0
  %1473 = vmatpush.msra.mxu0 0.0
  %1474 = vmatpush.msra.mxu0 0.0
  %1475 = vmatpush.msra.mxu0 0.0
  %1476 = vmatpush.msra.mxu0 0.0
  %1477 = vmatpush.msra.mxu0 0.0
  %1478 = vmatpush.msra.mxu0 0.0
  %1479 = vmatpush.msra.mxu0 0.0
  %1480 = vmatpush.msra.mxu0 %v96
  %1481 = vmatpush.msra.mxu0 %v95
  %1482 = vmatpush.msra.mxu0 %v94
  %1483 = vmatpush.msra.mxu0 %v93
  %1484 = vmatmul.f32.gmra.mxu0 %v1466
  %v1485 = vpop.f32.mrf.mxu0
  %v1486 = vadd.f32 0.0, %v1485
  %1487 = vdwg.mxu0
  %v1488 = vadd.f32 %v1462, %v1486
  %v1489 = vxor.u32 %v1488, 2147483648
  %v1490 = vmul.f32 %v1489, 1.442695
  %v1491 = vpow.pop %v1490
  %v1492 = vadd.f32 %v1491, 1.0
  %v1493 = vrcp.pop %v1492
  %v1494 = vmul.f32 %v1492, %v1493
  %v1495 = vsub.f32 1.0, %v1494
  %v1496 = vmul.f32 %v1493, %v1495
  %v1497 = vadd.f32 %v1493, %v1496
  %vm1498 = vweird.f32 %v1492
  %vm1499 = vweird.f32 %v1493
  %vm1500 = vmor %vm1498, %vm1499
  %v1501 = vsel %vm1500, %v1493, %v1497
  %v1502 = vand.u32 2147483647, %v1492
  %vm1503 = vcmp.eq.f32.partialorder %v1502, 8.507059e+37
  %v1504 = vand.u32 %v1492, 2147483648
  %v1505 = vor.u32 1.1754944e-38, %v1504
  %v1506 = vsel %vm1503, %v1505, %v1501
  %v1507 = vmul.f32 1.0, %v1506
  %v1508 = vmul.f32 %v1507, %v107
  %v1509 = vadd.f32 %v1508, %v108
  %v1510 = vmul.f32 %v1509, %v1341
  %1512 = vrot.lane.b32.xlu0 %v1509, 64
  %v1513 = vpop.permute.xlu0 %1512
  %v1515 = vmul.f32 %v1509, %v1513
  %1517 = vrot.lane.b32.xlu0 %v1515, 32
  %v1518 = vpop.permute.xlu0 %1517
  %v1520 = vadd.f32 %v1510, %v1518
  %v1521 = vtanh.pop %v1520
  %1523 = vrot.lane.b32.xlu0 %v1521, 64
  %v1524 = vpop.permute.xlu0 %1523
  %v1526 = vmul.f32 %v1509, %v1524
  %1528 = vrot.lane.b32.xlu0 %v1526, 32
  %v1529 = vpop.permute.xlu0 %1528
  %1531 = vst.msk [vmem:[#allocation2 + $0x2] sm:$0x3] %vm1352, %v1529
  %1532 = vmatpush.msra.mxu0 0.0
  %1533 = vmatpush.msra.mxu0 0.0
  %1534 = vmatpush.msra.mxu0 0.0
  %1535 = vmatpush.msra.mxu0 0.0
  %1536 = vmatpush.msra.mxu0 0.0
  %1537 = vmatpush.msra.mxu0 0.0
  %1538 = vmatpush.msra.mxu0 0.0
  %1539 = vmatpush.msra.mxu0 0.0
  %1540 = vmatpush.msra.mxu0 0.0
  %1541 = vmatpush.msra.mxu0 0.0
  %1542 = vmatpush.msra.mxu0 0.0
  %1543 = vmatpush.msra.mxu0 0.0
  %1544 = vmatpush.msra.mxu0 %v91
  %1545 = vmatpush.msra.mxu0 %v90
  %1546 = vmatpush.msra.mxu0 %v89
  %1547 = vmatpush.msra.mxu0 %v88
  %1548 = vmatmul.f32.gmra.mxu0 %v1466
  %v1549 = vpop.f32.mrf.mxu0
  %v1550 = vadd.f32 0.0, %v1549
  %1551 = vdwg.mxu0
  %v1552 = vadd.f32 %v1375, %v1550
  %v1553 = vsel %vm109, %v1529, 0
  %1555 = vmatpush.msra.mxu0 0.0
  %1556 = vmatpush.msra.mxu0 0.0
  %1557 = vmatpush.msra.mxu0 0.0
  %1558 = vmatpush.msra.mxu0 0.0
  %1559 = vmatpush.msra.mxu0 0.0
  %1560 = vmatpush.msra.mxu0 0.0
  %1561 = vmatpush.msra.mxu0 0.0
  %1562 = vmatpush.msra.mxu0 0.0
  %1563 = vmatpush.msra.mxu0 0.0
  %1564 = vmatpush.msra.mxu0 0.0
  %1565 = vmatpush.msra.mxu0 0.0
  %1566 = vmatpush.msra.mxu0 0.0
  %1567 = vmatpush.msra.mxu0 %v87
  %1568 = vmatpush.msra.mxu0 %v86
  %1569 = vmatpush.msra.mxu0 %v85
  %1570 = vmatpush.msra.mxu0 %v84
  %1571 = vmatmul.f32.gmra.mxu0 %v1553
  %v1572 = vpop.f32.mrf.mxu0
  %v1573 = vadd.f32 0.0, %v1572
  %1574 = vdwg.mxu0
  %v1575 = vadd.f32 %v1552, %v1573
  %v1576 = vxor.u32 %v1575, 2147483648
  %v1577 = vmul.f32 %v1576, 1.442695
  %v1578 = vpow.pop %v1577
  %v1579 = vadd.f32 %v1578, 1.0
  %v1580 = vrcp.pop %v1579
  %v1581 = vmul.f32 %v1579, %v1580
  %v1582 = vsub.f32 1.0, %v1581
  %v1583 = vmul.f32 %v1580, %v1582
  %v1584 = vadd.f32 %v1580, %v1583
  %vm1585 = vweird.f32 %v1579
  %vm1586 = vweird.f32 %v1580
  %vm1587 = vmor %vm1585, %vm1586
  %v1588 = vsel %vm1587, %v1580, %v1584
  %v1589 = vand.u32 2147483647, %v1579
  %vm1590 = vcmp.eq.f32.partialorder %v1589, 8.507059e+37
  %v1591 = vand.u32 %v1579, 2147483648
  %v1592 = vor.u32 1.1754944e-38, %v1591
  %v1593 = vsel %vm1590, %v1592, %v1588
  %v1594 = vmul.f32 1.0, %v1593
  %v1595 = vmul.f32 %v1594, %v107
  %v1596 = vadd.f32 %v1595, %v108
  %v1597 = vmul.f32 %v1596, %v1435
  %1599 = vrot.lane.b32.xlu0 %v1596, 64
  %v1600 = vpop.permute.xlu0 %1599
  %v1602 = vmul.f32 %v1596, %v1600
  %1604 = vrot.lane.b32.xlu0 %v1602, 32
  %v1605 = vpop.permute.xlu0 %1604
  %v1607 = vadd.f32 %v1597, %v1605
  %v1608 = vtanh.pop %v1607
  %1610 = vrot.lane.b32.xlu0 %v1608, 64
  %v1611 = vpop.permute.xlu0 %1610
  %v1613 = vmul.f32 %v1596, %v1611
  %1614 = vmatpush.msra.mxu0 0.0
  %1615 = vmatpush.msra.mxu0 0.0
  %1616 = vmatpush.msra.mxu0 0.0
  %1617 = vmatpush.msra.mxu0 0.0
  %1618 = vmatpush.msra.mxu0 0.0
  %1619 = vmatpush.msra.mxu0 0.0
  %1620 = vmatpush.msra.mxu0 0.0
  %1621 = vmatpush.msra.mxu0 0.0
  %1622 = vmatpush.msra.mxu0 0.0
  %1623 = vmatpush.msra.mxu0 0.0
  %1624 = vmatpush.msra.mxu0 0.0
  %1625 = vmatpush.msra.mxu0 0.0
  %1626 = vmatpush.msra.mxu0 %v100
  %1627 = vmatpush.msra.mxu0 %v99
  %1628 = vmatpush.msra.mxu0 %v98
  %1629 = vmatpush.msra.mxu0 %v97
  %1630 = vmatmul.f32.gmra.mxu0 %v1553
  %v1631 = vpop.f32.mrf.mxu0
  %v1632 = vadd.f32 0.0, %v1631
  %1633 = vdwg.mxu0
  %v1634 = vadd.f32 %v193, %v1632
  %1636 = vrot.lane.b32.xlu0 %v1613, 32
  %v1637 = vpop.permute.xlu0 %1636
  %v1638 = vsel %vm109, %v1637, 0
  %1640 = vmatpush.msra.mxu0 0.0
  %1641 = vmatpush.msra.mxu0 0.0
  %1642 = vmatpush.msra.mxu0 0.0
  %1643 = vmatpush.msra.mxu0 0.0
  %1644 = vmatpush.msra.mxu0 0.0
  %1645 = vmatpush.msra.mxu0 0.0
  %1646 = vmatpush.msra.mxu0 0.0
  %1647 = vmatpush.msra.mxu0 0.0
  %1648 = vmatpush.msra.mxu0 0.0
  %1649 = vmatpush.msra.mxu0 0.0
  %1650 = vmatpush.msra.mxu0 0.0
  %1651 = vmatpush.msra.mxu0 0.0
  %1652 = vmatpush.msra.mxu0 %v96
  %1653 = vmatpush.msra.mxu0 %v95
  %1654 = vmatpush.msra.mxu0 %v94
  %1655 = vmatpush.msra.mxu0 %v93
  %1656 = vmatmul.f32.gmra.mxu0 %v1638
  %v1657 = vpop.f32.mrf.mxu0
  %v1658 = vadd.f32 0.0, %v1657
  %1659 = vdwg.mxu0
  %v1660 = vadd.f32 %v1634, %v1658
  %v1661 = vxor.u32 %v1660, 2147483648
  %v1662 = vmul.f32 %v1661, 1.442695
  %v1663 = vpow.pop %v1662
  %v1664 = vadd.f32 %v1663, 1.0
  %v1665 = vrcp.pop %v1664
  %v1666 = vmul.f32 %v1664, %v1665
  %v1667 = vsub.f32 1.0, %v1666
  %v1668 = vmul.f32 %v1665, %v1667
  %v1669 = vadd.f32 %v1665, %v1668
  %vm1670 = vweird.f32 %v1664
  %vm1671 = vweird.f32 %v1665
  %vm1672 = vmor %vm1670, %vm1671
  %v1673 = vsel %vm1672, %v1665, %v1669
  %v1674 = vand.u32 2147483647, %v1664
  %vm1675 = vcmp.eq.f32.partialorder %v1674, 8.507059e+37
  %v1676 = vand.u32 %v1664, 2147483648
  %v1677 = vor.u32 1.1754944e-38, %v1676
  %v1678 = vsel %vm1675, %v1677, %v1673
  %v1679 = vmul.f32 1.0, %v1678
  %v1680 = vmul.f32 %v1679, %v107
  %v1681 = vadd.f32 %v1680, %v108
  %v1682 = vmul.f32 %v1681, %v1520
  %1684 = vrot.lane.b32.xlu0 %v1681, 64
  %v1685 = vpop.permute.xlu0 %1684
  %v1687 = vmul.f32 %v1681, %v1685
  %1689 = vrot.lane.b32.xlu0 %v1687, 32
  %v1690 = vpop.permute.xlu0 %1689
  %v1692 = vadd.f32 %v1682, %v1690
  %v1693 = vtanh.pop %v1692
  %1695 = vrot.lane.b32.xlu0 %v1693, 64
  %v1696 = vpop.permute.xlu0 %1695
  %v1698 = vmul.f32 %v1681, %v1696
  %1700 = vrot.lane.b32.xlu0 %v1698, 32
  %v1701 = vpop.permute.xlu0 %1700
  %1703 = vst.msk [vmem:[#allocation2 + $0x4] sm:$0x3] %vm1352, %v1701
  %1704 = vmatpush.msra.mxu0 0.0
  %1705 = vmatpush.msra.mxu0 0.0
  %1706 = vmatpush.msra.mxu0 0.0
  %1707 = vmatpush.msra.mxu0 0.0
  %1708 = vmatpush.msra.mxu0 0.0
  %1709 = vmatpush.msra.mxu0 0.0
  %1710 = vmatpush.msra.mxu0 0.0
  %1711 = vmatpush.msra.mxu0 0.0
  %1712 = vmatpush.msra.mxu0 0.0
  %1713 = vmatpush.msra.mxu0 0.0
  %1714 = vmatpush.msra.mxu0 0.0
  %1715 = vmatpush.msra.mxu0 0.0
  %1716 = vmatpush.msra.mxu0 %v91
  %1717 = vmatpush.msra.mxu0 %v90
  %1718 = vmatpush.msra.mxu0 %v89
  %1719 = vmatpush.msra.mxu0 %v88
  %1720 = vmatmul.f32.gmra.mxu0 %v1638
  %v1721 = vpop.f32.mrf.mxu0
  %v1722 = vadd.f32 0.0, %v1721
  %1723 = vdwg.mxu0
  %v1724 = vadd.f32 %v1375, %v1722
  %v1725 = vsel %vm109, %v1701, 0
  %1727 = vmatpush.msra.mxu0 0.0
  %1728 = vmatpush.msra.mxu0 0.0
  %1729 = vmatpush.msra.mxu0 0.0
  %1730 = vmatpush.msra.mxu0 0.0
  %1731 = vmatpush.msra.mxu0 0.0
  %1732 = vmatpush.msra.mxu0 0.0
  %1733 = vmatpush.msra.mxu0 0.0
  %1734 = vmatpush.msra.mxu0 0.0
  %1735 = vmatpush.msra.mxu0 0.0
  %1736 = vmatpush.msra.mxu0 0.0
  %1737 = vmatpush.msra.mxu0 0.0
  %1738 = vmatpush.msra.mxu0 0.0
  %1739 = vmatpush.msra.mxu0 %v87
  %1740 = vmatpush.msra.mxu0 %v86
  %1741 = vmatpush.msra.mxu0 %v85
  %1742 = vmatpush.msra.mxu0 %v84
  %1743 = vmatmul.f32.gmra.mxu0 %v1725
  %v1744 = vpop.f32.mrf.mxu0
  %v1745 = vadd.f32 0.0, %v1744
  %1746 = vdwg.mxu0
  %v1747 = vadd.f32 %v1724, %v1745
  %v1748 = vxor.u32 %v1747, 2147483648
  %v1749 = vmul.f32 %v1748, 1.442695
  %v1750 = vpow.pop %v1749
  %v1751 = vadd.f32 %v1750, 1.0
  %v1752 = vrcp.pop %v1751
  %v1753 = vmul.f32 %v1751, %v1752
  %v1754 = vsub.f32 1.0, %v1753
  %v1755 = vmul.f32 %v1752, %v1754
  %v1756 = vadd.f32 %v1752, %v1755
  %vm1757 = vweird.f32 %v1751
  %vm1758 = vweird.f32 %v1752
  %vm1759 = vmor %vm1757, %vm1758
  %v1760 = vsel %vm1759, %v1752, %v1756
  %v1761 = vand.u32 2147483647, %v1751
  %vm1762 = vcmp.eq.f32.partialorder %v1761, 8.507059e+37
  %v1763 = vand.u32 %v1751, 2147483648
  %v1764 = vor.u32 1.1754944e-38, %v1763
  %v1765 = vsel %vm1762, %v1764, %v1760
  %v1766 = vmul.f32 1.0, %v1765
  %v1767 = vmul.f32 %v1766, %v107
  %v1768 = vadd.f32 %v1767, %v108
  %v1769 = vmul.f32 %v1768, %v1607
  %1771 = vrot.lane.b32.xlu0 %v1768, 64
  %v1772 = vpop.permute.xlu0 %1771
  %v1774 = vmul.f32 %v1768, %v1772
  %1776 = vrot.lane.b32.xlu0 %v1774, 32
  %v1777 = vpop.permute.xlu0 %1776
  %v1779 = vadd.f32 %v1769, %v1777
  %v1780 = vtanh.pop %v1779
  %1782 = vrot.lane.b32.xlu0 %v1780, 64
  %v1783 = vpop.permute.xlu0 %1782
  %v1785 = vmul.f32 %v1768, %v1783
  %1786 = vmatpush.msra.mxu0 0.0
  %1787 = vmatpush.msra.mxu0 0.0
  %1788 = vmatpush.msra.mxu0 0.0
  %1789 = vmatpush.msra.mxu0 0.0
  %1790 = vmatpush.msra.mxu0 0.0
  %1791 = vmatpush.msra.mxu0 0.0
  %1792 = vmatpush.msra.mxu0 0.0
  %1793 = vmatpush.msra.mxu0 0.0
  %1794 = vmatpush.msra.mxu0 0.0
  %1795 = vmatpush.msra.mxu0 0.0
  %1796 = vmatpush.msra.mxu0 0.0
  %1797 = vmatpush.msra.mxu0 0.0
  %1798 = vmatpush.msra.mxu0 %v100
  %1799 = vmatpush.msra.mxu0 %v99
  %1800 = vmatpush.msra.mxu0 %v98
  %1801 = vmatpush.msra.mxu0 %v97
  %1802 = vmatmul.f32.gmra.mxu0 %v1725
  %v1803 = vpop.f32.mrf.mxu0
  %v1804 = vadd.f32 0.0, %v1803
  %1805 = vdwg.mxu0
  %v1806 = vadd.f32 %v193, %v1804
  %1808 = vrot.lane.b32.xlu0 %v1785, 32
  %v1809 = vpop.permute.xlu0 %1808
  %v1810 = vsel %vm109, %v1809, 0
  %1812 = vmatpush.msra.mxu0 0.0
  %1813 = vmatpush.msra.mxu0 0.0
  %1814 = vmatpush.msra.mxu0 0.0
  %1815 = vmatpush.msra.mxu0 0.0
  %1816 = vmatpush.msra.mxu0 0.0
  %1817 = vmatpush.msra.mxu0 0.0
  %1818 = vmatpush.msra.mxu0 0.0
  %1819 = vmatpush.msra.mxu0 0.0
  %1820 = vmatpush.msra.mxu0 0.0
  %1821 = vmatpush.msra.mxu0 0.0
  %1822 = vmatpush.msra.mxu0 0.0
  %1823 = vmatpush.msra.mxu0 0.0
  %1824 = vmatpush.msra.mxu0 %v96
  %1825 = vmatpush.msra.mxu0 %v95
  %1826 = vmatpush.msra.mxu0 %v94
  %1827 = vmatpush.msra.mxu0 %v93
  %1828 = vmatmul.f32.gmra.mxu0 %v1810
  %v1829 = vpop.f32.mrf.mxu0
  %v1830 = vadd.f32 0.0, %v1829
  %1831 = vdwg.mxu0
  %v1832 = vadd.f32 %v1806, %v1830
  %v1833 = vxor.u32 %v1832, 2147483648
  %v1834 = vmul.f32 %v1833, 1.442695
  %v1835 = vpow.pop %v1834
  %v1836 = vadd.f32 %v1835, 1.0
  %v1837 = vrcp.pop %v1836
  %v1838 = vmul.f32 %v1836, %v1837
  %v1839 = vsub.f32 1.0, %v1838
  %v1840 = vmul.f32 %v1837, %v1839
  %v1841 = vadd.f32 %v1837, %v1840
  %vm1842 = vweird.f32 %v1836
  %vm1843 = vweird.f32 %v1837
  %vm1844 = vmor %vm1842, %vm1843
  %v1845 = vsel %vm1844, %v1837, %v1841
  %v1846 = vand.u32 2147483647, %v1836
  %vm1847 = vcmp.eq.f32.partialorder %v1846, 8.507059e+37
  %v1848 = vand.u32 %v1836, 2147483648
  %v1849 = vor.u32 1.1754944e-38, %v1848
  %v1850 = vsel %vm1847, %v1849, %v1845
  %v1851 = vmul.f32 1.0, %v1850
  %v1852 = vmul.f32 %v1851, %v107
  %v1853 = vadd.f32 %v1852, %v108
  %v1854 = vmul.f32 %v1853, %v1692
  %1856 = vrot.lane.b32.xlu0 %v1853, 64
  %v1857 = vpop.permute.xlu0 %1856
  %v1859 = vmul.f32 %v1853, %v1857
  %1861 = vrot.lane.b32.xlu0 %v1859, 32
  %v1862 = vpop.permute.xlu0 %1861
  %v1864 = vadd.f32 %v1854, %v1862
  %v1865 = vtanh.pop %v1864
  %1867 = vrot.lane.b32.xlu0 %v1865, 64
  %v1868 = vpop.permute.xlu0 %1867
  %v1870 = vmul.f32 %v1853, %v1868
  %1872 = vrot.lane.b32.xlu0 %v1870, 32
  %v1873 = vpop.permute.xlu0 %1872
  %1875 = vst.msk [vmem:[#allocation2 + $0x6] sm:$0x3] %vm1352, %v1873
  %1876 = vmatpush.msra.mxu0 0.0
  %1877 = vmatpush.msra.mxu0 0.0
  %1878 = vmatpush.msra.mxu0 0.0
  %1879 = vmatpush.msra.mxu0 0.0
  %1880 = vmatpush.msra.mxu0 0.0
  %1881 = vmatpush.msra.mxu0 0.0
  %1882 = vmatpush.msra.mxu0 0.0
  %1883 = vmatpush.msra.mxu0 0.0
  %1884 = vmatpush.msra.mxu0 0.0
  %1885 = vmatpush.msra.mxu0 0.0
  %1886 = vmatpush.msra.mxu0 0.0
  %1887 = vmatpush.msra.mxu0 0.0
  %1888 = vmatpush.msra.mxu0 %v91
  %1889 = vmatpush.msra.mxu0 %v90
  %1890 = vmatpush.msra.mxu0 %v89
  %1891 = vmatpush.msra.mxu0 %v88
  %1892 = vmatmul.f32.gmra.mxu0 %v1810
  %v1893 = vpop.f32.mrf.mxu0
  %v1894 = vadd.f32 0.0, %v1893
  %1895 = vdwg.mxu0
  %v1896 = vadd.f32 %v1375, %v1894
  %v1897 = vsel %vm109, %v1873, 0
  %1899 = vmatpush.msra.mxu0 0.0
  %1900 = vmatpush.msra.mxu0 0.0
  %1901 = vmatpush.msra.mxu0 0.0
  %1902 = vmatpush.msra.mxu0 0.0
  %1903 = vmatpush.msra.mxu0 0.0
  %1904 = vmatpush.msra.mxu0 0.0
  %1905 = vmatpush.msra.mxu0 0.0
  %1906 = vmatpush.msra.mxu0 0.0
  %1907 = vmatpush.msra.mxu0 0.0
  %1908 = vmatpush.msra.mxu0 0.0
  %1909 = vmatpush.msra.mxu0 0.0
  %1910 = vmatpush.msra.mxu0 0.0
  %1911 = vmatpush.msra.mxu0 %v87
  %1912 = vmatpush.msra.mxu0 %v86
  %1913 = vmatpush.msra.mxu0 %v85
  %1914 = vmatpush.msra.mxu0 %v84
  %1915 = vmatmul.f32.gmra.mxu0 %v1897
  %v1916 = vpop.f32.mrf.mxu0
  %v1917 = vadd.f32 0.0, %v1916
  %1918 = vdwg.mxu0
  %v1919 = vadd.f32 %v1896, %v1917
  %v1920 = vxor.u32 %v1919, 2147483648
  %v1921 = vmul.f32 %v1920, 1.442695
  %v1922 = vpow.pop %v1921
  %v1923 = vadd.f32 %v1922, 1.0
  %v1924 = vrcp.pop %v1923
  %v1925 = vmul.f32 %v1923, %v1924
  %v1926 = vsub.f32 1.0, %v1925
  %v1927 = vmul.f32 %v1924, %v1926
  %v1928 = vadd.f32 %v1924, %v1927
  %vm1929 = vweird.f32 %v1923
  %vm1930 = vweird.f32 %v1924
  %vm1931 = vmor %vm1929, %vm1930
  %v1932 = vsel %vm1931, %v1924, %v1928
  %v1933 = vand.u32 2147483647, %v1923
  %vm1934 = vcmp.eq.f32.partialorder %v1933, 8.507059e+37
  %v1935 = vand.u32 %v1923, 2147483648
  %v1936 = vor.u32 1.1754944e-38, %v1935
  %v1937 = vsel %vm1934, %v1936, %v1932
  %v1938 = vmul.f32 1.0, %v1937
  %v1939 = vmul.f32 %v1938, %v107
  %v1940 = vadd.f32 %v1939, %v108
  %v1941 = vmul.f32 %v1940, %v1779
  %1943 = vrot.lane.b32.xlu0 %v1940, 64
  %v1944 = vpop.permute.xlu0 %1943
  %v1946 = vmul.f32 %v1940, %v1944
  %1948 = vrot.lane.b32.xlu0 %v1946, 32
  %v1949 = vpop.permute.xlu0 %1948
  %v1951 = vadd.f32 %v1941, %v1949
  %v1952 = vtanh.pop %v1951
  %1954 = vrot.lane.b32.xlu0 %v1952, 64
  %v1955 = vpop.permute.xlu0 %1954
  %v1957 = vmul.f32 %v1940, %v1955
  %1958 = vmatpush.msra.mxu0 0.0
  %1959 = vmatpush.msra.mxu0 0.0
  %1960 = vmatpush.msra.mxu0 0.0
  %1961 = vmatpush.msra.mxu0 0.0
  %1962 = vmatpush.msra.mxu0 0.0
  %1963 = vmatpush.msra.mxu0 0.0
  %1964 = vmatpush.msra.mxu0 0.0
  %1965 = vmatpush.msra.mxu0 0.0
  %1966 = vmatpush.msra.mxu0 0.0
  %1967 = vmatpush.msra.mxu0 0.0
  %1968 = vmatpush.msra.mxu0 0.0
  %1969 = vmatpush.msra.mxu0 0.0
  %1970 = vmatpush.msra.mxu0 %v100
  %1971 = vmatpush.msra.mxu0 %v99
  %1972 = vmatpush.msra.mxu0 %v98
  %1973 = vmatpush.msra.mxu0 %v97
  %1974 = vmatmul.f32.gmra.mxu0 %v1897
  %v1975 = vpop.f32.mrf.mxu0
  %v1976 = vadd.f32 0.0, %v1975
  %1977 = vdwg.mxu0
  %v1978 = vadd.f32 %v193, %v1976
  %1980 = vrot.lane.b32.xlu0 %v1957, 32
  %v1981 = vpop.permute.xlu0 %1980
  %v1982 = vsel %vm109, %v1981, 0
  %1984 = vmatpush.msra.mxu0 0.0
  %1985 = vmatpush.msra.mxu0 0.0
  %1986 = vmatpush.msra.mxu0 0.0
  %1987 = vmatpush.msra.mxu0 0.0
  %1988 = vmatpush.msra.mxu0 0.0
  %1989 = vmatpush.msra.mxu0 0.0
  %1990 = vmatpush.msra.mxu0 0.0
  %1991 = vmatpush.msra.mxu0 0.0
  %1992 = vmatpush.msra.mxu0 0.0
  %1993 = vmatpush.msra.mxu0 0.0
  %1994 = vmatpush.msra.mxu0 0.0
  %1995 = vmatpush.msra.mxu0 0.0
  %1996 = vmatpush.msra.mxu0 %v96
  %1997 = vmatpush.msra.mxu0 %v95
  %1998 = vmatpush.msra.mxu0 %v94
  %1999 = vmatpush.msra.mxu0 %v93
  %2000 = vmatmul.f32.gmra.mxu0 %v1982
  %v2001 = vpop.f32.mrf.mxu0
  %v2002 = vadd.f32 0.0, %v2001
  %2003 = vdwg.mxu0
  %v2004 = vadd.f32 %v1978, %v2002
  %v2005 = vxor.u32 %v2004, 2147483648
  %v2006 = vmul.f32 %v2005, 1.442695
  %v2007 = vpow.pop %v2006
  %v2008 = vadd.f32 %v2007, 1.0
  %v2009 = vrcp.pop %v2008
  %v2010 = vmul.f32 %v2008, %v2009
  %v2011 = vsub.f32 1.0, %v2010
  %v2012 = vmul.f32 %v2009, %v2011
  %v2013 = vadd.f32 %v2009, %v2012
  %vm2014 = vweird.f32 %v2008
  %vm2015 = vweird.f32 %v2009
  %vm2016 = vmor %vm2014, %vm2015
  %v2017 = vsel %vm2016, %v2009, %v2013
  %v2018 = vand.u32 2147483647, %v2008
  %vm2019 = vcmp.eq.f32.partialorder %v2018, 8.507059e+37
  %v2020 = vand.u32 %v2008, 2147483648
  %v2021 = vor.u32 1.1754944e-38, %v2020
  %v2022 = vsel %vm2019, %v2021, %v2017
  %v2023 = vmul.f32 1.0, %v2022
  %v2024 = vmul.f32 %v2023, %v107
  %v2025 = vadd.f32 %v2024, %v108
  %v2026 = vmul.f32 %v2025, %v1864
  %2028 = vrot.lane.b32.xlu0 %v2025, 64
  %v2029 = vpop.permute.xlu0 %2028
  %v2031 = vmul.f32 %v2025, %v2029
  %2033 = vrot.lane.b32.xlu0 %v2031, 32
  %v2034 = vpop.permute.xlu0 %2033
  %v2036 = vadd.f32 %v2026, %v2034
  %v2037 = vtanh.pop %v2036
  %2039 = vrot.lane.b32.xlu0 %v2037, 64
  %v2040 = vpop.permute.xlu0 %2039
  %v2042 = vmul.f32 %v2025, %v2040
  %2044 = vrot.lane.b32.xlu0 %v2042, 32
  %v2045 = vpop.permute.xlu0 %2044
  %2047 = vst.msk [vmem:[#allocation2 + $0x8] sm:$0x3] %vm1352, %v2045
  %2048 = vmatpush.msra.mxu0 0.0
  %2049 = vmatpush.msra.mxu0 0.0
  %2050 = vmatpush.msra.mxu0 0.0
  %2051 = vmatpush.msra.mxu0 0.0
  %2052 = vmatpush.msra.mxu0 0.0
  %2053 = vmatpush.msra.mxu0 0.0
  %2054 = vmatpush.msra.mxu0 0.0
  %2055 = vmatpush.msra.mxu0 0.0
  %2056 = vmatpush.msra.mxu0 0.0
  %2057 = vmatpush.msra.mxu0 0.0
  %2058 = vmatpush.msra.mxu0 0.0
  %2059 = vmatpush.msra.mxu0 0.0
  %2060 = vmatpush.msra.mxu0 %v91
  %2061 = vmatpush.msra.mxu0 %v90
  %2062 = vmatpush.msra.mxu0 %v89
  %2063 = vmatpush.msra.mxu0 %v88
  %2064 = vmatmul.f32.gmra.mxu0 %v1982
  %v2065 = vpop.f32.mrf.mxu0
  %v2066 = vadd.f32 0.0, %v2065
  %2067 = vdwg.mxu0
  %v2068 = vadd.f32 %v1375, %v2066
  %v2069 = vsel %vm109, %v2045, 0
  %2071 = vmatpush.msra.mxu0 0.0
  %2072 = vmatpush.msra.mxu0 0.0
  %2073 = vmatpush.msra.mxu0 0.0
  %2074 = vmatpush.msra.mxu0 0.0
  %2075 = vmatpush.msra.mxu0 0.0
  %2076 = vmatpush.msra.mxu0 0.0
  %2077 = vmatpush.msra.mxu0 0.0
  %2078 = vmatpush.msra.mxu0 0.0
  %2079 = vmatpush.msra.mxu0 0.0
  %2080 = vmatpush.msra.mxu0 0.0
  %2081 = vmatpush.msra.mxu0 0.0
  %2082 = vmatpush.msra.mxu0 0.0
  %2083 = vmatpush.msra.mxu0 %v87
  %2084 = vmatpush.msra.mxu0 %v86
  %2085 = vmatpush.msra.mxu0 %v85
  %2086 = vmatpush.msra.mxu0 %v84
  %2087 = vmatmul.f32.gmra.mxu0 %v2069
  %v2088 = vpop.f32.mrf.mxu0
  %v2089 = vadd.f32 0.0, %v2088
  %2090 = vdwg.mxu0
  %v2091 = vadd.f32 %v2068, %v2089
  %v2092 = vxor.u32 %v2091, 2147483648
  %v2093 = vmul.f32 %v2092, 1.442695
  %v2094 = vpow.pop %v2093
  %v2095 = vadd.f32 %v2094, 1.0
  %v2096 = vrcp.pop %v2095
  %v2097 = vmul.f32 %v2095, %v2096
  %v2098 = vsub.f32 1.0, %v2097
  %v2099 = vmul.f32 %v2096, %v2098
  %v2100 = vadd.f32 %v2096, %v2099
  %vm2101 = vweird.f32 %v2095
  %vm2102 = vweird.f32 %v2096
  %vm2103 = vmor %vm2101, %vm2102
  %v2104 = vsel %vm2103, %v2096, %v2100
  %v2105 = vand.u32 2147483647, %v2095
  %vm2106 = vcmp.eq.f32.partialorder %v2105, 8.507059e+37
  %v2107 = vand.u32 %v2095, 2147483648
  %v2108 = vor.u32 1.1754944e-38, %v2107
  %v2109 = vsel %vm2106, %v2108, %v2104
  %v2110 = vmul.f32 1.0, %v2109
  %v2111 = vmul.f32 %v2110, %v107
  %v2112 = vadd.f32 %v2111, %v108
  %v2113 = vmul.f32 %v2112, %v1951
  %2115 = vrot.lane.b32.xlu0 %v2112, 64
  %v2116 = vpop.permute.xlu0 %2115
  %v2118 = vmul.f32 %v2112, %v2116
  %2120 = vrot.lane.b32.xlu0 %v2118, 32
  %v2121 = vpop.permute.xlu0 %2120
  %v2123 = vadd.f32 %v2113, %v2121
  %v2124 = vtanh.pop %v2123
  %2126 = vrot.lane.b32.xlu0 %v2124, 64
  %v2127 = vpop.permute.xlu0 %2126
  %v2129 = vmul.f32 %v2112, %v2127
  %2130 = vmatpush.msra.mxu0 0.0
  %2131 = vmatpush.msra.mxu0 0.0
  %2132 = vmatpush.msra.mxu0 0.0
  %2133 = vmatpush.msra.mxu0 0.0
  %2134 = vmatpush.msra.mxu0 0.0
  %2135 = vmatpush.msra.mxu0 0.0
  %2136 = vmatpush.msra.mxu0 0.0
  %2137 = vmatpush.msra.mxu0 0.0
  %2138 = vmatpush.msra.mxu0 0.0
  %2139 = vmatpush.msra.mxu0 0.0
  %2140 = vmatpush.msra.mxu0 0.0
  %2141 = vmatpush.msra.mxu0 0.0
  %2142 = vmatpush.msra.mxu0 %v100
  %2143 = vmatpush.msra.mxu0 %v99
  %2144 = vmatpush.msra.mxu0 %v98
  %2145 = vmatpush.msra.mxu0 %v97
  %2146 = vmatmul.f32.gmra.mxu0 %v2069
  %v2147 = vpop.f32.mrf.mxu0
  %v2148 = vadd.f32 0.0, %v2147
  %2149 = vdwg.mxu0
  %v2150 = vadd.f32 %v193, %v2148
  %2152 = vrot.lane.b32.xlu0 %v2129, 32
  %v2153 = vpop.permute.xlu0 %2152
  %v2154 = vsel %vm109, %v2153, 0
  %2156 = vmatpush.msra.mxu0 0.0
  %2157 = vmatpush.msra.mxu0 0.0
  %2158 = vmatpush.msra.mxu0 0.0
  %2159 = vmatpush.msra.mxu0 0.0
  %2160 = vmatpush.msra.mxu0 0.0
  %2161 = vmatpush.msra.mxu0 0.0
  %2162 = vmatpush.msra.mxu0 0.0
  %2163 = vmatpush.msra.mxu0 0.0
  %2164 = vmatpush.msra.mxu0 0.0
  %2165 = vmatpush.msra.mxu0 0.0
  %2166 = vmatpush.msra.mxu0 0.0
  %2167 = vmatpush.msra.mxu0 0.0
  %2168 = vmatpush.msra.mxu0 %v96
  %2169 = vmatpush.msra.mxu0 %v95
  %2170 = vmatpush.msra.mxu0 %v94
  %2171 = vmatpush.msra.mxu0 %v93
  %2172 = vmatmul.f32.gmra.mxu0 %v2154
  %v2173 = vpop.f32.mrf.mxu0
  %v2174 = vadd.f32 0.0, %v2173
  %2175 = vdwg.mxu0
  %v2176 = vadd.f32 %v2150, %v2174
  %v2177 = vxor.u32 %v2176, 2147483648
  %v2178 = vmul.f32 %v2177, 1.442695
  %v2179 = vpow.pop %v2178
  %v2180 = vadd.f32 %v2179, 1.0
  %v2181 = vrcp.pop %v2180
  %v2182 = vmul.f32 %v2180, %v2181
  %v2183 = vsub.f32 1.0, %v2182
  %v2184 = vmul.f32 %v2181, %v2183
  %v2185 = vadd.f32 %v2181, %v2184
  %vm2186 = vweird.f32 %v2180
  %vm2187 = vweird.f32 %v2181
  %vm2188 = vmor %vm2186, %vm2187
  %v2189 = vsel %vm2188, %v2181, %v2185
  %v2190 = vand.u32 2147483647, %v2180
  %vm2191 = vcmp.eq.f32.partialorder %v2190, 8.507059e+37
  %v2192 = vand.u32 %v2180, 2147483648
  %v2193 = vor.u32 1.1754944e-38, %v2192
  %v2194 = vsel %vm2191, %v2193, %v2189
  %v2195 = vmul.f32 1.0, %v2194
  %v2196 = vmul.f32 %v2195, %v107
  %v2197 = vadd.f32 %v2196, %v108
  %v2198 = vmul.f32 %v2197, %v2036
  %2200 = vrot.lane.b32.xlu0 %v2197, 64
  %v2201 = vpop.permute.xlu0 %2200
  %v2203 = vmul.f32 %v2197, %v2201
  %2205 = vrot.lane.b32.xlu0 %v2203, 32
  %v2206 = vpop.permute.xlu0 %2205
  %v2208 = vadd.f32 %v2198, %v2206
  %v2209 = vtanh.pop %v2208
  %2211 = vrot.lane.b32.xlu0 %v2209, 64
  %v2212 = vpop.permute.xlu0 %2211
  %v2214 = vmul.f32 %v2197, %v2212
  %2216 = vrot.lane.b32.xlu0 %v2214, 32
  %v2217 = vpop.permute.xlu0 %2216
  %2219 = vst.msk [vmem:[#allocation2 + $0xa] sm:$0x3] %vm1352, %v2217
  %2220 = vmatpush.msra.mxu0 0.0
  %2221 = vmatpush.msra.mxu0 0.0
  %2222 = vmatpush.msra.mxu0 0.0
  %2223 = vmatpush.msra.mxu0 0.0
  %2224 = vmatpush.msra.mxu0 0.0
  %2225 = vmatpush.msra.mxu0 0.0
  %2226 = vmatpush.msra.mxu0 0.0
  %2227 = vmatpush.msra.mxu0 0.0
  %2228 = vmatpush.msra.mxu0 0.0
  %2229 = vmatpush.msra.mxu0 0.0
  %2230 = vmatpush.msra.mxu0 0.0
  %2231 = vmatpush.msra.mxu0 0.0
  %2232 = vmatpush.msra.mxu0 %v91
  %2233 = vmatpush.msra.mxu0 %v90
  %2234 = vmatpush.msra.mxu0 %v89
  %2235 = vmatpush.msra.mxu0 %v88
  %2236 = vmatmul.f32.gmra.mxu0 %v2154
  %v2237 = vpop.f32.mrf.mxu0
  %v2238 = vadd.f32 0.0, %v2237
  %2239 = vdwg.mxu0
  %v2240 = vadd.f32 %v1375, %v2238
  %v2241 = vsel %vm109, %v2217, 0
  %2243 = vmatpush.msra.mxu0 0.0
  %2244 = vmatpush.msra.mxu0 0.0
  %2245 = vmatpush.msra.mxu0 0.0
  %2246 = vmatpush.msra.mxu0 0.0
  %2247 = vmatpush.msra.mxu0 0.0
  %2248 = vmatpush.msra.mxu0 0.0
  %2249 = vmatpush.msra.mxu0 0.0
  %2250 = vmatpush.msra.mxu0 0.0
  %2251 = vmatpush.msra.mxu0 0.0
  %2252 = vmatpush.msra.mxu0 0.0
  %2253 = vmatpush.msra.mxu0 0.0
  %2254 = vmatpush.msra.mxu0 0.0
  %2255 = vmatpush.msra.mxu0 %v87
  %2256 = vmatpush.msra.mxu0 %v86
  %2257 = vmatpush.msra.mxu0 %v85
  %2258 = vmatpush.msra.mxu0 %v84
  %2259 = vmatmul.f32.gmra.mxu0 %v2241
  %v2260 = vpop.f32.mrf.mxu0
  %v2261 = vadd.f32 0.0, %v2260
  %2262 = vdwg.mxu0
  %v2263 = vadd.f32 %v2240, %v2261
  %v2264 = vxor.u32 %v2263, 2147483648
  %v2265 = vmul.f32 %v2264, 1.442695
  %v2266 = vpow.pop %v2265
  %v2267 = vadd.f32 %v2266, 1.0
  %v2268 = vrcp.pop %v2267
  %v2269 = vmul.f32 %v2267, %v2268
  %v2270 = vsub.f32 1.0, %v2269
  %v2271 = vmul.f32 %v2268, %v2270
  %v2272 = vadd.f32 %v2268, %v2271
  %vm2273 = vweird.f32 %v2267
  %vm2274 = vweird.f32 %v2268
  %vm2275 = vmor %vm2273, %vm2274
  %v2276 = vsel %vm2275, %v2268, %v2272
  %v2277 = vand.u32 2147483647, %v2267
  %vm2278 = vcmp.eq.f32.partialorder %v2277, 8.507059e+37
  %v2279 = vand.u32 %v2267, 2147483648
  %v2280 = vor.u32 1.1754944e-38, %v2279
  %v2281 = vsel %vm2278, %v2280, %v2276
  %v2282 = vmul.f32 1.0, %v2281
  %v2283 = vmul.f32 %v2282, %v107
  %v2284 = vadd.f32 %v2283, %v108
  %v2285 = vmul.f32 %v2284, %v2123
  %2287 = vrot.lane.b32.xlu0 %v2284, 64
  %v2288 = vpop.permute.xlu0 %2287
  %v2290 = vmul.f32 %v2284, %v2288
  %2292 = vrot.lane.b32.xlu0 %v2290, 32
  %v2293 = vpop.permute.xlu0 %2292
  %v2295 = vadd.f32 %v2285, %v2293
  %v2296 = vtanh.pop %v2295
  %2298 = vrot.lane.b32.xlu0 %v2296, 64
  %v2299 = vpop.permute.xlu0 %2298
  %v2301 = vmul.f32 %v2284, %v2299
  %2302 = vmatpush.msra.mxu0 0.0
  %2303 = vmatpush.msra.mxu0 0.0
  %2304 = vmatpush.msra.mxu0 0.0
  %2305 = vmatpush.msra.mxu0 0.0
  %2306 = vmatpush.msra.mxu0 0.0
  %2307 = vmatpush.msra.mxu0 0.0
  %2308 = vmatpush.msra.mxu0 0.0
  %2309 = vmatpush.msra.mxu0 0.0
  %2310 = vmatpush.msra.mxu0 0.0
  %2311 = vmatpush.msra.mxu0 0.0
  %2312 = vmatpush.msra.mxu0 0.0
  %2313 = vmatpush.msra.mxu0 0.0
  %2314 = vmatpush.msra.mxu0 %v100
  %2315 = vmatpush.msra.mxu0 %v99
  %2316 = vmatpush.msra.mxu0 %v98
  %2317 = vmatpush.msra.mxu0 %v97
  %2318 = vmatmul.f32.gmra.mxu0 %v2241
  %v2319 = vpop.f32.mrf.mxu0
  %v2320 = vadd.f32 0.0, %v2319
  %2321 = vdwg.mxu0
  %v2322 = vadd.f32 %v193, %v2320
  %2324 = vrot.lane.b32.xlu0 %v2301, 32
  %v2325 = vpop.permute.xlu0 %2324
  %v2326 = vsel %vm109, %v2325, 0
  %2328 = vmatpush.msra.mxu0 0.0
  %2329 = vmatpush.msra.mxu0 0.0
  %2330 = vmatpush.msra.mxu0 0.0
  %2331 = vmatpush.msra.mxu0 0.0
  %2332 = vmatpush.msra.mxu0 0.0
  %2333 = vmatpush.msra.mxu0 0.0
  %2334 = vmatpush.msra.mxu0 0.0
  %2335 = vmatpush.msra.mxu0 0.0
  %2336 = vmatpush.msra.mxu0 0.0
  %2337 = vmatpush.msra.mxu0 0.0
  %2338 = vmatpush.msra.mxu0 0.0
  %2339 = vmatpush.msra.mxu0 0.0
  %2340 = vmatpush.msra.mxu0 %v96
  %2341 = vmatpush.msra.mxu0 %v95
  %2342 = vmatpush.msra.mxu0 %v94
  %2343 = vmatpush.msra.mxu0 %v93
  %2344 = vmatmul.f32.gmra.mxu0 %v2326
  %v2345 = vpop.f32.mrf.mxu0
  %v2346 = vadd.f32 0.0, %v2345
  %2347 = vdwg.mxu0
  %v2348 = vadd.f32 %v2322, %v2346
  %v2349 = vxor.u32 %v2348, 2147483648
  %v2350 = vmul.f32 %v2349, 1.442695
  %v2351 = vpow.pop %v2350
  %v2352 = vadd.f32 %v2351, 1.0
  %v2353 = vrcp.pop %v2352
  %v2354 = vmul.f32 %v2352, %v2353
  %v2355 = vsub.f32 1.0, %v2354
  %v2356 = vmul.f32 %v2353, %v2355
  %v2357 = vadd.f32 %v2353, %v2356
  %vm2358 = vweird.f32 %v2352
  %vm2359 = vweird.f32 %v2353
  %vm2360 = vmor %vm2358, %vm2359
  %v2361 = vsel %vm2360, %v2353, %v2357
  %v2362 = vand.u32 2147483647, %v2352
  %vm2363 = vcmp.eq.f32.partialorder %v2362, 8.507059e+37
  %v2364 = vand.u32 %v2352, 2147483648
  %v2365 = vor.u32 1.1754944e-38, %v2364
  %v2366 = vsel %vm2363, %v2365, %v2361
  %v2367 = vmul.f32 1.0, %v2366
  %v2368 = vmul.f32 %v2367, %v107
  %v2369 = vadd.f32 %v2368, %v108
  %v2370 = vmul.f32 %v2369, %v2208
  %2372 = vrot.lane.b32.xlu0 %v2369, 64
  %v2373 = vpop.permute.xlu0 %2372
  %v2375 = vmul.f32 %v2369, %v2373
  %2377 = vrot.lane.b32.xlu0 %v2375, 32
  %v2378 = vpop.permute.xlu0 %2377
  %v2380 = vadd.f32 %v2370, %v2378
  %v2381 = vtanh.pop %v2380
  %2383 = vrot.lane.b32.xlu0 %v2381, 64
  %v2384 = vpop.permute.xlu0 %2383
  %v2386 = vmul.f32 %v2369, %v2384
  %2388 = vrot.lane.b32.xlu0 %v2386, 32
  %v2389 = vpop.permute.xlu0 %2388
  %2391 = vst.msk [vmem:[#allocation2 + $0xc] sm:$0x3] %vm1352, %v2389
  %2392 = vmatpush.msra.mxu0 0.0
  %2393 = vmatpush.msra.mxu0 0.0
  %2394 = vmatpush.msra.mxu0 0.0
  %2395 = vmatpush.msra.mxu0 0.0
  %2396 = vmatpush.msra.mxu0 0.0
  %2397 = vmatpush.msra.mxu0 0.0
  %2398 = vmatpush.msra.mxu0 0.0
  %2399 = vmatpush.msra.mxu0 0.0
  %2400 = vmatpush.msra.mxu0 0.0
  %2401 = vmatpush.msra.mxu0 0.0
  %2402 = vmatpush.msra.mxu0 0.0
  %2403 = vmatpush.msra.mxu0 0.0
  %2404 = vmatpush.msra.mxu0 %v91
  %2405 = vmatpush.msra.mxu0 %v90
  %2406 = vmatpush.msra.mxu0 %v89
  %2407 = vmatpush.msra.mxu0 %v88
  %2408 = vmatmul.f32.gmra.mxu0 %v2326
  %v2409 = vpop.f32.mrf.mxu0
  %v2410 = vadd.f32 0.0, %v2409
  %2411 = vdwg.mxu0
  %v2412 = vadd.f32 %v1375, %v2410
  %v2413 = vsel %vm109, %v2389, 0
  %2415 = vmatpush.msra.mxu0 0.0
  %2416 = vmatpush.msra.mxu0 0.0
  %2417 = vmatpush.msra.mxu0 0.0
  %2418 = vmatpush.msra.mxu0 0.0
  %2419 = vmatpush.msra.mxu0 0.0
  %2420 = vmatpush.msra.mxu0 0.0
  %2421 = vmatpush.msra.mxu0 0.0
  %2422 = vmatpush.msra.mxu0 0.0
  %2423 = vmatpush.msra.mxu0 0.0
  %2424 = vmatpush.msra.mxu0 0.0
  %2425 = vmatpush.msra.mxu0 0.0
  %2426 = vmatpush.msra.mxu0 0.0
  %2427 = vmatpush.msra.mxu0 %v87
  %2428 = vmatpush.msra.mxu0 %v86
  %2429 = vmatpush.msra.mxu0 %v85
  %2430 = vmatpush.msra.mxu0 %v84
  %2431 = vmatmul.f32.gmra.mxu0 %v2413
  %v2432 = vpop.f32.mrf.mxu0
  %v2433 = vadd.f32 0.0, %v2432
  %2434 = vdwg.mxu0
  %v2435 = vadd.f32 %v2412, %v2433
  %v2436 = vxor.u32 %v2435, 2147483648
  %v2437 = vmul.f32 %v2436, 1.442695
  %v2438 = vpow.pop %v2437
  %v2439 = vadd.f32 %v2438, 1.0
  %v2440 = vrcp.pop %v2439
  %v2441 = vmul.f32 %v2439, %v2440
  %v2442 = vsub.f32 1.0, %v2441
  %v2443 = vmul.f32 %v2440, %v2442
  %v2444 = vadd.f32 %v2440, %v2443
  %vm2445 = vweird.f32 %v2439
  %vm2446 = vweird.f32 %v2440
  %vm2447 = vmor %vm2445, %vm2446
  %v2448 = vsel %vm2447, %v2440, %v2444
  %v2449 = vand.u32 2147483647, %v2439
  %vm2450 = vcmp.eq.f32.partialorder %v2449, 8.507059e+37
  %v2451 = vand.u32 %v2439, 2147483648
  %v2452 = vor.u32 1.1754944e-38, %v2451
  %v2453 = vsel %vm2450, %v2452, %v2448
  %v2454 = vmul.f32 1.0, %v2453
  %v2455 = vmul.f32 %v2454, %v107
  %v2456 = vadd.f32 %v2455, %v108
  %v2457 = vmul.f32 %v2456, %v2295
  %2459 = vrot.lane.b32.xlu0 %v2456, 64
  %v2460 = vpop.permute.xlu0 %2459
  %v2462 = vmul.f32 %v2456, %v2460
  %2464 = vrot.lane.b32.xlu0 %v2462, 32
  %v2465 = vpop.permute.xlu0 %2464
  %v2467 = vadd.f32 %v2457, %v2465
  %v2468 = vtanh.pop %v2467
  %2470 = vrot.lane.b32.xlu0 %v2468, 64
  %v2471 = vpop.permute.xlu0 %2470
  %v2473 = vmul.f32 %v2456, %v2471
  %2474 = vmatpush.msra.mxu0 0.0
  %2475 = vmatpush.msra.mxu0 0.0
  %2476 = vmatpush.msra.mxu0 0.0
  %2477 = vmatpush.msra.mxu0 0.0
  %2478 = vmatpush.msra.mxu0 0.0
  %2479 = vmatpush.msra.mxu0 0.0
  %2480 = vmatpush.msra.mxu0 0.0
  %2481 = vmatpush.msra.mxu0 0.0
  %2482 = vmatpush.msra.mxu0 0.0
  %2483 = vmatpush.msra.mxu0 0.0
  %2484 = vmatpush.msra.mxu0 0.0
  %2485 = vmatpush.msra.mxu0 0.0
  %2486 = vmatpush.msra.mxu0 %v100
  %2487 = vmatpush.msra.mxu0 %v99
  %2488 = vmatpush.msra.mxu0 %v98
  %2489 = vmatpush.msra.mxu0 %v97
  %2490 = vmatmul.f32.gmra.mxu0 %v2413
  %v2491 = vpop.f32.mrf.mxu0
  %v2492 = vadd.f32 0.0, %v2491
  %2493 = vdwg.mxu0
  %v2494 = vadd.f32 %v193, %v2492
  %2496 = vrot.lane.b32.xlu0 %v2473, 32
  %v2497 = vpop.permute.xlu0 %2496
  %v2498 = vsel %vm109, %v2497, 0
  %2500 = vmatpush.msra.mxu0 0.0
  %2501 = vmatpush.msra.mxu0 0.0
  %2502 = vmatpush.msra.mxu0 0.0
  %2503 = vmatpush.msra.mxu0 0.0
  %2504 = vmatpush.msra.mxu0 0.0
  %2505 = vmatpush.msra.mxu0 0.0
  %2506 = vmatpush.msra.mxu0 0.0
  %2507 = vmatpush.msra.mxu0 0.0
  %2508 = vmatpush.msra.mxu0 0.0
  %2509 = vmatpush.msra.mxu0 0.0
  %2510 = vmatpush.msra.mxu0 0.0
  %2511 = vmatpush.msra.mxu0 0.0
  %2512 = vmatpush.msra.mxu0 %v96
  %2513 = vmatpush.msra.mxu0 %v95
  %2514 = vmatpush.msra.mxu0 %v94
  %2515 = vmatpush.msra.mxu0 %v93
  %2516 = vmatmul.f32.gmra.mxu0 %v2498
  %v2517 = vpop.f32.mrf.mxu0
  %v2518 = vadd.f32 0.0, %v2517
  %2519 = vdwg.mxu0
  %v2520 = vadd.f32 %v2494, %v2518
  %v2521 = vxor.u32 %v2520, 2147483648
  %v2522 = vmul.f32 %v2521, 1.442695
  %v2523 = vpow.pop %v2522
  %v2524 = vadd.f32 %v2523, 1.0
  %v2525 = vrcp.pop %v2524
  %v2526 = vmul.f32 %v2524, %v2525
  %v2527 = vsub.f32 1.0, %v2526
  %v2528 = vmul.f32 %v2525, %v2527
  %v2529 = vadd.f32 %v2525, %v2528
  %vm2530 = vweird.f32 %v2524
  %vm2531 = vweird.f32 %v2525
  %vm2532 = vmor %vm2530, %vm2531
  %v2533 = vsel %vm2532, %v2525, %v2529
  %v2534 = vand.u32 2147483647, %v2524
  %vm2535 = vcmp.eq.f32.partialorder %v2534, 8.507059e+37
  %v2536 = vand.u32 %v2524, 2147483648
  %v2537 = vor.u32 1.1754944e-38, %v2536
  %v2538 = vsel %vm2535, %v2537, %v2533
  %v2539 = vmul.f32 1.0, %v2538
  %v2540 = vmul.f32 %v2539, %v107
  %v2541 = vadd.f32 %v2540, %v108
  %v2542 = vmul.f32 %v2541, %v2380
  %2544 = vrot.lane.b32.xlu0 %v2541, 64
  %v2545 = vpop.permute.xlu0 %2544
  %v2547 = vmul.f32 %v2541, %v2545
  %2549 = vrot.lane.b32.xlu0 %v2547, 32
  %v2550 = vpop.permute.xlu0 %2549
  %v2552 = vadd.f32 %v2542, %v2550
  %v2553 = vtanh.pop %v2552
  %2555 = vrot.lane.b32.xlu0 %v2553, 64
  %v2556 = vpop.permute.xlu0 %2555
  %v2558 = vmul.f32 %v2541, %v2556
  %2560 = vrot.lane.b32.xlu0 %v2558, 32
  %v2561 = vpop.permute.xlu0 %2560
  %2563 = vst.msk [vmem:[#allocation2 + $0xe] sm:$0x3] %vm1352, %v2561
  %v2564 = vld [vmem:[#allocation2] sm:$0xff]
  %v2565 = vld [vmem:[#allocation2 + $0x8] sm:$0xff]
  %v2566 = vld [vmem:[%s9] sm:$0xff]
  %v2567 = vld [vmem:[%s9 + $0x8] sm:$0xff]
  %v2568 = vld [vmem:[%s9 + $0x10] sm:$0xff]
  %v2569 = vld [vmem:[%s9 + $0x18] sm:$0xff]
  %v2570 = vld [vmem:[%s10] sm:$0x1]
  %v2572 = vperm.slane %v2570, 0
  %v2575 = vsel %vm109, %v2564, 0
  %v2578 = vsel %vm109, %v2565, 0
  %2580 = vmatpush.msra.mxu0 0.0
  %2581 = vmatpush.msra.mxu0 0.0
  %2582 = vmatpush.msra.mxu0 0.0
  %2583 = vmatpush.msra.mxu0 0.0
  %2584 = vmatpush.msra.mxu0 0.0
  %2585 = vmatpush.msra.mxu0 0.0
  %2586 = vmatpush.msra.mxu0 0.0
  %2587 = vmatpush.msra.mxu0 0.0
  %2588 = vmatpush.msra.mxu0 0.0
  %2589 = vmatpush.msra.mxu0 0.0
  %2590 = vmatpush.msra.mxu0 0.0
  %2591 = vmatpush.msra.mxu0 0.0
  %2592 = vmatpush.msra.mxu0 %v2569
  %2593 = vmatpush.msra.mxu0 %v2568
  %2594 = vmatpush.msra.mxu0 %v2567
  %2595 = vmatpush.msra.mxu0 %v2566
  %2596 = vmatmul.f32.gmra.mxu0 %v2575
  %v2597 = vpop.f32.mrf.mxu0
  %v2598 = vadd.f32 %v2572, %v2597
  %2599 = vmatmul.f32.gmra.mxu0 %v2578
  %v2600 = vpop.f32.mrf.mxu0
  %v2601 = vadd.f32 %v2572, %v2600
  %2602 = vdwg.mxu0
  %2605 = vrot.lane.b32.xlu0 %v2598, 64
  %v2606 = vpop.permute.xlu0 %2605
  %2607 = vrot.lane.b32.xlu0 %v2601, 64
  %v2608 = vpop.permute.xlu0 %2607
  %vm2611 = vcmask 1048064
  %2612 = vst.msk [vmem:[%s11] sm:$0xff] %vm2611, %v2606
  %2613 = vst.msk [vmem:[%s11 + $0x8] sm:$0xff] %vm2611, %v2608
  // Predicated region
  $region46: #{recurrent_content_transfer.1} parent=0 // pred_check
    _
  $region47: #{recurrent_content_transfer.1} parent=0 // pred_check_branch
    %2615 = sbr.rel (0) target = $region49
  $region48: #{recurrent_content_transfer.1} parent=0 // pred_region
    _
  $region49: #{recurrent_content_transfer.1} parent=0 // pred_fallthru
    _
  // Predicated region
  $region50: #{recurrent_content_transfer.1} parent=0 // pred_check
    _
  $region51: #{recurrent_content_transfer.1} parent=0 // pred_check_branch
    %2617 = sbr.rel (0) target = $region53
  $region52: #{recurrent_content_transfer.1} parent=0 // pred_region
    _
  $region53: #{recurrent_content_transfer.1} parent=0 // pred_fallthru
    _

</llo_original>
